<compile_context>
chip_gen: v7x
topology: tpu7x:2x2x1
jax: 0.10.0
libtpu: 0.0.40
codegen_flags: <defaults>
</compile_context>

<pallas_src>
import functools
import math

import jax
import jax.numpy as jnp
from jax import lax
from jax.experimental import pallas as pl
from jax.experimental.pallas import tpu as pltpu


# ----------------------------------------------------------------------------
# Fused kernel: one (pred, batch) cell, both attention directions
# ----------------------------------------------------------------------------
def _corr_kernel(
    fs_ref, ft_ref, xs_ref, xt_ref,
    wq_ref, bq_ref, wk_ref, bk_ref,
    w1f_ref, w1x_ref, w1c_ref, b1_ref,
    w2_ref, b2_ref, w3_ref, b3_ref,
    wmf_ref, wmx_ref, wmc_ref, bm_ref,
    wo_ref, bo_ref,
    s_corr_ref, s_match_ref, s_ov_ref,
    t_corr_ref, t_match_ref, t_ov_ref,
    *, d_embed):
    fs = fs_ref[...]          # (Ns, D)  source features
    ft = ft_ref[...]          # (Nt, D)  target features
    xs = xs_ref[...]          # (Ns, 3)  source xyz
    xt = xt_ref[...]          # (Nt, 3)  target xyz

    inv_sqrt_d = 1.0 / math.sqrt(d_embed)
    wq = wq_ref[...]
    bq = bq_ref[...]
    wk = wk_ref[...]
    bk = bk_ref[...]

    # --- q/k projections for both clouds (MXU, lane-major) -------------------
    qs = (jnp.dot(fs, wq, preferred_element_type=jnp.float32) + bq) * inv_sqrt_d
    qt = (jnp.dot(ft, wq, preferred_element_type=jnp.float32) + bq) * inv_sqrt_d
    ks = jnp.dot(fs, wk, preferred_element_type=jnp.float32) + bk
    kt = jnp.dot(ft, wk, preferred_element_type=jnp.float32) + bk

    def attend(q, k, v_xyz):
        # logits[q, s] = sum_d q[q, d] * k[s, d]   (no explicit k transpose)
        logits = lax.dot_general(q, k, (((1,), (1,)), ((), ())),
                                 preferred_element_type=jnp.float32)
        logits = logits - jnp.max(logits, axis=-1, keepdims=True)
        e = jnp.exp(logits)
        attn = e / jnp.sum(e, axis=-1, keepdims=True)
        return jnp.dot(attn, v_xyz, preferred_element_type=jnp.float32)   # (Q, 3)

    # rank-3 contributions on the VPU (contraction dim = 3, keep MXU out of it)
    def xyz_contrib(xyz3, w3h):   # (Q, 3) x (3, H) -> (Q, H)
        return (xyz3[:, 0:1] * w3h[0:1, :]
                + xyz3[:, 1:2] * w3h[1:2, :]
                + xyz3[:, 2:3] * w3h[2:3, :])

    def branch(f, x, corr0, corr_ref, match_ref, ov_ref):
        # coor_mlp_ on concat([feats, xyz, corr0])  (concat avoided)
        h = jnp.dot(f, w1f_ref[...], preferred_element_type=jnp.float32)
        h = h + xyz_contrib(x, w1x_ref[...]) + xyz_contrib(corr0, w1c_ref[...])
        h = jnp.maximum(h + b1_ref[...], 0.0)
        h = jnp.dot(h, w2_ref[...], preferred_element_type=jnp.float32) + b2_ref[...]
        h = jnp.maximum(h, 0.0)
        bias = jnp.dot(h, w3_ref[...], preferred_element_type=jnp.float32) + b3_ref[...]
        corr1 = corr0 + bias                                              # (Q, 3)

        # conf_match_decoder on concat([feats, xyz, corr1])
        m = jnp.dot(f, wmf_ref[...], preferred_element_type=jnp.float32)  # (Q, 1)
        m = m + xyz_contrib(x, wmx_ref[...]) + xyz_contrib(corr1, wmc_ref[...])
        m = m + bm_ref[...]

        # conf_logits_decoder on the raw features
        ov = jnp.dot(f, wo_ref[...], preferred_element_type=jnp.float32) + bo_ref[...]

        corr_ref[...] = corr1
        match_ref[...] = m
        ov_ref[...] = ov

    corr_s0 = attend(qs, kt, xt)      # src queries attend over tgt xyz
    corr_t0 = attend(qt, ks, xs)      # tgt queries attend over src xyz
    branch(fs, xs, corr_s0, s_corr_ref, s_match_ref, s_ov_ref)
    branch(ft, xt, corr_t0, t_corr_ref, t_match_ref, t_ov_ref)


_WEIGHT_ORDER = ("wq", "bq", "wk", "bk",
                 "w1f", "w1x", "w1c", "b1",
                 "w2", "b2", "w3", "b3",
                 "wmf", "wmx", "wmc", "bm",
                 "wo", "bo")


def _prep_kernel_params(params, d_embed):
    """Convert torch-convention (out, in) weights to lane-major kernel layout."""
    D = d_embed
    w1t = params["coor_w1"].T        # (D+6, D+6), input dim first
    wmt = params["match_w"].T        # (D+6, 1)
    return {
        "wq": params["q_w"].T, "bq": params["q_b"].reshape(1, D),
        "wk": params["k_w"].T, "bk": params["k_b"].reshape(1, D),
        "w1f": w1t[:D], "w1x": w1t[D:D + 3], "w1c": w1t[D + 3:D + 6],
        "b1": params["coor_b1"].reshape(1, -1),
        "w2": params["coor_w2"].T, "b2": params["coor_b2"].reshape(1, -1),
        "w3": params["coor_w3"].T, "b3": params["coor_b3"].reshape(1, 3),
        "wmf": wmt[:D], "wmx": wmt[D:D + 3], "wmc": wmt[D + 3:D + 6],
        "bm": params["match_b"].reshape(1, 1),
        "wo": params["overlap_w"].T, "bo": params["overlap_b"].reshape(1, 1),
    }


def _run_fused(src_f, tgt_f, src_xyz_b, tgt_xyz_b, kp, d_embed):
    """src_f: (P, B, Ns, D); tgt_f: (P, B, Nt, D); xyz: (B, N, 3)."""
    P, B, Ns, D = src_f.shape
    Nt = tgt_f.shape[2]

    kernel = functools.partial(_corr_kernel, d_embed=d_embed)

    weight_list = [jnp.asarray(kp[name], jnp.float32) for name in _WEIGHT_ORDER]
    weight_specs = [pl.BlockSpec(tuple(w.shape), lambda p, b: (0, 0))
                    for w in weight_list]

    in_specs = [
        pl.BlockSpec((None, None, Ns, D), lambda p, b: (p, b, 0, 0)),
        pl.BlockSpec((None, None, Nt, D), lambda p, b: (p, b, 0, 0)),
        pl.BlockSpec((None, Ns, 3), lambda p, b: (b, 0, 0)),
        pl.BlockSpec((None, Nt, 3), lambda p, b: (b, 0, 0)),
    ] + weight_specs

    out_shapes = (
        jax.ShapeDtypeStruct((P, B, Ns, 3), jnp.float32),
        jax.ShapeDtypeStruct((P, B, Ns, 1), jnp.float32),
        jax.ShapeDtypeStruct((P, B, Ns, 1), jnp.float32),
        jax.ShapeDtypeStruct((P, B, Nt, 3), jnp.float32),
        jax.ShapeDtypeStruct((P, B, Nt, 1), jnp.float32),
        jax.ShapeDtypeStruct((P, B, Nt, 1), jnp.float32),
    )
    out_specs = (
        pl.BlockSpec((None, None, Ns, 3), lambda p, b: (p, b, 0, 0)),
        pl.BlockSpec((None, None, Ns, 1), lambda p, b: (p, b, 0, 0)),
        pl.BlockSpec((None, None, Ns, 1), lambda p, b: (p, b, 0, 0)),
        pl.BlockSpec((None, None, Nt, 3), lambda p, b: (p, b, 0, 0)),
        pl.BlockSpec((None, None, Nt, 1), lambda p, b: (p, b, 0, 0)),
        pl.BlockSpec((None, None, Nt, 1), lambda p, b: (p, b, 0, 0)),
    )

    return pl.pallas_call(
        kernel,
        out_shape=out_shapes,
        grid=(P, B),
        in_specs=in_specs,
        out_specs=out_specs,
        compiler_params=pltpu.CompilerParams(
            dimension_semantics=("parallel", "parallel")),
    )(src_f, tgt_f, src_xyz_b, tgt_xyz_b, *weight_list)


# ----------------------------------------------------------------------------
# Public wrapper mirroring CorrespondenceDecoder.forward
# ----------------------------------------------------------------------------
def correspondence_decoder_forward(params, src_feats_padded, tgt_feats_padded,
                                   src_xyz, tgt_xyz, d_embed):
    """
    src_feats_padded: (N_pred, N_src, B, D); tgt_feats_padded: (N_pred, N_tgt, B, D)
    src_xyz / tgt_xyz: lists of B arrays of shape (N_src, 3) / (N_tgt, 3).
    Returns the six lists of the PyTorch module (per-batch (N_pred, N, C) arrays).
    """
    # TODO(synk): variable-length clouds (key_padding_mask), use_pos_emb=True
    # (external pos_embed module) and num_neighbors>0 top-k masking are not
    # implemented; this covers the use_pos_emb=False, equal-length path.
    src_xyz_b = jnp.stack(src_xyz, 0).astype(jnp.float32)    # (B, Ns, 3)
    tgt_xyz_b = jnp.stack(tgt_xyz, 0).astype(jnp.float32)    # (B, Nt, 3)
    src_f = jnp.transpose(src_feats_padded, (0, 2, 1, 3)).astype(jnp.float32)
    tgt_f = jnp.transpose(tgt_feats_padded, (0, 2, 1, 3)).astype(jnp.float32)

    kp = _prep_kernel_params(params, d_embed)

    (src_corr, src_match, src_ov,
     tgt_corr, tgt_match, tgt_ov) = _run_fused(src_f, tgt_f, src_xyz_b,
                                               tgt_xyz_b, kp, d_embed)

    B = src_xyz_b.shape[0]
    unpad = lambda x: [x[:, b] for b in range(B)]   # (P, B, N, C) -> B x (P, N, C)
    return (unpad(src_corr), unpad(tgt_corr),
            unpad(src_ov), unpad(tgt_ov),
            unpad(src_match), unpad(tgt_match))


# ----------------------------------------------------------------------------
# Pure-JAX reference mirroring the PyTorch semantics
# ----------------------------------------------------------------------------
def correspondence_decoder_reference(params, src_feats, tgt_feats, src_xyz, tgt_xyz, d_embed):
    src_xyz_b = jnp.stack(src_xyz, 0).astype(jnp.float32)    # (B, Ns, 3)
    tgt_xyz_b = jnp.stack(tgt_xyz, 0).astype(jnp.float32)    # (B, Nt, 3)
    D = d_embed

    def linear(x, w, b):
        return jnp.matmul(x, w.T) + b

    def simple_attention(qf, kf, vxyz_b):
        q = linear(qf, params["q_w"], params["q_b"]) / math.sqrt(D)
        k = linear(kf, params["k_w"], params["k_b"])
        attn = jnp.einsum('pqbd,psbd->pbqs', q, k)
        attn = jax.nn.softmax(attn, axis=-1)
        return jnp.einsum('pbqs,bse->pqbe', attn, vxyz_b)    # (P, Q, B, 3)

    def branch(feats, xyz_b, other_feats, other_xyz_b):
        P = feats.shape[0]
        corr = simple_attention(feats, other_feats, other_xyz_b)
        xyz_nb = jnp.transpose(xyz_b, (1, 0, 2))             # (N, B, 3)
        xyz_exp = jnp.broadcast_to(xyz_nb[None], (P,) + xyz_nb.shape)
        f2 = jnp.concatenate([feats, xyz_exp, corr], axis=-1)
        h = jax.nn.relu(linear(f2, params["coor_w1"], params["coor_b1"]))
        h = jax.nn.relu(linear(h, params["coor_w2"], params["coor_b2"]))
        bias = linear(h, params["coor_w3"], params["coor_b3"])
        corr = bias + corr
        f3 = jnp.concatenate([feats, xyz_exp, corr], axis=-1)
        match = linear(f3, params["match_w"], params["match_b"])
        overlap = linear(feats, params["overlap_w"], params["overlap_b"])
        return corr, match, overlap

    s_corr, s_match, s_ov = branch(src_feats, src_xyz_b, tgt_feats, tgt_xyz_b)
    t_corr, t_match, t_ov = branch(tgt_feats, tgt_xyz_b, src_feats, src_xyz_b)

    B = src_xyz_b.shape[0]
    unpad = lambda x: [x[:, :, b] for b in range(B)]   # (P, N, B, C) -> B x (P, N, C)
    return (unpad(s_corr), unpad(t_corr), unpad(s_ov), unpad(t_ov),
            unpad(s_match), unpad(t_match))


if __name__ == "__main__":
    P, B, N_SRC, N_TGT, D = 2, 2, 16, 24, 32
    H = D + 6

    key = jax.random.PRNGKey(0)
    keys = jax.random.split(key, 18)

    def uinit(k, shape, fan_in):
        lim = 1.0 / math.sqrt(fan_in)
        return jax.random.uniform(k, shape, jnp.float32, -lim, lim)

    params = {
        "q_w": uinit(keys[0], (D, D), D), "q_b": uinit(keys[1], (D,), D),
        "k_w": uinit(keys[2], (D, D), D), "k_b": uinit(keys[3], (D,), D),
        "coor_w1": uinit(keys[4], (H, H), H), "coor_b1": uinit(keys[5], (H,), H),
        "coor_w2": uinit(keys[6], (H, H), H), "coor_b2": uinit(keys[7], (H,), H),
        "coor_w3": uinit(keys[8], (3, H), H), "coor_b3": uinit(keys[9], (3,), H),
        "match_w": uinit(keys[10], (1, H), H), "match_b": uinit(keys[11], (1,), H),
        "overlap_w": uinit(keys[12], (1, D), D), "overlap_b": uinit(keys[13], (1,), D),
    }

    src_feats = jax.random.normal(keys[14], (P, N_SRC, B, D), jnp.float32)
    tgt_feats = jax.random.normal(keys[15], (P, N_TGT, B, D), jnp.float32)
    src_xyz = [jax.random.normal(jax.random.fold_in(keys[16], b), (N_SRC, 3), jnp.float32)
               for b in range(B)]
    tgt_xyz = [jax.random.normal(jax.random.fold_in(keys[17], b), (N_TGT, 3), jnp.float32)
               for b in range(B)]

    outs = correspondence_decoder_forward(params, src_feats, tgt_feats, src_xyz, tgt_xyz, D)
    outs = jax.block_until_ready(outs)

    refs = correspondence_decoder_reference(params, src_feats, tgt_feats, src_xyz, tgt_xyz, D)

    names = ["src_corr", "tgt_corr", "src_overlap", "tgt_overlap", "src_match", "tgt_match"]
    for name, out_list, ref_list in zip(names, outs, refs):
        assert len(out_list) == B
        for b, (o, r) in enumerate(zip(out_list, ref_list)):
            assert o.shape == r.shape, f"{name}[{b}] shape {o.shape} vs {r.shape}"
            maxdiff = float(jnp.max(jnp.abs(o - r)))
            assert jnp.allclose(o, r, atol=2e-2, rtol=2e-2), \
                f"{name}[{b}] mismatch, max abs diff {maxdiff}"

    print("KERNEL_OK")
</pallas_src>

<mosaic_0001>
module attributes {stable_mosaic.version = 11 : i64} {
  func.func @_corr_kernel(%arg0: i32, %arg1: i32, %arg2: memref<1x1x16x32xf32, #tpu.memory_space<vmem>>, %arg3: memref<1x1x24x32xf32, #tpu.memory_space<vmem>>, %arg4: memref<1x16x3xf32, #tpu.memory_space<vmem>>, %arg5: memref<1x24x3xf32, #tpu.memory_space<vmem>>, %arg6: memref<32x32xf32, #tpu.memory_space<vmem>>, %arg7: memref<1x32xf32, #tpu.memory_space<vmem>>, %arg8: memref<32x32xf32, #tpu.memory_space<vmem>>, %arg9: memref<1x32xf32, #tpu.memory_space<vmem>>, %arg10: memref<32x38xf32, #tpu.memory_space<vmem>>, %arg11: memref<3x38xf32, #tpu.memory_space<vmem>>, %arg12: memref<3x38xf32, #tpu.memory_space<vmem>>, %arg13: memref<1x38xf32, #tpu.memory_space<vmem>>, %arg14: memref<38x38xf32, #tpu.memory_space<vmem>>, %arg15: memref<1x38xf32, #tpu.memory_space<vmem>>, %arg16: memref<38x3xf32, #tpu.memory_space<vmem>>, %arg17: memref<1x3xf32, #tpu.memory_space<vmem>>, %arg18: memref<32x1xf32, #tpu.memory_space<vmem>>, %arg19: memref<3x1xf32, #tpu.memory_space<vmem>>, %arg20: memref<3x1xf32, #tpu.memory_space<vmem>>, %arg21: memref<1x1xf32, #tpu.memory_space<vmem>>, %arg22: memref<32x1xf32, #tpu.memory_space<vmem>>, %arg23: memref<1x1xf32, #tpu.memory_space<vmem>>, %arg24: memref<1x1x16x3xf32, #tpu.memory_space<vmem>>, %arg25: memref<1x1x16x1xf32, #tpu.memory_space<vmem>>, %arg26: memref<1x1x16x1xf32, #tpu.memory_space<vmem>>, %arg27: memref<1x1x24x3xf32, #tpu.memory_space<vmem>>, %arg28: memref<1x1x24x1xf32, #tpu.memory_space<vmem>>, %arg29: memref<1x1x24x1xf32, #tpu.memory_space<vmem>>) attributes {dimension_semantics = [#tpu.dimension_semantics<parallel>, #tpu.dimension_semantics<parallel>], iteration_bounds = array<i64: 2, 2>, scalar_prefetch = 0 : i64, scratch_operands = 0 : i64, tpu.core_type = #tpu.core_type<tc>, window_params = [{transform_indices = @transform_0, window_bounds = array<i64: 1, 1, 16, 32>}, {transform_indices = @transform_1, window_bounds = array<i64: 1, 1, 24, 32>}, {transform_indices = @transform_2, window_bounds = array<i64: 1, 16, 3>}, {transform_indices = @transform_3, window_bounds = array<i64: 1, 24, 3>}, {pipeline_mode = #tpu.pipeline_mode<synchronous>, transform_indices = @transform_4, window_bounds = array<i64: 32, 32>}, {pipeline_mode = #tpu.pipeline_mode<synchronous>, transform_indices = @transform_5, window_bounds = array<i64: 1, 32>}, {pipeline_mode = #tpu.pipeline_mode<synchronous>, transform_indices = @transform_6, window_bounds = array<i64: 32, 32>}, {pipeline_mode = #tpu.pipeline_mode<synchronous>, transform_indices = @transform_7, window_bounds = array<i64: 1, 32>}, {pipeline_mode = #tpu.pipeline_mode<synchronous>, transform_indices = @transform_8, window_bounds = array<i64: 32, 38>}, {pipeline_mode = #tpu.pipeline_mode<synchronous>, transform_indices = @transform_9, window_bounds = array<i64: 3, 38>}, {pipeline_mode = #tpu.pipeline_mode<synchronous>, transform_indices = @transform_10, window_bounds = array<i64: 3, 38>}, {pipeline_mode = #tpu.pipeline_mode<synchronous>, transform_indices = @transform_11, window_bounds = array<i64: 1, 38>}, {pipeline_mode = #tpu.pipeline_mode<synchronous>, transform_indices = @transform_12, window_bounds = array<i64: 38, 38>}, {pipeline_mode = #tpu.pipeline_mode<synchronous>, transform_indices = @transform_13, window_bounds = array<i64: 1, 38>}, {pipeline_mode = #tpu.pipeline_mode<synchronous>, transform_indices = @transform_14, window_bounds = array<i64: 38, 3>}, {pipeline_mode = #tpu.pipeline_mode<synchronous>, transform_indices = @transform_15, window_bounds = array<i64: 1, 3>}, {pipeline_mode = #tpu.pipeline_mode<synchronous>, transform_indices = @transform_16, window_bounds = array<i64: 32, 1>}, {pipeline_mode = #tpu.pipeline_mode<synchronous>, transform_indices = @transform_17, window_bounds = array<i64: 3, 1>}, {pipeline_mode = #tpu.pipeline_mode<synchronous>, transform_indices = @transform_18, window_bounds = array<i64: 3, 1>}, {pipeline_mode = #tpu.pipeline_mode<synchronous>, transform_indices = @transform_19, window_bounds = array<i64: 1, 1>}, {pipeline_mode = #tpu.pipeline_mode<synchronous>, transform_indices = @transform_20, window_bounds = array<i64: 32, 1>}, {pipeline_mode = #tpu.pipeline_mode<synchronous>, transform_indices = @transform_21, window_bounds = array<i64: 1, 1>}, {transform_indices = @transform_22, window_bounds = array<i64: 1, 1, 16, 3>}, {transform_indices = @transform_23, window_bounds = array<i64: 1, 1, 16, 1>}, {transform_indices = @transform_24, window_bounds = array<i64: 1, 1, 16, 1>}, {transform_indices = @transform_25, window_bounds = array<i64: 1, 1, 24, 3>}, {transform_indices = @transform_26, window_bounds = array<i64: 1, 1, 24, 1>}, {transform_indices = @transform_27, window_bounds = array<i64: 1, 1, 24, 1>}]} {
    %c0 = arith.constant 0 : index
    %c0_0 = arith.constant 0 : index
    %c0_1 = arith.constant 0 : index
    %c0_2 = arith.constant 0 : index
    %0 = vector.load %arg2[%c0, %c0_0, %c0_1, %c0_2] : memref<1x1x16x32xf32, #tpu.memory_space<vmem>>, vector<1x1x16x32xf32>
    %1 = vector.shape_cast %0 : vector<1x1x16x32xf32> to vector<16x32xf32>
    %c0_3 = arith.constant 0 : index
    %c0_4 = arith.constant 0 : index
    %c0_5 = arith.constant 0 : index
    %c0_6 = arith.constant 0 : index
    %2 = vector.load %arg3[%c0_3, %c0_4, %c0_5, %c0_6] : memref<1x1x24x32xf32, #tpu.memory_space<vmem>>, vector<1x1x24x32xf32>
    %3 = vector.shape_cast %2 : vector<1x1x24x32xf32> to vector<24x32xf32>
    %c0_7 = arith.constant 0 : index
    %c0_8 = arith.constant 0 : index
    %c0_9 = arith.constant 0 : index
    %4 = vector.load %arg4[%c0_7, %c0_8, %c0_9] : memref<1x16x3xf32, #tpu.memory_space<vmem>>, vector<1x16x3xf32>
    %5 = vector.shape_cast %4 : vector<1x16x3xf32> to vector<16x3xf32>
    %c0_10 = arith.constant 0 : index
    %c0_11 = arith.constant 0 : index
    %c0_12 = arith.constant 0 : index
    %6 = vector.load %arg5[%c0_10, %c0_11, %c0_12] : memref<1x24x3xf32, #tpu.memory_space<vmem>>, vector<1x24x3xf32>
    %7 = vector.shape_cast %6 : vector<1x24x3xf32> to vector<24x3xf32>
    %c0_13 = arith.constant 0 : index
    %c0_14 = arith.constant 0 : index
    %8 = vector.load %arg6[%c0_13, %c0_14] : memref<32x32xf32, #tpu.memory_space<vmem>>, vector<32x32xf32>
    %c0_15 = arith.constant 0 : index
    %c0_16 = arith.constant 0 : index
    %9 = vector.load %arg7[%c0_15, %c0_16] : memref<1x32xf32, #tpu.memory_space<vmem>>, vector<1x32xf32>
    %c0_17 = arith.constant 0 : index
    %c0_18 = arith.constant 0 : index
    %10 = vector.load %arg8[%c0_17, %c0_18] : memref<32x32xf32, #tpu.memory_space<vmem>>, vector<32x32xf32>
    %c0_19 = arith.constant 0 : index
    %c0_20 = arith.constant 0 : index
    %11 = vector.load %arg9[%c0_19, %c0_20] : memref<1x32xf32, #tpu.memory_space<vmem>>, vector<1x32xf32>
    %cst = arith.constant dense<0.000000e+00> : vector<16x32xf32>
    %12 = tpu.matmul %1, %8, %cst {dimension_numbers = #tpu.dot_dimension_numbers<[1], [0], [0], [1], [0, 0, 1, 1], [], []>} : vector<16x32xf32>, vector<32x32xf32>, vector<16x32xf32> -> vector<16x32xf32>
    %13 = vector.broadcast %9 : vector<1x32xf32> to vector<16x32xf32>
    %14 = arith.addf %12, %13 : vector<16x32xf32>
    %cst_21 = arith.constant 0.176776692 : f32
    %15 = vector.broadcast %cst_21 : f32 to vector<16x32xf32>
    %16 = arith.mulf %14, %15 : vector<16x32xf32>
    %cst_22 = arith.constant dense<0.000000e+00> : vector<24x32xf32>
    %17 = tpu.matmul %3, %8, %cst_22 {dimension_numbers = #tpu.dot_dimension_numbers<[1], [0], [0], [1], [0, 0, 1, 1], [], []>} : vector<24x32xf32>, vector<32x32xf32>, vector<24x32xf32> -> vector<24x32xf32>
    %18 = vector.broadcast %9 : vector<1x32xf32> to vector<24x32xf32>
    %19 = arith.addf %17, %18 : vector<24x32xf32>
    %cst_23 = arith.constant 0.176776692 : f32
    %20 = vector.broadcast %cst_23 : f32 to vector<24x32xf32>
    %21 = arith.mulf %19, %20 : vector<24x32xf32>
    %cst_24 = arith.constant dense<0.000000e+00> : vector<16x32xf32>
    %22 = tpu.matmul %1, %10, %cst_24 {dimension_numbers = #tpu.dot_dimension_numbers<[1], [0], [0], [1], [0, 0, 1, 1], [], []>} : vector<16x32xf32>, vector<32x32xf32>, vector<16x32xf32> -> vector<16x32xf32>
    %23 = vector.broadcast %11 : vector<1x32xf32> to vector<16x32xf32>
    %24 = arith.addf %22, %23 : vector<16x32xf32>
    %cst_25 = arith.constant dense<0.000000e+00> : vector<24x32xf32>
    %25 = tpu.matmul %3, %10, %cst_25 {dimension_numbers = #tpu.dot_dimension_numbers<[1], [0], [0], [1], [0, 0, 1, 1], [], []>} : vector<24x32xf32>, vector<32x32xf32>, vector<24x32xf32> -> vector<24x32xf32>
    %26 = vector.broadcast %11 : vector<1x32xf32> to vector<24x32xf32>
    %27 = arith.addf %25, %26 : vector<24x32xf32>
    %cst_26 = arith.constant dense<0.000000e+00> : vector<16x24xf32>
    %28 = tpu.matmul %16, %27, %cst_26 {dimension_numbers = #tpu.dot_dimension_numbers<[1], [1], [0], [0], [0, 0, 1, 0], [], []>} : vector<16x32xf32>, vector<24x32xf32>, vector<16x24xf32> -> vector<16x24xf32>
    %cst_27 = arith.constant dense<0xFF800000> : vector<16xf32>
    %29 = vector.multi_reduction <maximumf>, %28, %cst_27 [1] : vector<16x24xf32> to vector<16xf32>
    %30 = vector.shape_cast %29 : vector<16xf32> to vector<16x1xf32>
    %31 = vector.broadcast %30 : vector<16x1xf32> to vector<16x24xf32>
    %32 = arith.subf %28, %31 : vector<16x24xf32>
    %33 = math.exp %32 : vector<16x24xf32>
    %cst_28 = arith.constant dense<0.000000e+00> : vector<16xf32>
    %34 = vector.multi_reduction <add>, %33, %cst_28 [1] : vector<16x24xf32> to vector<16xf32>
    %35 = vector.shape_cast %34 : vector<16xf32> to vector<16x1xf32>
    %36 = vector.broadcast %35 : vector<16x1xf32> to vector<16x24xf32>
    %37 = arith.divf %33, %36 : vector<16x24xf32>
    %cst_29 = arith.constant dense<0.000000e+00> : vector<16x3xf32>
    %38 = tpu.matmul %37, %7, %cst_29 {dimension_numbers = #tpu.dot_dimension_numbers<[1], [0], [0], [1], [0, 0, 1, 1], [], []>} : vector<16x24xf32>, vector<24x3xf32>, vector<16x3xf32> -> vector<16x3xf32>
    %cst_30 = arith.constant dense<0.000000e+00> : vector<24x16xf32>
    %39 = tpu.matmul %21, %24, %cst_30 {dimension_numbers = #tpu.dot_dimension_numbers<[1], [1], [0], [0], [0, 0, 1, 0], [], []>} : vector<24x32xf32>, vector<16x32xf32>, vector<24x16xf32> -> vector<24x16xf32>
    %cst_31 = arith.constant dense<0xFF800000> : vector<24xf32>
    %40 = vector.multi_reduction <maximumf>, %39, %cst_31 [1] : vector<24x16xf32> to vector<24xf32>
    %41 = vector.shape_cast %40 : vector<24xf32> to vector<24x1xf32>
    %42 = vector.broadcast %41 : vector<24x1xf32> to vector<24x16xf32>
    %43 = arith.subf %39, %42 : vector<24x16xf32>
    %44 = math.exp %43 : vector<24x16xf32>
    %cst_32 = arith.constant dense<0.000000e+00> : vector<24xf32>
    %45 = vector.multi_reduction <add>, %44, %cst_32 [1] : vector<24x16xf32> to vector<24xf32>
    %46 = vector.shape_cast %45 : vector<24xf32> to vector<24x1xf32>
    %47 = vector.broadcast %46 : vector<24x1xf32> to vector<24x16xf32>
    %48 = arith.divf %44, %47 : vector<24x16xf32>
    %cst_33 = arith.constant dense<0.000000e+00> : vector<24x3xf32>
    %49 = tpu.matmul %48, %5, %cst_33 {dimension_numbers = #tpu.dot_dimension_numbers<[1], [0], [0], [1], [0, 0, 1, 1], [], []>} : vector<24x16xf32>, vector<16x3xf32>, vector<24x3xf32> -> vector<24x3xf32>
    %c0_34 = arith.constant 0 : index
    %c0_35 = arith.constant 0 : index
    %50 = vector.load %arg10[%c0_34, %c0_35] : memref<32x38xf32, #tpu.memory_space<vmem>>, vector<32x38xf32>
    %cst_36 = arith.constant dense<0.000000e+00> : vector<16x38xf32>
    %51 = tpu.matmul %1, %50, %cst_36 {dimension_numbers = #tpu.dot_dimension_numbers<[1], [0], [0], [1], [0, 0, 1, 1], [], []>} : vector<16x32xf32>, vector<32x38xf32>, vector<16x38xf32> -> vector<16x38xf32>
    %c0_37 = arith.constant 0 : index
    %c0_38 = arith.constant 0 : index
    %52 = vector.load %arg11[%c0_37, %c0_38] : memref<3x38xf32, #tpu.memory_space<vmem>>, vector<3x38xf32>
    %53 = vector.extract_strided_slice %5 {offsets = [0, 0], sizes = [16, 1], strides = [1, 1]} : vector<16x3xf32> to vector<16x1xf32>
    %54 = vector.extract_strided_slice %52 {offsets = [0, 0], sizes = [1, 38], strides = [1, 1]} : vector<3x38xf32> to vector<1x38xf32>
    %55 = vector.broadcast %53 : vector<16x1xf32> to vector<16x38xf32>
    %56 = vector.broadcast %54 : vector<1x38xf32> to vector<16x38xf32>
    %57 = arith.mulf %55, %56 : vector<16x38xf32>
    %58 = vector.extract_strided_slice %5 {offsets = [0, 1], sizes = [16, 1], strides = [1, 1]} : vector<16x3xf32> to vector<16x1xf32>
    %59 = vector.extract_strided_slice %52 {offsets = [1, 0], sizes = [1, 38], strides = [1, 1]} : vector<3x38xf32> to vector<1x38xf32>
    %60 = vector.broadcast %58 : vector<16x1xf32> to vector<16x38xf32>
    %61 = vector.broadcast %59 : vector<1x38xf32> to vector<16x38xf32>
    %62 = arith.mulf %60, %61 : vector<16x38xf32>
    %63 = arith.addf %57, %62 : vector<16x38xf32>
    %64 = vector.extract_strided_slice %5 {offsets = [0, 2], sizes = [16, 1], strides = [1, 1]} : vector<16x3xf32> to vector<16x1xf32>
    %65 = vector.extract_strided_slice %52 {offsets = [2, 0], sizes = [1, 38], strides = [1, 1]} : vector<3x38xf32> to vector<1x38xf32>
    %66 = vector.broadcast %64 : vector<16x1xf32> to vector<16x38xf32>
    %67 = vector.broadcast %65 : vector<1x38xf32> to vector<16x38xf32>
    %68 = arith.mulf %66, %67 : vector<16x38xf32>
    %69 = arith.addf %63, %68 : vector<16x38xf32>
    %70 = arith.addf %51, %69 : vector<16x38xf32>
    %c0_39 = arith.constant 0 : index
    %c0_40 = arith.constant 0 : index
    %71 = vector.load %arg12[%c0_39, %c0_40] : memref<3x38xf32, #tpu.memory_space<vmem>>, vector<3x38xf32>
    %72 = vector.extract_strided_slice %38 {offsets = [0, 0], sizes = [16, 1], strides = [1, 1]} : vector<16x3xf32> to vector<16x1xf32>
    %73 = vector.extract_strided_slice %71 {offsets = [0, 0], sizes = [1, 38], strides = [1, 1]} : vector<3x38xf32> to vector<1x38xf32>
    %74 = vector.broadcast %72 : vector<16x1xf32> to vector<16x38xf32>
    %75 = vector.broadcast %73 : vector<1x38xf32> to vector<16x38xf32>
    %76 = arith.mulf %74, %75 : vector<16x38xf32>
    %77 = vector.extract_strided_slice %38 {offsets = [0, 1], sizes = [16, 1], strides = [1, 1]} : vector<16x3xf32> to vector<16x1xf32>
    %78 = vector.extract_strided_slice %71 {offsets = [1, 0], sizes = [1, 38], strides = [1, 1]} : vector<3x38xf32> to vector<1x38xf32>
    %79 = vector.broadcast %77 : vector<16x1xf32> to vector<16x38xf32>
    %80 = vector.broadcast %78 : vector<1x38xf32> to vector<16x38xf32>
    %81 = arith.mulf %79, %80 : vector<16x38xf32>
    %82 = arith.addf %76, %81 : vector<16x38xf32>
    %83 = vector.extract_strided_slice %38 {offsets = [0, 2], sizes = [16, 1], strides = [1, 1]} : vector<16x3xf32> to vector<16x1xf32>
    %84 = vector.extract_strided_slice %71 {offsets = [2, 0], sizes = [1, 38], strides = [1, 1]} : vector<3x38xf32> to vector<1x38xf32>
    %85 = vector.broadcast %83 : vector<16x1xf32> to vector<16x38xf32>
    %86 = vector.broadcast %84 : vector<1x38xf32> to vector<16x38xf32>
    %87 = arith.mulf %85, %86 : vector<16x38xf32>
    %88 = arith.addf %82, %87 : vector<16x38xf32>
    %89 = arith.addf %70, %88 : vector<16x38xf32>
    %c0_41 = arith.constant 0 : index
    %c0_42 = arith.constant 0 : index
    %90 = vector.load %arg13[%c0_41, %c0_42] : memref<1x38xf32, #tpu.memory_space<vmem>>, vector<1x38xf32>
    %91 = vector.broadcast %90 : vector<1x38xf32> to vector<16x38xf32>
    %92 = arith.addf %89, %91 : vector<16x38xf32>
    %cst_43 = arith.constant 0.000000e+00 : f32
    %93 = vector.broadcast %cst_43 : f32 to vector<16x38xf32>
    %94 = arith.maximumf %92, %93 : vector<16x38xf32>
    %c0_44 = arith.constant 0 : index
    %c0_45 = arith.constant 0 : index
    %95 = vector.load %arg14[%c0_44, %c0_45] : memref<38x38xf32, #tpu.memory_space<vmem>>, vector<38x38xf32>
    %cst_46 = arith.constant dense<0.000000e+00> : vector<16x38xf32>
    %96 = tpu.matmul %94, %95, %cst_46 {dimension_numbers = #tpu.dot_dimension_numbers<[1], [0], [0], [1], [0, 0, 1, 1], [], []>} : vector<16x38xf32>, vector<38x38xf32>, vector<16x38xf32> -> vector<16x38xf32>
    %c0_47 = arith.constant 0 : index
    %c0_48 = arith.constant 0 : index
    %97 = vector.load %arg15[%c0_47, %c0_48] : memref<1x38xf32, #tpu.memory_space<vmem>>, vector<1x38xf32>
    %98 = vector.broadcast %97 : vector<1x38xf32> to vector<16x38xf32>
    %99 = arith.addf %96, %98 : vector<16x38xf32>
    %cst_49 = arith.constant 0.000000e+00 : f32
    %100 = vector.broadcast %cst_49 : f32 to vector<16x38xf32>
    %101 = arith.maximumf %99, %100 : vector<16x38xf32>
    %c0_50 = arith.constant 0 : index
    %c0_51 = arith.constant 0 : index
    %102 = vector.load %arg16[%c0_50, %c0_51] : memref<38x3xf32, #tpu.memory_space<vmem>>, vector<38x3xf32>
    %cst_52 = arith.constant dense<0.000000e+00> : vector<16x3xf32>
    %103 = tpu.matmul %101, %102, %cst_52 {dimension_numbers = #tpu.dot_dimension_numbers<[1], [0], [0], [1], [0, 0, 1, 1], [], []>} : vector<16x38xf32>, vector<38x3xf32>, vector<16x3xf32> -> vector<16x3xf32>
    %c0_53 = arith.constant 0 : index
    %c0_54 = arith.constant 0 : index
    %104 = vector.load %arg17[%c0_53, %c0_54] : memref<1x3xf32, #tpu.memory_space<vmem>>, vector<1x3xf32>
    %105 = vector.broadcast %104 : vector<1x3xf32> to vector<16x3xf32>
    %106 = arith.addf %103, %105 : vector<16x3xf32>
    %107 = arith.addf %38, %106 : vector<16x3xf32>
    %c0_55 = arith.constant 0 : index
    %c0_56 = arith.constant 0 : index
    %108 = vector.load %arg18[%c0_55, %c0_56] : memref<32x1xf32, #tpu.memory_space<vmem>>, vector<32x1xf32>
    %cst_57 = arith.constant dense<0.000000e+00> : vector<16x1xf32>
    %109 = tpu.matmul %1, %108, %cst_57 {dimension_numbers = #tpu.dot_dimension_numbers<[1], [0], [0], [1], [0, 0, 1, 1], [], []>} : vector<16x32xf32>, vector<32x1xf32>, vector<16x1xf32> -> vector<16x1xf32>
    %c0_58 = arith.constant 0 : index
    %c0_59 = arith.constant 0 : index
    %110 = vector.load %arg19[%c0_58, %c0_59] : memref<3x1xf32, #tpu.memory_space<vmem>>, vector<3x1xf32>
    %111 = vector.extract_strided_slice %5 {offsets = [0, 0], sizes = [16, 1], strides = [1, 1]} : vector<16x3xf32> to vector<16x1xf32>
    %112 = vector.extract_strided_slice %110 {offsets = [0, 0], sizes = [1, 1], strides = [1, 1]} : vector<3x1xf32> to vector<1x1xf32>
    %113 = vector.broadcast %112 : vector<1x1xf32> to vector<16x1xf32>
    %114 = arith.mulf %111, %113 : vector<16x1xf32>
    %115 = vector.extract_strided_slice %5 {offsets = [0, 1], sizes = [16, 1], strides = [1, 1]} : vector<16x3xf32> to vector<16x1xf32>
    %116 = vector.extract_strided_slice %110 {offsets = [1, 0], sizes = [1, 1], strides = [1, 1]} : vector<3x1xf32> to vector<1x1xf32>
    %117 = vector.broadcast %116 : vector<1x1xf32> to vector<16x1xf32>
    %118 = arith.mulf %115, %117 : vector<16x1xf32>
    %119 = arith.addf %114, %118 : vector<16x1xf32>
    %120 = vector.extract_strided_slice %5 {offsets = [0, 2], sizes = [16, 1], strides = [1, 1]} : vector<16x3xf32> to vector<16x1xf32>
    %121 = vector.extract_strided_slice %110 {offsets = [2, 0], sizes = [1, 1], strides = [1, 1]} : vector<3x1xf32> to vector<1x1xf32>
    %122 = vector.broadcast %121 : vector<1x1xf32> to vector<16x1xf32>
    %123 = arith.mulf %120, %122 : vector<16x1xf32>
    %124 = arith.addf %119, %123 : vector<16x1xf32>
    %125 = arith.addf %109, %124 : vector<16x1xf32>
    %c0_60 = arith.constant 0 : index
    %c0_61 = arith.constant 0 : index
    %126 = vector.load %arg20[%c0_60, %c0_61] : memref<3x1xf32, #tpu.memory_space<vmem>>, vector<3x1xf32>
    %127 = vector.extract_strided_slice %107 {offsets = [0, 0], sizes = [16, 1], strides = [1, 1]} : vector<16x3xf32> to vector<16x1xf32>
    %128 = vector.extract_strided_slice %126 {offsets = [0, 0], sizes = [1, 1], strides = [1, 1]} : vector<3x1xf32> to vector<1x1xf32>
    %129 = vector.broadcast %128 : vector<1x1xf32> to vector<16x1xf32>
    %130 = arith.mulf %127, %129 : vector<16x1xf32>
    %131 = vector.extract_strided_slice %107 {offsets = [0, 1], sizes = [16, 1], strides = [1, 1]} : vector<16x3xf32> to vector<16x1xf32>
    %132 = vector.extract_strided_slice %126 {offsets = [1, 0], sizes = [1, 1], strides = [1, 1]} : vector<3x1xf32> to vector<1x1xf32>
    %133 = vector.broadcast %132 : vector<1x1xf32> to vector<16x1xf32>
    %134 = arith.mulf %131, %133 : vector<16x1xf32>
    %135 = arith.addf %130, %134 : vector<16x1xf32>
    %136 = vector.extract_strided_slice %107 {offsets = [0, 2], sizes = [16, 1], strides = [1, 1]} : vector<16x3xf32> to vector<16x1xf32>
    %137 = vector.extract_strided_slice %126 {offsets = [2, 0], sizes = [1, 1], strides = [1, 1]} : vector<3x1xf32> to vector<1x1xf32>
    %138 = vector.broadcast %137 : vector<1x1xf32> to vector<16x1xf32>
    %139 = arith.mulf %136, %138 : vector<16x1xf32>
    %140 = arith.addf %135, %139 : vector<16x1xf32>
    %141 = arith.addf %125, %140 : vector<16x1xf32>
    %c0_62 = arith.constant 0 : index
    %c0_63 = arith.constant 0 : index
    %142 = vector.load %arg21[%c0_62, %c0_63] : memref<1x1xf32, #tpu.memory_space<vmem>>, vector<1x1xf32>
    %143 = vector.broadcast %142 : vector<1x1xf32> to vector<16x1xf32>
    %144 = arith.addf %141, %143 : vector<16x1xf32>
    %c0_64 = arith.constant 0 : index
    %c0_65 = arith.constant 0 : index
    %145 = vector.load %arg22[%c0_64, %c0_65] : memref<32x1xf32, #tpu.memory_space<vmem>>, vector<32x1xf32>
    %cst_66 = arith.constant dense<0.000000e+00> : vector<16x1xf32>
    %146 = tpu.matmul %1, %145, %cst_66 {dimension_numbers = #tpu.dot_dimension_numbers<[1], [0], [0], [1], [0, 0, 1, 1], [], []>} : vector<16x32xf32>, vector<32x1xf32>, vector<16x1xf32> -> vector<16x1xf32>
    %c0_67 = arith.constant 0 : index
    %c0_68 = arith.constant 0 : index
    %147 = vector.load %arg23[%c0_67, %c0_68] : memref<1x1xf32, #tpu.memory_space<vmem>>, vector<1x1xf32>
    %148 = vector.broadcast %147 : vector<1x1xf32> to vector<16x1xf32>
    %149 = arith.addf %146, %148 : vector<16x1xf32>
    %c0_69 = arith.constant 0 : index
    %c0_70 = arith.constant 0 : index
    %c0_71 = arith.constant 0 : index
    %c0_72 = arith.constant 0 : index
    %150 = vector.load %arg24[%c0_69, %c0_70, %c0_71, %c0_72] : memref<1x1x16x3xf32, #tpu.memory_space<vmem>>, vector<1x1x16x3xf32>
    %151 = vector.shape_cast %150 : vector<1x1x16x3xf32> to vector<16x3xf32>
    %152 = vector.shape_cast %107 : vector<16x3xf32> to vector<1x1x16x3xf32>
    tpu.vector_store %arg24[%c0_69, %c0_70, %c0_71, %c0_72], %152 {strides = array<i32>} : memref<1x1x16x3xf32, #tpu.memory_space<vmem>>, vector<1x1x16x3xf32>,
    %c0_73 = arith.constant 0 : index
    %c0_74 = arith.constant 0 : index
    %c0_75 = arith.constant 0 : index
    %c0_76 = arith.constant 0 : index
    %153 = vector.load %arg25[%c0_73, %c0_74, %c0_75, %c0_76] : memref<1x1x16x1xf32, #tpu.memory_space<vmem>>, vector<1x1x16x1xf32>
    %154 = vector.shape_cast %153 : vector<1x1x16x1xf32> to vector<16x1xf32>
    %155 = vector.shape_cast %144 : vector<16x1xf32> to vector<1x1x16x1xf32>
    tpu.vector_store %arg25[%c0_73, %c0_74, %c0_75, %c0_76], %155 {strides = array<i32>} : memref<1x1x16x1xf32, #tpu.memory_space<vmem>>, vector<1x1x16x1xf32>,
    %c0_77 = arith.constant 0 : index
    %c0_78 = arith.constant 0 : index
    %c0_79 = arith.constant 0 : index
    %c0_80 = arith.constant 0 : index
    %156 = vector.load %arg26[%c0_77, %c0_78, %c0_79, %c0_80] : memref<1x1x16x1xf32, #tpu.memory_space<vmem>>, vector<1x1x16x1xf32>
    %157 = vector.shape_cast %156 : vector<1x1x16x1xf32> to vector<16x1xf32>
    %158 = vector.shape_cast %149 : vector<16x1xf32> to vector<1x1x16x1xf32>
    tpu.vector_store %arg26[%c0_77, %c0_78, %c0_79, %c0_80], %158 {strides = array<i32>} : memref<1x1x16x1xf32, #tpu.memory_space<vmem>>, vector<1x1x16x1xf32>,
    %c0_81 = arith.constant 0 : index
    %c0_82 = arith.constant 0 : index
    %159 = vector.load %arg10[%c0_81, %c0_82] : memref<32x38xf32, #tpu.memory_space<vmem>>, vector<32x38xf32>
    %cst_83 = arith.constant dense<0.000000e+00> : vector<24x38xf32>
    %160 = tpu.matmul %3, %159, %cst_83 {dimension_numbers = #tpu.dot_dimension_numbers<[1], [0], [0], [1], [0, 0, 1, 1], [], []>} : vector<24x32xf32>, vector<32x38xf32>, vector<24x38xf32> -> vector<24x38xf32>
    %c0_84 = arith.constant 0 : index
    %c0_85 = arith.constant 0 : index
    %161 = vector.load %arg11[%c0_84, %c0_85] : memref<3x38xf32, #tpu.memory_space<vmem>>, vector<3x38xf32>
    %162 = vector.extract_strided_slice %7 {offsets = [0, 0], sizes = [24, 1], strides = [1, 1]} : vector<24x3xf32> to vector<24x1xf32>
    %163 = vector.extract_strided_slice %161 {offsets = [0, 0], sizes = [1, 38], strides = [1, 1]} : vector<3x38xf32> to vector<1x38xf32>
    %164 = vector.broadcast %162 : vector<24x1xf32> to vector<24x38xf32>
    %165 = vector.broadcast %163 : vector<1x38xf32> to vector<24x38xf32>
    %166 = arith.mulf %164, %165 : vector<24x38xf32>
    %167 = vector.extract_strided_slice %7 {offsets = [0, 1], sizes = [24, 1], strides = [1, 1]} : vector<24x3xf32> to vector<24x1xf32>
    %168 = vector.extract_strided_slice %161 {offsets = [1, 0], sizes = [1, 38], strides = [1, 1]} : vector<3x38xf32> to vector<1x38xf32>
    %169 = vector.broadcast %167 : vector<24x1xf32> to vector<24x38xf32>
    %170 = vector.broadcast %168 : vector<1x38xf32> to vector<24x38xf32>
    %171 = arith.mulf %169, %170 : vector<24x38xf32>
    %172 = arith.addf %166, %171 : vector<24x38xf32>
    %173 = vector.extract_strided_slice %7 {offsets = [0, 2], sizes = [24, 1], strides = [1, 1]} : vector<24x3xf32> to vector<24x1xf32>
    %174 = vector.extract_strided_slice %161 {offsets = [2, 0], sizes = [1, 38], strides = [1, 1]} : vector<3x38xf32> to vector<1x38xf32>
    %175 = vector.broadcast %173 : vector<24x1xf32> to vector<24x38xf32>
    %176 = vector.broadcast %174 : vector<1x38xf32> to vector<24x38xf32>
    %177 = arith.mulf %175, %176 : vector<24x38xf32>
    %178 = arith.addf %172, %177 : vector<24x38xf32>
    %179 = arith.addf %160, %178 : vector<24x38xf32>
    %c0_86 = arith.constant 0 : index
    %c0_87 = arith.constant 0 : index
    %180 = vector.load %arg12[%c0_86, %c0_87] : memref<3x38xf32, #tpu.memory_space<vmem>>, vector<3x38xf32>
    %181 = vector.extract_strided_slice %49 {offsets = [0, 0], sizes = [24, 1], strides = [1, 1]} : vector<24x3xf32> to vector<24x1xf32>
    %182 = vector.extract_strided_slice %180 {offsets = [0, 0], sizes = [1, 38], strides = [1, 1]} : vector<3x38xf32> to vector<1x38xf32>
    %183 = vector.broadcast %181 : vector<24x1xf32> to vector<24x38xf32>
    %184 = vector.broadcast %182 : vector<1x38xf32> to vector<24x38xf32>
    %185 = arith.mulf %183, %184 : vector<24x38xf32>
    %186 = vector.extract_strided_slice %49 {offsets = [0, 1], sizes = [24, 1], strides = [1, 1]} : vector<24x3xf32> to vector<24x1xf32>
    %187 = vector.extract_strided_slice %180 {offsets = [1, 0], sizes = [1, 38], strides = [1, 1]} : vector<3x38xf32> to vector<1x38xf32>
    %188 = vector.broadcast %186 : vector<24x1xf32> to vector<24x38xf32>
    %189 = vector.broadcast %187 : vector<1x38xf32> to vector<24x38xf32>
    %190 = arith.mulf %188, %189 : vector<24x38xf32>
    %191 = arith.addf %185, %190 : vector<24x38xf32>
    %192 = vector.extract_strided_slice %49 {offsets = [0, 2], sizes = [24, 1], strides = [1, 1]} : vector<24x3xf32> to vector<24x1xf32>
    %193 = vector.extract_strided_slice %180 {offsets = [2, 0], sizes = [1, 38], strides = [1, 1]} : vector<3x38xf32> to vector<1x38xf32>
    %194 = vector.broadcast %192 : vector<24x1xf32> to vector<24x38xf32>
    %195 = vector.broadcast %193 : vector<1x38xf32> to vector<24x38xf32>
    %196 = arith.mulf %194, %195 : vector<24x38xf32>
    %197 = arith.addf %191, %196 : vector<24x38xf32>
    %198 = arith.addf %179, %197 : vector<24x38xf32>
    %c0_88 = arith.constant 0 : index
    %c0_89 = arith.constant 0 : index
    %199 = vector.load %arg13[%c0_88, %c0_89] : memref<1x38xf32, #tpu.memory_space<vmem>>, vector<1x38xf32>
    %200 = vector.broadcast %199 : vector<1x38xf32> to vector<24x38xf32>
    %201 = arith.addf %198, %200 : vector<24x38xf32>
    %cst_90 = arith.constant 0.000000e+00 : f32
    %202 = vector.broadcast %cst_90 : f32 to vector<24x38xf32>
    %203 = arith.maximumf %201, %202 : vector<24x38xf32>
    %c0_91 = arith.constant 0 : index
    %c0_92 = arith.constant 0 : index
    %204 = vector.load %arg14[%c0_91, %c0_92] : memref<38x38xf32, #tpu.memory_space<vmem>>, vector<38x38xf32>
    %cst_93 = arith.constant dense<0.000000e+00> : vector<24x38xf32>
    %205 = tpu.matmul %203, %204, %cst_93 {dimension_numbers = #tpu.dot_dimension_numbers<[1], [0], [0], [1], [0, 0, 1, 1], [], []>} : vector<24x38xf32>, vector<38x38xf32>, vector<24x38xf32> -> vector<24x38xf32>
    %c0_94 = arith.constant 0 : index
    %c0_95 = arith.constant 0 : index
    %206 = vector.load %arg15[%c0_94, %c0_95] : memref<1x38xf32, #tpu.memory_space<vmem>>, vector<1x38xf32>
    %207 = vector.broadcast %206 : vector<1x38xf32> to vector<24x38xf32>
    %208 = arith.addf %205, %207 : vector<24x38xf32>
    %cst_96 = arith.constant 0.000000e+00 : f32
    %209 = vector.broadcast %cst_96 : f32 to vector<24x38xf32>
    %210 = arith.maximumf %208, %209 : vector<24x38xf32>
    %c0_97 = arith.constant 0 : index
    %c0_98 = arith.constant 0 : index
    %211 = vector.load %arg16[%c0_97, %c0_98] : memref<38x3xf32, #tpu.memory_space<vmem>>, vector<38x3xf32>
    %cst_99 = arith.constant dense<0.000000e+00> : vector<24x3xf32>
    %212 = tpu.matmul %210, %211, %cst_99 {dimension_numbers = #tpu.dot_dimension_numbers<[1], [0], [0], [1], [0, 0, 1, 1], [], []>} : vector<24x38xf32>, vector<38x3xf32>, vector<24x3xf32> -> vector<24x3xf32>
    %c0_100 = arith.constant 0 : index
    %c0_101 = arith.constant 0 : index
    %213 = vector.load %arg17[%c0_100, %c0_101] : memref<1x3xf32, #tpu.memory_space<vmem>>, vector<1x3xf32>
    %214 = vector.broadcast %213 : vector<1x3xf32> to vector<24x3xf32>
    %215 = arith.addf %212, %214 : vector<24x3xf32>
    %216 = arith.addf %49, %215 : vector<24x3xf32>
    %c0_102 = arith.constant 0 : index
    %c0_103 = arith.constant 0 : index
    %217 = vector.load %arg18[%c0_102, %c0_103] : memref<32x1xf32, #tpu.memory_space<vmem>>, vector<32x1xf32>
    %cst_104 = arith.constant dense<0.000000e+00> : vector<24x1xf32>
    %218 = tpu.matmul %3, %217, %cst_104 {dimension_numbers = #tpu.dot_dimension_numbers<[1], [0], [0], [1], [0, 0, 1, 1], [], []>} : vector<24x32xf32>, vector<32x1xf32>, vector<24x1xf32> -> vector<24x1xf32>
    %c0_105 = arith.constant 0 : index
    %c0_106 = arith.constant 0 : index
    %219 = vector.load %arg19[%c0_105, %c0_106] : memref<3x1xf32, #tpu.memory_space<vmem>>, vector<3x1xf32>
    %220 = vector.extract_strided_slice %7 {offsets = [0, 0], sizes = [24, 1], strides = [1, 1]} : vector<24x3xf32> to vector<24x1xf32>
    %221 = vector.extract_strided_slice %219 {offsets = [0, 0], sizes = [1, 1], strides = [1, 1]} : vector<3x1xf32> to vector<1x1xf32>
    %222 = vector.broadcast %221 : vector<1x1xf32> to vector<24x1xf32>
    %223 = arith.mulf %220, %222 : vector<24x1xf32>
    %224 = vector.extract_strided_slice %7 {offsets = [0, 1], sizes = [24, 1], strides = [1, 1]} : vector<24x3xf32> to vector<24x1xf32>
    %225 = vector.extract_strided_slice %219 {offsets = [1, 0], sizes = [1, 1], strides = [1, 1]} : vector<3x1xf32> to vector<1x1xf32>
    %226 = vector.broadcast %225 : vector<1x1xf32> to vector<24x1xf32>
    %227 = arith.mulf %224, %226 : vector<24x1xf32>
    %228 = arith.addf %223, %227 : vector<24x1xf32>
    %229 = vector.extract_strided_slice %7 {offsets = [0, 2], sizes = [24, 1], strides = [1, 1]} : vector<24x3xf32> to vector<24x1xf32>
    %230 = vector.extract_strided_slice %219 {offsets = [2, 0], sizes = [1, 1], strides = [1, 1]} : vector<3x1xf32> to vector<1x1xf32>
    %231 = vector.broadcast %230 : vector<1x1xf32> to vector<24x1xf32>
    %232 = arith.mulf %229, %231 : vector<24x1xf32>
    %233 = arith.addf %228, %232 : vector<24x1xf32>
    %234 = arith.addf %218, %233 : vector<24x1xf32>
    %c0_107 = arith.constant 0 : index
    %c0_108 = arith.constant 0 : index
    %235 = vector.load %arg20[%c0_107, %c0_108] : memref<3x1xf32, #tpu.memory_space<vmem>>, vector<3x1xf32>
    %236 = vector.extract_strided_slice %216 {offsets = [0, 0], sizes = [24, 1], strides = [1, 1]} : vector<24x3xf32> to vector<24x1xf32>
    %237 = vector.extract_strided_slice %235 {offsets = [0, 0], sizes = [1, 1], strides = [1, 1]} : vector<3x1xf32> to vector<1x1xf32>
    %238 = vector.broadcast %237 : vector<1x1xf32> to vector<24x1xf32>
    %239 = arith.mulf %236, %238 : vector<24x1xf32>
    %240 = vector.extract_strided_slice %216 {offsets = [0, 1], sizes = [24, 1], strides = [1, 1]} : vector<24x3xf32> to vector<24x1xf32>
    %241 = vector.extract_strided_slice %235 {offsets = [1, 0], sizes = [1, 1], strides = [1, 1]} : vector<3x1xf32> to vector<1x1xf32>
    %242 = vector.broadcast %241 : vector<1x1xf32> to vector<24x1xf32>
    %243 = arith.mulf %240, %242 : vector<24x1xf32>
    %244 = arith.addf %239, %243 : vector<24x1xf32>
    %245 = vector.extract_strided_slice %216 {offsets = [0, 2], sizes = [24, 1], strides = [1, 1]} : vector<24x3xf32> to vector<24x1xf32>
    %246 = vector.extract_strided_slice %235 {offsets = [2, 0], sizes = [1, 1], strides = [1, 1]} : vector<3x1xf32> to vector<1x1xf32>
    %247 = vector.broadcast %246 : vector<1x1xf32> to vector<24x1xf32>
    %248 = arith.mulf %245, %247 : vector<24x1xf32>
    %249 = arith.addf %244, %248 : vector<24x1xf32>
    %250 = arith.addf %234, %249 : vector<24x1xf32>
    %c0_109 = arith.constant 0 : index
    %c0_110 = arith.constant 0 : index
    %251 = vector.load %arg21[%c0_109, %c0_110] : memref<1x1xf32, #tpu.memory_space<vmem>>, vector<1x1xf32>
    %252 = vector.broadcast %251 : vector<1x1xf32> to vector<24x1xf32>
    %253 = arith.addf %250, %252 : vector<24x1xf32>
    %c0_111 = arith.constant 0 : index
    %c0_112 = arith.constant 0 : index
    %254 = vector.load %arg22[%c0_111, %c0_112] : memref<32x1xf32, #tpu.memory_space<vmem>>, vector<32x1xf32>
    %cst_113 = arith.constant dense<0.000000e+00> : vector<24x1xf32>
    %255 = tpu.matmul %3, %254, %cst_113 {dimension_numbers = #tpu.dot_dimension_numbers<[1], [0], [0], [1], [0, 0, 1, 1], [], []>} : vector<24x32xf32>, vector<32x1xf32>, vector<24x1xf32> -> vector<24x1xf32>
    %c0_114 = arith.constant 0 : index
    %c0_115 = arith.constant 0 : index
    %256 = vector.load %arg23[%c0_114, %c0_115] : memref<1x1xf32, #tpu.memory_space<vmem>>, vector<1x1xf32>
    %257 = vector.broadcast %256 : vector<1x1xf32> to vector<24x1xf32>
    %258 = arith.addf %255, %257 : vector<24x1xf32>
    %c0_116 = arith.constant 0 : index
    %c0_117 = arith.constant 0 : index
    %c0_118 = arith.constant 0 : index
    %c0_119 = arith.constant 0 : index
    %259 = vector.load %arg27[%c0_116, %c0_117, %c0_118, %c0_119] : memref<1x1x24x3xf32, #tpu.memory_space<vmem>>, vector<1x1x24x3xf32>
    %260 = vector.shape_cast %259 : vector<1x1x24x3xf32> to vector<24x3xf32>
    %261 = vector.shape_cast %216 : vector<24x3xf32> to vector<1x1x24x3xf32>
    tpu.vector_store %arg27[%c0_116, %c0_117, %c0_118, %c0_119], %261 {strides = array<i32>} : memref<1x1x24x3xf32, #tpu.memory_space<vmem>>, vector<1x1x24x3xf32>,
    %c0_120 = arith.constant 0 : index
    %c0_121 = arith.constant 0 : index
    %c0_122 = arith.constant 0 : index
    %c0_123 = arith.constant 0 : index
    %262 = vector.load %arg28[%c0_120, %c0_121, %c0_122, %c0_123] : memref<1x1x24x1xf32, #tpu.memory_space<vmem>>, vector<1x1x24x1xf32>
    %263 = vector.shape_cast %262 : vector<1x1x24x1xf32> to vector<24x1xf32>
    %264 = vector.shape_cast %253 : vector<24x1xf32> to vector<1x1x24x1xf32>
    tpu.vector_store %arg28[%c0_120, %c0_121, %c0_122, %c0_123], %264 {strides = array<i32>} : memref<1x1x24x1xf32, #tpu.memory_space<vmem>>, vector<1x1x24x1xf32>,
    %c0_124 = arith.constant 0 : index
    %c0_125 = arith.constant 0 : index
    %c0_126 = arith.constant 0 : index
    %c0_127 = arith.constant 0 : index
    %265 = vector.load %arg29[%c0_124, %c0_125, %c0_126, %c0_127] : memref<1x1x24x1xf32, #tpu.memory_space<vmem>>, vector<1x1x24x1xf32>
    %266 = vector.shape_cast %265 : vector<1x1x24x1xf32> to vector<24x1xf32>
    %267 = vector.shape_cast %258 : vector<24x1xf32> to vector<1x1x24x1xf32>
    tpu.vector_store %arg29[%c0_124, %c0_125, %c0_126, %c0_127], %267 {strides = array<i32>} : memref<1x1x24x1xf32, #tpu.memory_space<vmem>>, vector<1x1x24x1xf32>,
    return
  }
  func.func @transform_0(%arg0: i32, %arg1: i32) -> (i32, i32, i32, i32) {
    %c0_i32 = arith.constant 0 : i32
    %c0_i32_0 = arith.constant 0 : i32
    %c0_i32_1 = arith.constant 0 : i32
    return %arg0, %arg1, %c0_i32, %c0_i32_0 : i32, i32, i32, i32
  }
  func.func @transform_1(%arg0: i32, %arg1: i32) -> (i32, i32, i32, i32) {
    %c0_i32 = arith.constant 0 : i32
    %c0_i32_0 = arith.constant 0 : i32
    %c0_i32_1 = arith.constant 0 : i32
    return %arg0, %arg1, %c0_i32, %c0_i32_0 : i32, i32, i32, i32
  }
  func.func @transform_2(%arg0: i32, %arg1: i32) -> (i32, i32, i32) {
    %c0_i32 = arith.constant 0 : i32
    %c0_i32_0 = arith.constant 0 : i32
    %c0_i32_1 = arith.constant 0 : i32
    return %arg1, %c0_i32, %c0_i32_0 : i32, i32, i32
  }
  func.func @transform_3(%arg0: i32, %arg1: i32) -> (i32, i32, i32) {
    %c0_i32 = arith.constant 0 : i32
    %c0_i32_0 = arith.constant 0 : i32
    %c0_i32_1 = arith.constant 0 : i32
    return %arg1, %c0_i32, %c0_i32_0 : i32, i32, i32
  }
  func.func @transform_4(%arg0: i32, %arg1: i32) -> (i32, i32) {
    %c0_i32 = arith.constant 0 : i32
    %c0_i32_0 = arith.constant 0 : i32
    %c0_i32_1 = arith.constant 0 : i32
    return %c0_i32, %c0_i32_0 : i32, i32
  }
  func.func @transform_5(%arg0: i32, %arg1: i32) -> (i32, i32) {
    %c0_i32 = arith.constant 0 : i32
    %c0_i32_0 = arith.constant 0 : i32
    %c0_i32_1 = arith.constant 0 : i32
    return %c0_i32, %c0_i32_0 : i32, i32
  }
  func.func @transform_6(%arg0: i32, %arg1: i32) -> (i32, i32) {
    %c0_i32 = arith.constant 0 : i32
    %c0_i32_0 = arith.constant 0 : i32
    %c0_i32_1 = arith.constant 0 : i32
    return %c0_i32, %c0_i32_0 : i32, i32
  }
  func.func @transform_7(%arg0: i32, %arg1: i32) -> (i32, i32) {
    %c0_i32 = arith.constant 0 : i32
    %c0_i32_0 = arith.constant 0 : i32
    %c0_i32_1 = arith.constant 0 : i32
    return %c0_i32, %c0_i32_0 : i32, i32
  }
  func.func @transform_8(%arg0: i32, %arg1: i32) -> (i32, i32) {
    %c0_i32 = arith.constant 0 : i32
    %c0_i32_0 = arith.constant 0 : i32
    %c0_i32_1 = arith.constant 0 : i32
    return %c0_i32, %c0_i32_0 : i32, i32
  }
  func.func @transform_9(%arg0: i32, %arg1: i32) -> (i32, i32) {
    %c0_i32 = arith.constant 0 : i32
    %c0_i32_0 = arith.constant 0 : i32
    %c0_i32_1 = arith.constant 0 : i32
    return %c0_i32, %c0_i32_0 : i32, i32
  }
  func.func @transform_10(%arg0: i32, %arg1: i32) -> (i32, i32) {
    %c0_i32 = arith.constant 0 : i32
    %c0_i32_0 = arith.constant 0 : i32
    %c0_i32_1 = arith.constant 0 : i32
    return %c0_i32, %c0_i32_0 : i32, i32
  }
  func.func @transform_11(%arg0: i32, %arg1: i32) -> (i32, i32) {
    %c0_i32 = arith.constant 0 : i32
    %c0_i32_0 = arith.constant 0 : i32
    %c0_i32_1 = arith.constant 0 : i32
    return %c0_i32, %c0_i32_0 : i32, i32
  }
  func.func @transform_12(%arg0: i32, %arg1: i32) -> (i32, i32) {
    %c0_i32 = arith.constant 0 : i32
    %c0_i32_0 = arith.constant 0 : i32
    %c0_i32_1 = arith.constant 0 : i32
    return %c0_i32, %c0_i32_0 : i32, i32
  }
  func.func @transform_13(%arg0: i32, %arg1: i32) -> (i32, i32) {
    %c0_i32 = arith.constant 0 : i32
    %c0_i32_0 = arith.constant 0 : i32
    %c0_i32_1 = arith.constant 0 : i32
    return %c0_i32, %c0_i32_0 : i32, i32
  }
  func.func @transform_14(%arg0: i32, %arg1: i32) -> (i32, i32) {
    %c0_i32 = arith.constant 0 : i32
    %c0_i32_0 = arith.constant 0 : i32
    %c0_i32_1 = arith.constant 0 : i32
    return %c0_i32, %c0_i32_0 : i32, i32
  }
  func.func @transform_15(%arg0: i32, %arg1: i32) -> (i32, i32) {
    %c0_i32 = arith.constant 0 : i32
    %c0_i32_0 = arith.constant 0 : i32
    %c0_i32_1 = arith.constant 0 : i32
    return %c0_i32, %c0_i32_0 : i32, i32
  }
  func.func @transform_16(%arg0: i32, %arg1: i32) -> (i32, i32) {
    %c0_i32 = arith.constant 0 : i32
    %c0_i32_0 = arith.constant 0 : i32
    %c0_i32_1 = arith.constant 0 : i32
    return %c0_i32, %c0_i32_0 : i32, i32
  }
  func.func @transform_17(%arg0: i32, %arg1: i32) -> (i32, i32) {
    %c0_i32 = arith.constant 0 : i32
    %c0_i32_0 = arith.constant 0 : i32
    %c0_i32_1 = arith.constant 0 : i32
    return %c0_i32, %c0_i32_0 : i32, i32
  }
  func.func @transform_18(%arg0: i32, %arg1: i32) -> (i32, i32) {
    %c0_i32 = arith.constant 0 : i32
    %c0_i32_0 = arith.constant 0 : i32
    %c0_i32_1 = arith.constant 0 : i32
    return %c0_i32, %c0_i32_0 : i32, i32
  }
  func.func @transform_19(%arg0: i32, %arg1: i32) -> (i32, i32) {
    %c0_i32 = arith.constant 0 : i32
    %c0_i32_0 = arith.constant 0 : i32
    %c0_i32_1 = arith.constant 0 : i32
    return %c0_i32, %c0_i32_0 : i32, i32
  }
  func.func @transform_20(%arg0: i32, %arg1: i32) -> (i32, i32) {
    %c0_i32 = arith.constant 0 : i32
    %c0_i32_0 = arith.constant 0 : i32
    %c0_i32_1 = arith.constant 0 : i32
    return %c0_i32, %c0_i32_0 : i32, i32
  }
  func.func @transform_21(%arg0: i32, %arg1: i32) -> (i32, i32) {
    %c0_i32 = arith.constant 0 : i32
    %c0_i32_0 = arith.constant 0 : i32
    %c0_i32_1 = arith.constant 0 : i32
    return %c0_i32, %c0_i32_0 : i32, i32
  }
  func.func @transform_22(%arg0: i32, %arg1: i32) -> (i32, i32, i32, i32) {
    %c0_i32 = arith.constant 0 : i32
    %c0_i32_0 = arith.constant 0 : i32
    %c0_i32_1 = arith.constant 0 : i32
    return %arg0, %arg1, %c0_i32, %c0_i32_0 : i32, i32, i32, i32
  }
  func.func @transform_23(%arg0: i32, %arg1: i32) -> (i32, i32, i32, i32) {
    %c0_i32 = arith.constant 0 : i32
    %c0_i32_0 = arith.constant 0 : i32
    %c0_i32_1 = arith.constant 0 : i32
    return %arg0, %arg1, %c0_i32, %c0_i32_0 : i32, i32, i32, i32
  }
  func.func @transform_24(%arg0: i32, %arg1: i32) -> (i32, i32, i32, i32) {
    %c0_i32 = arith.constant 0 : i32
    %c0_i32_0 = arith.constant 0 : i32
    %c0_i32_1 = arith.constant 0 : i32
    return %arg0, %arg1, %c0_i32, %c0_i32_0 : i32, i32, i32, i32
  }
  func.func @transform_25(%arg0: i32, %arg1: i32) -> (i32, i32, i32, i32) {
    %c0_i32 = arith.constant 0 : i32
    %c0_i32_0 = arith.constant 0 : i32
    %c0_i32_1 = arith.constant 0 : i32
    return %arg0, %arg1, %c0_i32, %c0_i32_0 : i32, i32, i32, i32
  }
  func.func @transform_26(%arg0: i32, %arg1: i32) -> (i32, i32, i32, i32) {
    %c0_i32 = arith.constant 0 : i32
    %c0_i32_0 = arith.constant 0 : i32
    %c0_i32_1 = arith.constant 0 : i32
    return %arg0, %arg1, %c0_i32, %c0_i32_0 : i32, i32, i32, i32
  }
  func.func @transform_27(%arg0: i32, %arg1: i32) -> (i32, i32, i32, i32) {
    %c0_i32 = arith.constant 0 : i32
    %c0_i32_0 = arith.constant 0 : i32
    %c0_i32_1 = arith.constant 0 : i32
    return %arg0, %arg1, %c0_i32, %c0_i32_0 : i32, i32, i32, i32
  }
}

</mosaic_0001>

<llo_original>
// kernel: tpu_custom_call.1
$region0: #{tpu_custom_call.1}
  #allocation0 [shape = 'u32[]', space=smem, size = 0x4, offset = 0x4, fixed_abs, tag = 'smem constant byte address 0x4 - core index']
  #allocation1 [shape = 'u32[144,128]{1,0:T(1,128)}', space=vmem, size = 0x12000, scoped, tag = 'internal scratch']
  #allocation2 [shape = 'f32[1,1]{1,0:T(1,128)S(1)}', space=vmem, size = 0x200, scoped, tag = 'scoped memory for tpu_custom_call.1']
  #allocation3 [shape = 'f32[1,1]{1,0:T(1,128)S(1)}', space=vmem, size = 0x200, scoped, tag = 'scoped memory for tpu_custom_call.1']
  %s0 = inlined_call_operand.vmem [shape: f32[2,2,16,32], index: 0, kind: input, shape index: {}]
  %s1 = inlined_call_operand.vmem [shape: f32[2,2,24,32], index: 1, kind: input, shape index: {}]
  %s2 = inlined_call_operand.vmem [shape: f32[2,16,3], index: 2, kind: input, shape index: {}]
  %s3 = inlined_call_operand.vmem [shape: f32[2,24,3], index: 3, kind: input, shape index: {}]
  %s4 = inlined_call_operand.vmem [shape: f32[32,32], index: 4, kind: input, shape index: {}]
  %s5 = inlined_call_operand.vmem [shape: f32[1,32], index: 5, kind: input, shape index: {}]
  %s6 = inlined_call_operand.hbm [shape: f32[32,32], index: 6, kind: input, shape index: {}]
  %s7 = inlined_call_operand.vmem [shape: f32[1,32], index: 7, kind: input, shape index: {}]
  %s8 = inlined_call_operand.hbm [shape: f32[32,38], index: 8, kind: input, shape index: {}]
  %s9 = inlined_call_operand.vmem [shape: f32[3,38], index: 9, kind: input, shape index: {}]
  %s10 = inlined_call_operand.vmem [shape: f32[3,38], index: 10, kind: input, shape index: {}]
  %s11 = inlined_call_operand.vmem [shape: f32[1,38], index: 11, kind: input, shape index: {}]
  %s12 = inlined_call_operand.vmem [shape: f32[38,38], index: 12, kind: input, shape index: {}]
  %s13 = inlined_call_operand.vmem [shape: f32[1,38], index: 13, kind: input, shape index: {}]
  %s14 = inlined_call_operand.vmem [shape: f32[38,3], index: 14, kind: input, shape index: {}]
  %s15 = inlined_call_operand.vmem [shape: f32[1,3], index: 15, kind: input, shape index: {}]
  %s16 = inlined_call_operand.vmem [shape: f32[32,1], index: 16, kind: input, shape index: {}]
  %s17 = inlined_call_operand.vmem [shape: f32[3,1], index: 17, kind: input, shape index: {}]
  %s18 = inlined_call_operand.vmem [shape: f32[3,1], index: 18, kind: input, shape index: {}]
  %s19 = inlined_call_operand.<no memory space> [shape: f32[1,1], index: 19, kind: input, shape index: {}]
  %s20 = inlined_call_operand.vmem [shape: f32[32,1], index: 20, kind: input, shape index: {}]
  %s21 = inlined_call_operand.<no memory space> [shape: f32[1,1], index: 21, kind: input, shape index: {}]
  %s22 = inlined_call_operand.vmem [shape: f32[2,2,16,3], index: 22, kind: output, shape index: {0}]
  %s23 = inlined_call_operand.vmem [shape: f32[2,2,16,1], index: 23, kind: output, shape index: {1}]
  %s24 = inlined_call_operand.vmem [shape: f32[2,2,16,1], index: 24, kind: output, shape index: {2}]
  %s25 = inlined_call_operand.vmem [shape: f32[2,2,24,3], index: 25, kind: output, shape index: {3}]
  %s26 = inlined_call_operand.vmem [shape: f32[2,2,24,1], index: 26, kind: output, shape index: {4}]
  %s27 = inlined_call_operand.vmem [shape: f32[2,2,24,1], index: 27, kind: output, shape index: {5}]
  %28 = xla_tuple %s22, %s23, %s24, %s25, %s26, %s27
  %s29 = sld [smem:[#allocation0]]
  $region169: #{tpu_custom_call.1} parent=0
    _
  %s31 = ssub.s32 1, %s29
  %s32 = scalar_select 0, %s31, %s29
  %v33 = vstv %s19
  %34 = vst [vmem:[#allocation2] sm:$0x1] %v33
  %v35 = vstv %s21
  %36 = vst [vmem:[#allocation3] sm:$0x1] %v35
  $region1: #{tpu_custom_call.1} parent=0
    #allocation4 [shape = 'u8[16384]{0}', space=vmem, size = 0x4000, scoped, tag = 'input window, operand 6, single buffered']
    #allocation5 [shape = 's32[2]{0}', space=sflag, size = 0x8, scoped, tag = 'scoped memory for tpu_custom_call.1']
    #allocation6 [shape = 'u8[16384]{0}', space=vmem, size = 0x4000, scoped, tag = 'input window, operand 8, single buffered']
    #allocation7 [shape = 's32[1]{0}', space=sflag, size = 0x4, scoped, tag = 'scoped memory for tpu_custom_call.1']
    %37 = vsyncpa [#allocation5], 0
    %38 = vsyncpa [#allocation7], 0
    loop: start=0, step=1, limit=6
    $region2: #{tpu_custom_call.1} parent=1 // loop_pre_header
      _
    $region3: #{tpu_custom_call.1} parent=1 // loop_header
      %s40 = sphi 0, %s44
      %p41 = scmp.ge.s32.totalorder %s40, 6
      %s47 = sphi 0, %s59
      %s48 = sphi 0, %s55
      %s49 = sphi 0, %s47
      %s50 = sphi 0, %s48
      %s51 = sphi 0, %s49
      %s52 = sphi 0, %s50
      %s64 = sphi 0, %s66
      %s67 = sphi 0, %s64
      %s68 = sphi 0, %s67
      %s84 = sphi 0, %s68
      %s92 = sphi 0, %s94
      %s95 = sphi 0, %s92
      %s96 = sphi 0, %s95
      %s112 = sphi 0, %s96
      %s118 = sphi 0, %s120
      %s121 = sphi 0, %s118
      %s122 = sphi 0, %s121
      %s138 = sphi 0, %s122
      %s144 = sphi 0, %s146
      %s147 = sphi 0, %s144
      %s148 = sphi 0, %s147
      %s164 = sphi 0, %s148
      %s168 = sphi 0, %s168
      %s170 = sphi 0, %s168
      %s171 = sphi 0, %s170
      %s185 = sphi 0, %s171
      %s189 = sphi 0, %s189
      %s191 = sphi 0, %s189
      %s192 = sphi 0, %s191
      %s206 = sphi 0, %s192
      %s210 = sphi 0, %s210
      %s212 = sphi 0, %s210
      %s213 = sphi 0, %s212
      %s227 = sphi 0, %s213
      %s231 = sphi 0, %s231
      %s233 = sphi 0, %s231
      %s234 = sphi 0, %s233
      %s248 = sphi 0, %s234
      %s252 = sphi 0, %s252
      %s254 = sphi 0, %s252
      %s255 = sphi 0, %s254
      %s269 = sphi 0, %s255
      %s273 = sphi 0, %s273
      %s275 = sphi 0, %s273
      %s276 = sphi 0, %s275
      %s290 = sphi 0, %s276
      %s294 = sphi 0, %s294
      %s296 = sphi 0, %s294
      %s297 = sphi 0, %s296
      %s311 = sphi 0, %s297
      %s315 = sphi 0, %s315
      %s317 = sphi 0, %s315
      %s318 = sphi 0, %s317
      %s332 = sphi 0, %s318
      %s336 = sphi 0, %s336
      %s338 = sphi 0, %s336
      %s339 = sphi 0, %s338
      %s353 = sphi 0, %s339
      %s357 = sphi 0, %s357
      %s359 = sphi 0, %s357
      %s360 = sphi 0, %s359
      %s374 = sphi 0, %s360
      %s378 = sphi 0, %s378
      %s380 = sphi 0, %s378
      %s381 = sphi 0, %s380
      %s395 = sphi 0, %s381
      %s399 = sphi 0, %s399
      %s401 = sphi 0, %s399
      %s402 = sphi 0, %s401
      %s416 = sphi 0, %s402
      %s420 = sphi 0, %s420
      %s422 = sphi 0, %s420
      %s423 = sphi 0, %s422
      %s437 = sphi 0, %s423
      %s441 = sphi 0, %s441
      %s443 = sphi 0, %s441
      %s444 = sphi 0, %s443
      %s458 = sphi 0, %s444
      %s462 = sphi 0, %s462
      %s464 = sphi 0, %s462
      %s465 = sphi 0, %s464
      %s479 = sphi 0, %s465
      %s483 = sphi 0, %s483
      %s485 = sphi 0, %s483
      %s486 = sphi 0, %s485
      %s500 = sphi 0, %s486
      %s504 = sphi 0, %s504
      %s506 = sphi 0, %s504
      %s507 = sphi 0, %s506
      %s521 = sphi 0, %s507
      %s525 = sphi 0, %s525
      %s527 = sphi 0, %s525
      %s528 = sphi 0, %s527
      %s542 = sphi 0, %s528
      %s550 = sphi 0, %s552
      %s553 = sphi 0, %s550
      %s554 = sphi 0, %s553
      %s570 = sphi 0, %s554
      %s578 = sphi 0, %s580
      %s581 = sphi 0, %s578
      %s582 = sphi 0, %s581
      %s598 = sphi 0, %s582
      %s606 = sphi 0, %s608
      %s609 = sphi 0, %s606
      %s610 = sphi 0, %s609
      %s626 = sphi 0, %s610
      %s634 = sphi 0, %s636
      %s637 = sphi 0, %s634
      %s638 = sphi 0, %s637
      %s654 = sphi 0, %s638
      %s662 = sphi 0, %s664
      %s665 = sphi 0, %s662
      %s666 = sphi 0, %s665
      %s682 = sphi 0, %s666
      %s690 = sphi 0, %s692
      %s693 = sphi 0, %s690
      %s694 = sphi 0, %s693
      %s710 = sphi 0, %s694
    $region4: #{tpu_custom_call.1} parent=1 // loop_header_branch
      %43 = sbr.rel (%p41) target = $region8
    $region5: #{tpu_custom_call.1} parent=1 // loop_body
      %s45 = ssub.s32 %s40, 1
      %s46 = ssub.s32 %s40, 2
      %s53 = sadd.s32 1, %s48
      %p54 = scmp.ge.s32.totalorder %s53, 2
      %s55 = scalar_select %p54, 0, %s53
      %s56 = sadd.s32 1, %s47
      %s57 = scalar_select %p54, %s56, %s47
      %p58 = scmp.ge.s32.totalorder %s57, 2
      %s59 = scalar_select %p58, 0, %s57
      %s60 = ssub.s32 %s47, %s59
      %s61 = ssub.s32 %s48, %s55
      %s62 = sor.u32 %s60, %s61
      %p63 = scmp.eq.s32.totalorder %s62, 0
      %s65 = sadd.s32 %s64, 1
      %s66 = scalar_select %p63, %s64, %s65
      %p69 = pneg %p63
      %p70 = scmp.eq.s32.totalorder %s40, 3
      %p71 = por %p69, %p70
      %p72 = scmp.ne.s32.totalorder %s64, %s67
      %p73 = scmp.eq.s32.totalorder %s40, 0
      %p74 = por %p72, %p73
      %p75 = scmp.ne.s32.totalorder %s64, %s67
      %p76 = scmp.eq.s32.totalorder %s45, 3
      %p77 = por %p75, %p76
      %p78 = scmp.ne.s32.totalorder %s67, %s68
      %p79 = scmp.eq.s32.totalorder %s45, 0
      %p80 = por %p78, %p79
      %p81 = scmp.ne.s32.totalorder %s67, %s68
      %p82 = scmp.eq.s32.totalorder %s46, 3
      %p83 = por %p81, %p82
      %p85 = scmp.ne.s32.totalorder %s68, %s84
      %p86 = scmp.eq.s32.totalorder %s46, 0
      %p87 = por %p85, %p86
      %s88 = ssub.s32 %s47, %s59
      %s89 = ssub.s32 %s48, %s55
      %s90 = sor.u32 %s88, %s89
      %p91 = scmp.eq.s32.totalorder %s90, 0
      %s93 = sadd.s32 %s92, 1
      %s94 = scalar_select %p91, %s92, %s93
      %p97 = pneg %p91
      %p98 = scmp.eq.s32.totalorder %s40, 3
      %p99 = por %p97, %p98
      %p100 = scmp.ne.s32.totalorder %s92, %s95
      %p101 = scmp.eq.s32.totalorder %s40, 0
      %p102 = por %p100, %p101
      %p103 = scmp.ne.s32.totalorder %s92, %s95
      %p104 = scmp.eq.s32.totalorder %s45, 3
      %p105 = por %p103, %p104
      %p106 = scmp.ne.s32.totalorder %s95, %s96
      %p107 = scmp.eq.s32.totalorder %s45, 0
      %p108 = por %p106, %p107
      %p109 = scmp.ne.s32.totalorder %s95, %s96
      %p110 = scmp.eq.s32.totalorder %s46, 3
      %p111 = por %p109, %p110
      %p113 = scmp.ne.s32.totalorder %s96, %s112
      %p114 = scmp.eq.s32.totalorder %s46, 0
      %p115 = por %p113, %p114
      %s116 = ssub.s32 %s48, %s55
      %p117 = scmp.eq.s32.totalorder %s116, 0
      %s119 = sadd.s32 %s118, 1
      %s120 = scalar_select %p117, %s118, %s119
      %p123 = pneg %p117
      %p124 = scmp.eq.s32.totalorder %s40, 3
      %p125 = por %p123, %p124
      %p126 = scmp.ne.s32.totalorder %s118, %s121
      %p127 = scmp.eq.s32.totalorder %s40, 0
      %p128 = por %p126, %p127
      %p129 = scmp.ne.s32.totalorder %s118, %s121
      %p130 = scmp.eq.s32.totalorder %s45, 3
      %p131 = por %p129, %p130
      %p132 = scmp.ne.s32.totalorder %s121, %s122
      %p133 = scmp.eq.s32.totalorder %s45, 0
      %p134 = por %p132, %p133
      %p135 = scmp.ne.s32.totalorder %s121, %s122
      %p136 = scmp.eq.s32.totalorder %s46, 3
      %p137 = por %p135, %p136
      %p139 = scmp.ne.s32.totalorder %s122, %s138
      %p140 = scmp.eq.s32.totalorder %s46, 0
      %p141 = por %p139, %p140
      %s142 = ssub.s32 %s48, %s55
      %p143 = scmp.eq.s32.totalorder %s142, 0
      %s145 = sadd.s32 %s144, 1
      %s146 = scalar_select %p143, %s144, %s145
      %p149 = pneg %p143
      %p150 = scmp.eq.s32.totalorder %s40, 3
      %p151 = por %p149, %p150
      %p152 = scmp.ne.s32.totalorder %s144, %s147
      %p153 = scmp.eq.s32.totalorder %s40, 0
      %p154 = por %p152, %p153
      %p155 = scmp.ne.s32.totalorder %s144, %s147
      %p156 = scmp.eq.s32.totalorder %s45, 3
      %p157 = por %p155, %p156
      %p158 = scmp.ne.s32.totalorder %s147, %s148
      %p159 = scmp.eq.s32.totalorder %s45, 0
      %p160 = por %p158, %p159
      %p161 = scmp.ne.s32.totalorder %s147, %s148
      %p162 = scmp.eq.s32.totalorder %s46, 3
      %p163 = por %p161, %p162
      %p165 = scmp.ne.s32.totalorder %s148, %s164
      %p166 = scmp.eq.s32.totalorder %s46, 0
      %p167 = por %p165, %p166
      %s169 = sadd.s32 %s168, 1
      %p172 = scmp.eq.s32.totalorder %s40, 3
      %p173 = scmp.ne.s32.totalorder %s168, %s170
      %p174 = scmp.eq.s32.totalorder %s40, 0
      %p175 = por %p173, %p174
      %p176 = scmp.ne.s32.totalorder %s168, %s170
      %p177 = scmp.eq.s32.totalorder %s45, 3
      %p178 = por %p176, %p177
      %p179 = scmp.ne.s32.totalorder %s170, %s171
      %p180 = scmp.eq.s32.totalorder %s45, 0
      %p181 = por %p179, %p180
      %p182 = scmp.ne.s32.totalorder %s170, %s171
      %p183 = scmp.eq.s32.totalorder %s46, 3
      %p184 = por %p182, %p183
      %p186 = scmp.ne.s32.totalorder %s171, %s185
      %p187 = scmp.eq.s32.totalorder %s46, 0
      %p188 = por %p186, %p187
      %s190 = sadd.s32 %s189, 1
      %p193 = scmp.eq.s32.totalorder %s40, 3
      %p194 = scmp.ne.s32.totalorder %s189, %s191
      %p195 = scmp.eq.s32.totalorder %s40, 0
      %p196 = por %p194, %p195
      %p197 = scmp.ne.s32.totalorder %s189, %s191
      %p198 = scmp.eq.s32.totalorder %s45, 3
      %p199 = por %p197, %p198
      %p200 = scmp.ne.s32.totalorder %s191, %s192
      %p201 = scmp.eq.s32.totalorder %s45, 0
      %p202 = por %p200, %p201
      %p203 = scmp.ne.s32.totalorder %s191, %s192
      %p204 = scmp.eq.s32.totalorder %s46, 3
      %p205 = por %p203, %p204
      %p207 = scmp.ne.s32.totalorder %s192, %s206
      %p208 = scmp.eq.s32.totalorder %s46, 0
      %p209 = por %p207, %p208
      %s211 = sadd.s32 %s210, 1
      %p214 = scmp.eq.s32.totalorder %s40, 3
      %p215 = scmp.ne.s32.totalorder %s210, %s212
      %p216 = scmp.eq.s32.totalorder %s40, 0
      %p217 = por %p215, %p216
      %p218 = scmp.ne.s32.totalorder %s210, %s212
      %p219 = scmp.eq.s32.totalorder %s45, 3
      %p220 = por %p218, %p219
      %p221 = scmp.ne.s32.totalorder %s212, %s213
      %p222 = scmp.eq.s32.totalorder %s45, 0
      %p223 = por %p221, %p222
      %p224 = scmp.ne.s32.totalorder %s212, %s213
      %p225 = scmp.eq.s32.totalorder %s46, 3
      %p226 = por %p224, %p225
      %p228 = scmp.ne.s32.totalorder %s213, %s227
      %p229 = scmp.eq.s32.totalorder %s46, 0
      %p230 = por %p228, %p229
      %s232 = sadd.s32 %s231, 1
      %p235 = scmp.eq.s32.totalorder %s40, 3
      %p236 = scmp.ne.s32.totalorder %s231, %s233
      %p237 = scmp.eq.s32.totalorder %s40, 0
      %p238 = por %p236, %p237
      %p239 = scmp.ne.s32.totalorder %s231, %s233
      %p240 = scmp.eq.s32.totalorder %s45, 3
      %p241 = por %p239, %p240
      %p242 = scmp.ne.s32.totalorder %s233, %s234
      %p243 = scmp.eq.s32.totalorder %s45, 0
      %p244 = por %p242, %p243
      %p245 = scmp.ne.s32.totalorder %s233, %s234
      %p246 = scmp.eq.s32.totalorder %s46, 3
      %p247 = por %p245, %p246
      %p249 = scmp.ne.s32.totalorder %s234, %s248
      %p250 = scmp.eq.s32.totalorder %s46, 0
      %p251 = por %p249, %p250
      %s253 = sadd.s32 %s252, 1
      %p256 = scmp.eq.s32.totalorder %s40, 3
      %p257 = scmp.ne.s32.totalorder %s252, %s254
      %p258 = scmp.eq.s32.totalorder %s40, 0
      %p259 = por %p257, %p258
      %p260 = scmp.ne.s32.totalorder %s252, %s254
      %p261 = scmp.eq.s32.totalorder %s45, 3
      %p262 = por %p260, %p261
      %p263 = scmp.ne.s32.totalorder %s254, %s255
      %p264 = scmp.eq.s32.totalorder %s45, 0
      %p265 = por %p263, %p264
      %p266 = scmp.ne.s32.totalorder %s254, %s255
      %p267 = scmp.eq.s32.totalorder %s46, 3
      %p268 = por %p266, %p267
      %p270 = scmp.ne.s32.totalorder %s255, %s269
      %p271 = scmp.eq.s32.totalorder %s46, 0
      %p272 = por %p270, %p271
      %s274 = sadd.s32 %s273, 1
      %p277 = scmp.eq.s32.totalorder %s40, 3
      %p278 = scmp.ne.s32.totalorder %s273, %s275
      %p279 = scmp.eq.s32.totalorder %s40, 0
      %p280 = por %p278, %p279
      %p281 = scmp.ne.s32.totalorder %s273, %s275
      %p282 = scmp.eq.s32.totalorder %s45, 3
      %p283 = por %p281, %p282
      %p284 = scmp.ne.s32.totalorder %s275, %s276
      %p285 = scmp.eq.s32.totalorder %s45, 0
      %p286 = por %p284, %p285
      %p287 = scmp.ne.s32.totalorder %s275, %s276
      %p288 = scmp.eq.s32.totalorder %s46, 3
      %p289 = por %p287, %p288
      %p291 = scmp.ne.s32.totalorder %s276, %s290
      %p292 = scmp.eq.s32.totalorder %s46, 0
      %p293 = por %p291, %p292
      %s295 = sadd.s32 %s294, 1
      %p298 = scmp.eq.s32.totalorder %s40, 3
      %p299 = scmp.ne.s32.totalorder %s294, %s296
      %p300 = scmp.eq.s32.totalorder %s40, 0
      %p301 = por %p299, %p300
      %p302 = scmp.ne.s32.totalorder %s294, %s296
      %p303 = scmp.eq.s32.totalorder %s45, 3
      %p304 = por %p302, %p303
      %p305 = scmp.ne.s32.totalorder %s296, %s297
      %p306 = scmp.eq.s32.totalorder %s45, 0
      %p307 = por %p305, %p306
      %p308 = scmp.ne.s32.totalorder %s296, %s297
      %p309 = scmp.eq.s32.totalorder %s46, 3
      %p310 = por %p308, %p309
      %p312 = scmp.ne.s32.totalorder %s297, %s311
      %p313 = scmp.eq.s32.totalorder %s46, 0
      %p314 = por %p312, %p313
      %s316 = sadd.s32 %s315, 1
      %p319 = scmp.eq.s32.totalorder %s40, 3
      %p320 = scmp.ne.s32.totalorder %s315, %s317
      %p321 = scmp.eq.s32.totalorder %s40, 0
      %p322 = por %p320, %p321
      %p323 = scmp.ne.s32.totalorder %s315, %s317
      %p324 = scmp.eq.s32.totalorder %s45, 3
      %p325 = por %p323, %p324
      %p326 = scmp.ne.s32.totalorder %s317, %s318
      %p327 = scmp.eq.s32.totalorder %s45, 0
      %p328 = por %p326, %p327
      %p329 = scmp.ne.s32.totalorder %s317, %s318
      %p330 = scmp.eq.s32.totalorder %s46, 3
      %p331 = por %p329, %p330
      %p333 = scmp.ne.s32.totalorder %s318, %s332
      %p334 = scmp.eq.s32.totalorder %s46, 0
      %p335 = por %p333, %p334
      %s337 = sadd.s32 %s336, 1
      %p340 = scmp.eq.s32.totalorder %s40, 3
      %p341 = scmp.ne.s32.totalorder %s336, %s338
      %p342 = scmp.eq.s32.totalorder %s40, 0
      %p343 = por %p341, %p342
      %p344 = scmp.ne.s32.totalorder %s336, %s338
      %p345 = scmp.eq.s32.totalorder %s45, 3
      %p346 = por %p344, %p345
      %p347 = scmp.ne.s32.totalorder %s338, %s339
      %p348 = scmp.eq.s32.totalorder %s45, 0
      %p349 = por %p347, %p348
      %p350 = scmp.ne.s32.totalorder %s338, %s339
      %p351 = scmp.eq.s32.totalorder %s46, 3
      %p352 = por %p350, %p351
      %p354 = scmp.ne.s32.totalorder %s339, %s353
      %p355 = scmp.eq.s32.totalorder %s46, 0
      %p356 = por %p354, %p355
      %s358 = sadd.s32 %s357, 1
      %p361 = scmp.eq.s32.totalorder %s40, 3
      %p362 = scmp.ne.s32.totalorder %s357, %s359
      %p363 = scmp.eq.s32.totalorder %s40, 0
      %p364 = por %p362, %p363
      %p365 = scmp.ne.s32.totalorder %s357, %s359
      %p366 = scmp.eq.s32.totalorder %s45, 3
      %p367 = por %p365, %p366
      %p368 = scmp.ne.s32.totalorder %s359, %s360
      %p369 = scmp.eq.s32.totalorder %s45, 0
      %p370 = por %p368, %p369
      %p371 = scmp.ne.s32.totalorder %s359, %s360
      %p372 = scmp.eq.s32.totalorder %s46, 3
      %p373 = por %p371, %p372
      %p375 = scmp.ne.s32.totalorder %s360, %s374
      %p376 = scmp.eq.s32.totalorder %s46, 0
      %p377 = por %p375, %p376
      %s379 = sadd.s32 %s378, 1
      %p382 = scmp.eq.s32.totalorder %s40, 3
      %p383 = scmp.ne.s32.totalorder %s378, %s380
      %p384 = scmp.eq.s32.totalorder %s40, 0
      %p385 = por %p383, %p384
      %p386 = scmp.ne.s32.totalorder %s378, %s380
      %p387 = scmp.eq.s32.totalorder %s45, 3
      %p388 = por %p386, %p387
      %p389 = scmp.ne.s32.totalorder %s380, %s381
      %p390 = scmp.eq.s32.totalorder %s45, 0
      %p391 = por %p389, %p390
      %p392 = scmp.ne.s32.totalorder %s380, %s381
      %p393 = scmp.eq.s32.totalorder %s46, 3
      %p394 = por %p392, %p393
      %p396 = scmp.ne.s32.totalorder %s381, %s395
      %p397 = scmp.eq.s32.totalorder %s46, 0
      %p398 = por %p396, %p397
      %s400 = sadd.s32 %s399, 1
      %p403 = scmp.eq.s32.totalorder %s40, 3
      %p404 = scmp.ne.s32.totalorder %s399, %s401
      %p405 = scmp.eq.s32.totalorder %s40, 0
      %p406 = por %p404, %p405
      %p407 = scmp.ne.s32.totalorder %s399, %s401
      %p408 = scmp.eq.s32.totalorder %s45, 3
      %p409 = por %p407, %p408
      %p410 = scmp.ne.s32.totalorder %s401, %s402
      %p411 = scmp.eq.s32.totalorder %s45, 0
      %p412 = por %p410, %p411
      %p413 = scmp.ne.s32.totalorder %s401, %s402
      %p414 = scmp.eq.s32.totalorder %s46, 3
      %p415 = por %p413, %p414
      %p417 = scmp.ne.s32.totalorder %s402, %s416
      %p418 = scmp.eq.s32.totalorder %s46, 0
      %p419 = por %p417, %p418
      %s421 = sadd.s32 %s420, 1
      %p424 = scmp.eq.s32.totalorder %s40, 3
      %p425 = scmp.ne.s32.totalorder %s420, %s422
      %p426 = scmp.eq.s32.totalorder %s40, 0
      %p427 = por %p425, %p426
      %p428 = scmp.ne.s32.totalorder %s420, %s422
      %p429 = scmp.eq.s32.totalorder %s45, 3
      %p430 = por %p428, %p429
      %p431 = scmp.ne.s32.totalorder %s422, %s423
      %p432 = scmp.eq.s32.totalorder %s45, 0
      %p433 = por %p431, %p432
      %p434 = scmp.ne.s32.totalorder %s422, %s423
      %p435 = scmp.eq.s32.totalorder %s46, 3
      %p436 = por %p434, %p435
      %p438 = scmp.ne.s32.totalorder %s423, %s437
      %p439 = scmp.eq.s32.totalorder %s46, 0
      %p440 = por %p438, %p439
      %s442 = sadd.s32 %s441, 1
      %p445 = scmp.eq.s32.totalorder %s40, 3
      %p446 = scmp.ne.s32.totalorder %s441, %s443
      %p447 = scmp.eq.s32.totalorder %s40, 0
      %p448 = por %p446, %p447
      %p449 = scmp.ne.s32.totalorder %s441, %s443
      %p450 = scmp.eq.s32.totalorder %s45, 3
      %p451 = por %p449, %p450
      %p452 = scmp.ne.s32.totalorder %s443, %s444
      %p453 = scmp.eq.s32.totalorder %s45, 0
      %p454 = por %p452, %p453
      %p455 = scmp.ne.s32.totalorder %s443, %s444
      %p456 = scmp.eq.s32.totalorder %s46, 3
      %p457 = por %p455, %p456
      %p459 = scmp.ne.s32.totalorder %s444, %s458
      %p460 = scmp.eq.s32.totalorder %s46, 0
      %p461 = por %p459, %p460
      %s463 = sadd.s32 %s462, 1
      %p466 = scmp.eq.s32.totalorder %s40, 3
      %p467 = scmp.ne.s32.totalorder %s462, %s464
      %p468 = scmp.eq.s32.totalorder %s40, 0
      %p469 = por %p467, %p468
      %p470 = scmp.ne.s32.totalorder %s462, %s464
      %p471 = scmp.eq.s32.totalorder %s45, 3
      %p472 = por %p470, %p471
      %p473 = scmp.ne.s32.totalorder %s464, %s465
      %p474 = scmp.eq.s32.totalorder %s45, 0
      %p475 = por %p473, %p474
      %p476 = scmp.ne.s32.totalorder %s464, %s465
      %p477 = scmp.eq.s32.totalorder %s46, 3
      %p478 = por %p476, %p477
      %p480 = scmp.ne.s32.totalorder %s465, %s479
      %p481 = scmp.eq.s32.totalorder %s46, 0
      %p482 = por %p480, %p481
      %s484 = sadd.s32 %s483, 1
      %p487 = scmp.eq.s32.totalorder %s40, 3
      %p488 = scmp.ne.s32.totalorder %s483, %s485
      %p489 = scmp.eq.s32.totalorder %s40, 0
      %p490 = por %p488, %p489
      %p491 = scmp.ne.s32.totalorder %s483, %s485
      %p492 = scmp.eq.s32.totalorder %s45, 3
      %p493 = por %p491, %p492
      %p494 = scmp.ne.s32.totalorder %s485, %s486
      %p495 = scmp.eq.s32.totalorder %s45, 0
      %p496 = por %p494, %p495
      %p497 = scmp.ne.s32.totalorder %s485, %s486
      %p498 = scmp.eq.s32.totalorder %s46, 3
      %p499 = por %p497, %p498
      %p501 = scmp.ne.s32.totalorder %s486, %s500
      %p502 = scmp.eq.s32.totalorder %s46, 0
      %p503 = por %p501, %p502
      %s505 = sadd.s32 %s504, 1
      %p508 = scmp.eq.s32.totalorder %s40, 3
      %p509 = scmp.ne.s32.totalorder %s504, %s506
      %p510 = scmp.eq.s32.totalorder %s40, 0
      %p511 = por %p509, %p510
      %p512 = scmp.ne.s32.totalorder %s504, %s506
      %p513 = scmp.eq.s32.totalorder %s45, 3
      %p514 = por %p512, %p513
      %p515 = scmp.ne.s32.totalorder %s506, %s507
      %p516 = scmp.eq.s32.totalorder %s45, 0
      %p517 = por %p515, %p516
      %p518 = scmp.ne.s32.totalorder %s506, %s507
      %p519 = scmp.eq.s32.totalorder %s46, 3
      %p520 = por %p518, %p519
      %p522 = scmp.ne.s32.totalorder %s507, %s521
      %p523 = scmp.eq.s32.totalorder %s46, 0
      %p524 = por %p522, %p523
      %s526 = sadd.s32 %s525, 1
      %p529 = scmp.eq.s32.totalorder %s40, 3
      %p530 = scmp.ne.s32.totalorder %s525, %s527
      %p531 = scmp.eq.s32.totalorder %s40, 0
      %p532 = por %p530, %p531
      %p533 = scmp.ne.s32.totalorder %s525, %s527
      %p534 = scmp.eq.s32.totalorder %s45, 3
      %p535 = por %p533, %p534
      %p536 = scmp.ne.s32.totalorder %s527, %s528
      %p537 = scmp.eq.s32.totalorder %s45, 0
      %p538 = por %p536, %p537
      %p539 = scmp.ne.s32.totalorder %s527, %s528
      %p540 = scmp.eq.s32.totalorder %s46, 3
      %p541 = por %p539, %p540
      %p543 = scmp.ne.s32.totalorder %s528, %s542
      %p544 = scmp.eq.s32.totalorder %s46, 0
      %p545 = por %p543, %p544
      %s546 = ssub.s32 %s47, %s59
      %s547 = ssub.s32 %s48, %s55
      %s548 = sor.u32 %s546, %s547
      %p549 = scmp.eq.s32.totalorder %s548, 0
      %s551 = sadd.s32 %s550, 1
      %s552 = scalar_select %p549, %s550, %s551
      %p555 = pneg %p549
      %p556 = scmp.eq.s32.totalorder %s40, 3
      %p557 = por %p555, %p556
      %p558 = scmp.ne.s32.totalorder %s550, %s553
      %p559 = scmp.eq.s32.totalorder %s40, 0
      %p560 = por %p558, %p559
      %p561 = scmp.ne.s32.totalorder %s550, %s553
      %p562 = scmp.eq.s32.totalorder %s45, 3
      %p563 = por %p561, %p562
      %p564 = scmp.ne.s32.totalorder %s553, %s554
      %p565 = scmp.eq.s32.totalorder %s45, 0
      %p566 = por %p564, %p565
      %p567 = scmp.ne.s32.totalorder %s553, %s554
      %p568 = scmp.eq.s32.totalorder %s46, 3
      %p569 = por %p567, %p568
      %p571 = scmp.ne.s32.totalorder %s554, %s570
      %p572 = scmp.eq.s32.totalorder %s46, 0
      %p573 = por %p571, %p572
      %s574 = ssub.s32 %s47, %s59
      %s575 = ssub.s32 %s48, %s55
      %s576 = sor.u32 %s574, %s575
      %p577 = scmp.eq.s32.totalorder %s576, 0
      %s579 = sadd.s32 %s578, 1
      %s580 = scalar_select %p577, %s578, %s579
      %p583 = pneg %p577
      %p584 = scmp.eq.s32.totalorder %s40, 3
      %p585 = por %p583, %p584
      %p586 = scmp.ne.s32.totalorder %s578, %s581
      %p587 = scmp.eq.s32.totalorder %s40, 0
      %p588 = por %p586, %p587
      %p589 = scmp.ne.s32.totalorder %s578, %s581
      %p590 = scmp.eq.s32.totalorder %s45, 3
      %p591 = por %p589, %p590
      %p592 = scmp.ne.s32.totalorder %s581, %s582
      %p593 = scmp.eq.s32.totalorder %s45, 0
      %p594 = por %p592, %p593
      %p595 = scmp.ne.s32.totalorder %s581, %s582
      %p596 = scmp.eq.s32.totalorder %s46, 3
      %p597 = por %p595, %p596
      %p599 = scmp.ne.s32.totalorder %s582, %s598
      %p600 = scmp.eq.s32.totalorder %s46, 0
      %p601 = por %p599, %p600
      %s602 = ssub.s32 %s47, %s59
      %s603 = ssub.s32 %s48, %s55
      %s604 = sor.u32 %s602, %s603
      %p605 = scmp.eq.s32.totalorder %s604, 0
      %s607 = sadd.s32 %s606, 1
      %s608 = scalar_select %p605, %s606, %s607
      %p611 = pneg %p605
      %p612 = scmp.eq.s32.totalorder %s40, 3
      %p613 = por %p611, %p612
      %p614 = scmp.ne.s32.totalorder %s606, %s609
      %p615 = scmp.eq.s32.totalorder %s40, 0
      %p616 = por %p614, %p615
      %p617 = scmp.ne.s32.totalorder %s606, %s609
      %p618 = scmp.eq.s32.totalorder %s45, 3
      %p619 = por %p617, %p618
      %p620 = scmp.ne.s32.totalorder %s609, %s610
      %p621 = scmp.eq.s32.totalorder %s45, 0
      %p622 = por %p620, %p621
      %p623 = scmp.ne.s32.totalorder %s609, %s610
      %p624 = scmp.eq.s32.totalorder %s46, 3
      %p625 = por %p623, %p624
      %p627 = scmp.ne.s32.totalorder %s610, %s626
      %p628 = scmp.eq.s32.totalorder %s46, 0
      %p629 = por %p627, %p628
      %s630 = ssub.s32 %s47, %s59
      %s631 = ssub.s32 %s48, %s55
      %s632 = sor.u32 %s630, %s631
      %p633 = scmp.eq.s32.totalorder %s632, 0
      %s635 = sadd.s32 %s634, 1
      %s636 = scalar_select %p633, %s634, %s635
      %p639 = pneg %p633
      %p640 = scmp.eq.s32.totalorder %s40, 3
      %p641 = por %p639, %p640
      %p642 = scmp.ne.s32.totalorder %s634, %s637
      %p643 = scmp.eq.s32.totalorder %s40, 0
      %p644 = por %p642, %p643
      %p645 = scmp.ne.s32.totalorder %s634, %s637
      %p646 = scmp.eq.s32.totalorder %s45, 3
      %p647 = por %p645, %p646
      %p648 = scmp.ne.s32.totalorder %s637, %s638
      %p649 = scmp.eq.s32.totalorder %s45, 0
      %p650 = por %p648, %p649
      %p651 = scmp.ne.s32.totalorder %s637, %s638
      %p652 = scmp.eq.s32.totalorder %s46, 3
      %p653 = por %p651, %p652
      %p655 = scmp.ne.s32.totalorder %s638, %s654
      %p656 = scmp.eq.s32.totalorder %s46, 0
      %p657 = por %p655, %p656
      %s658 = ssub.s32 %s47, %s59
      %s659 = ssub.s32 %s48, %s55
      %s660 = sor.u32 %s658, %s659
      %p661 = scmp.eq.s32.totalorder %s660, 0
      %s663 = sadd.s32 %s662, 1
      %s664 = scalar_select %p661, %s662, %s663
      %p667 = pneg %p661
      %p668 = scmp.eq.s32.totalorder %s40, 3
      %p669 = por %p667, %p668
      %p670 = scmp.ne.s32.totalorder %s662, %s665
      %p671 = scmp.eq.s32.totalorder %s40, 0
      %p672 = por %p670, %p671
      %p673 = scmp.ne.s32.totalorder %s662, %s665
      %p674 = scmp.eq.s32.totalorder %s45, 3
      %p675 = por %p673, %p674
      %p676 = scmp.ne.s32.totalorder %s665, %s666
      %p677 = scmp.eq.s32.totalorder %s45, 0
      %p678 = por %p676, %p677
      %p679 = scmp.ne.s32.totalorder %s665, %s666
      %p680 = scmp.eq.s32.totalorder %s46, 3
      %p681 = por %p679, %p680
      %p683 = scmp.ne.s32.totalorder %s666, %s682
      %p684 = scmp.eq.s32.totalorder %s46, 0
      %p685 = por %p683, %p684
      %s686 = ssub.s32 %s47, %s59
      %s687 = ssub.s32 %s48, %s55
      %s688 = sor.u32 %s686, %s687
      %p689 = scmp.eq.s32.totalorder %s688, 0
      %s691 = sadd.s32 %s690, 1
      %s692 = scalar_select %p689, %s690, %s691
      %p695 = pneg %p689
      %p696 = scmp.eq.s32.totalorder %s40, 3
      %p697 = por %p695, %p696
      %p698 = scmp.ne.s32.totalorder %s690, %s693
      %p699 = scmp.eq.s32.totalorder %s40, 0
      %p700 = por %p698, %p699
      %p701 = scmp.ne.s32.totalorder %s690, %s693
      %p702 = scmp.eq.s32.totalorder %s45, 3
      %p703 = por %p701, %p702
      %p704 = scmp.ne.s32.totalorder %s693, %s694
      %p705 = scmp.eq.s32.totalorder %s45, 0
      %p706 = por %p704, %p705
      %p707 = scmp.ne.s32.totalorder %s693, %s694
      %p708 = scmp.eq.s32.totalorder %s46, 3
      %p709 = por %p707, %p708
      %p711 = scmp.ne.s32.totalorder %s694, %s710
      %p712 = scmp.eq.s32.totalorder %s46, 0
      %p713 = por %p711, %p712
      %p714 = scmp.le.s32.totalorder 1, %s40
      %p715 = scmp.lt.s32.totalorder %s40, 5
      %p716 = pnand %p714, %p715
      %p717 = pneg %p716
      // Predicated region
      $region9: #{tpu_custom_call.1} parent=5 // pred_check
        _
      $region10: #{tpu_custom_call.1} parent=5 // pred_check_branch
        %719 = sbr.rel (%p716) target = $region12
      $region11: #{tpu_custom_call.1} parent=5 // pred_region
        %s720 = ssub.s32 %s40, 1
        // Predicated region
        $region13: #{tpu_custom_call.1} parent=11 // pred_check
          %p721 = pneg %p181
        $region14: #{tpu_custom_call.1} parent=11 // pred_check_branch
          %723 = sbr.rel (%p721) target = $region16
        $region15: #{tpu_custom_call.1} parent=11 // pred_region
          _
        $region16: #{tpu_custom_call.1} parent=11 // pred_fallthru
          _
        // Predicated region
        $region17: #{tpu_custom_call.1} parent=11 // pred_check
          %p724 = pneg %p202
        $region18: #{tpu_custom_call.1} parent=11 // pred_check_branch
          %726 = sbr.rel (%p724) target = $region20
        $region19: #{tpu_custom_call.1} parent=11 // pred_region
          _
        $region20: #{tpu_custom_call.1} parent=11 // pred_fallthru
          _
        // Predicated region
        $region21: #{tpu_custom_call.1} parent=11 // pred_check
          %p727 = pneg %p223
        $region22: #{tpu_custom_call.1} parent=11 // pred_check_branch
          %729 = sbr.rel (%p727) target = $region24
        $region23: #{tpu_custom_call.1} parent=11 // pred_region
          %s731 = ssub.s32 512, 512
          %732 = vsyncadd [#allocation5], %s731
          %s733 = sshll.u32 [#allocation4], 4
          %s734 = int_to_ptr.vmem [resolvable:$true] %s733
          %739 = dma.hbm_to_vmem [thread:$0]  %s6, 512, %s734, [#allocation5], 128, 128, 8
        $region24: #{tpu_custom_call.1} parent=11 // pred_fallthru
          _
        // Predicated region
        $region25: #{tpu_custom_call.1} parent=11 // pred_check
          %p740 = pneg %p244
        $region26: #{tpu_custom_call.1} parent=11 // pred_check_branch
          %742 = sbr.rel (%p740) target = $region28
        $region27: #{tpu_custom_call.1} parent=11 // pred_region
          _
        $region28: #{tpu_custom_call.1} parent=11 // pred_fallthru
          _
        // Predicated region
        $region29: #{tpu_custom_call.1} parent=11 // pred_check
          %p743 = pneg %p265
        $region30: #{tpu_custom_call.1} parent=11 // pred_check_branch
          %745 = sbr.rel (%p743) target = $region32
        $region31: #{tpu_custom_call.1} parent=11 // pred_region
          %s747 = ssub.s32 512, 512
          %748 = vsyncadd [#allocation7], %s747
          %s749 = sshll.u32 [#allocation6], 4
          %s750 = int_to_ptr.vmem [resolvable:$true] %s749
          %755 = dma.hbm_to_vmem [thread:$0]  %s8, 512, %s750, [#allocation7], 128, 128, 8
        $region32: #{tpu_custom_call.1} parent=11 // pred_fallthru
          _
        // Predicated region
        $region33: #{tpu_custom_call.1} parent=11 // pred_check
          %p756 = pneg %p286
        $region34: #{tpu_custom_call.1} parent=11 // pred_check_branch
          %758 = sbr.rel (%p756) target = $region36
        $region35: #{tpu_custom_call.1} parent=11 // pred_region
          _
        $region36: #{tpu_custom_call.1} parent=11 // pred_fallthru
          _
        // Predicated region
        $region37: #{tpu_custom_call.1} parent=11 // pred_check
          %p759 = pneg %p307
        $region38: #{tpu_custom_call.1} parent=11 // pred_check_branch
          %761 = sbr.rel (%p759) target = $region40
        $region39: #{tpu_custom_call.1} parent=11 // pred_region
          _
        $region40: #{tpu_custom_call.1} parent=11 // pred_fallthru
          _
        // Predicated region
        $region41: #{tpu_custom_call.1} parent=11 // pred_check
          %p762 = pneg %p328
        $region42: #{tpu_custom_call.1} parent=11 // pred_check_branch
          %764 = sbr.rel (%p762) target = $region44
        $region43: #{tpu_custom_call.1} parent=11 // pred_region
          _
        $region44: #{tpu_custom_call.1} parent=11 // pred_fallthru
          _
        // Predicated region
        $region45: #{tpu_custom_call.1} parent=11 // pred_check
          %p765 = pneg %p349
        $region46: #{tpu_custom_call.1} parent=11 // pred_check_branch
          %767 = sbr.rel (%p765) target = $region48
        $region47: #{tpu_custom_call.1} parent=11 // pred_region
          _
        $region48: #{tpu_custom_call.1} parent=11 // pred_fallthru
          _
        // Predicated region
        $region49: #{tpu_custom_call.1} parent=11 // pred_check
          %p768 = pneg %p370
        $region50: #{tpu_custom_call.1} parent=11 // pred_check_branch
          %770 = sbr.rel (%p768) target = $region52
        $region51: #{tpu_custom_call.1} parent=11 // pred_region
          _
        $region52: #{tpu_custom_call.1} parent=11 // pred_fallthru
          _
        // Predicated region
        $region53: #{tpu_custom_call.1} parent=11 // pred_check
          %p771 = pneg %p391
        $region54: #{tpu_custom_call.1} parent=11 // pred_check_branch
          %773 = sbr.rel (%p771) target = $region56
        $region55: #{tpu_custom_call.1} parent=11 // pred_region
          _
        $region56: #{tpu_custom_call.1} parent=11 // pred_fallthru
          _
        // Predicated region
        $region57: #{tpu_custom_call.1} parent=11 // pred_check
          %p774 = pneg %p412
        $region58: #{tpu_custom_call.1} parent=11 // pred_check_branch
          %776 = sbr.rel (%p774) target = $region60
        $region59: #{tpu_custom_call.1} parent=11 // pred_region
          _
        $region60: #{tpu_custom_call.1} parent=11 // pred_fallthru
          _
        // Predicated region
        $region61: #{tpu_custom_call.1} parent=11 // pred_check
          %p777 = pneg %p433
        $region62: #{tpu_custom_call.1} parent=11 // pred_check_branch
          %779 = sbr.rel (%p777) target = $region64
        $region63: #{tpu_custom_call.1} parent=11 // pred_region
          _
        $region64: #{tpu_custom_call.1} parent=11 // pred_fallthru
          _
        // Predicated region
        $region65: #{tpu_custom_call.1} parent=11 // pred_check
          %p780 = pneg %p454
        $region66: #{tpu_custom_call.1} parent=11 // pred_check_branch
          %782 = sbr.rel (%p780) target = $region68
        $region67: #{tpu_custom_call.1} parent=11 // pred_region
          _
        $region68: #{tpu_custom_call.1} parent=11 // pred_fallthru
          _
        // Predicated region
        $region69: #{tpu_custom_call.1} parent=11 // pred_check
          %p783 = pneg %p475
        $region70: #{tpu_custom_call.1} parent=11 // pred_check_branch
          %785 = sbr.rel (%p783) target = $region72
        $region71: #{tpu_custom_call.1} parent=11 // pred_region
          _
        $region72: #{tpu_custom_call.1} parent=11 // pred_fallthru
          _
        // Predicated region
        $region73: #{tpu_custom_call.1} parent=11 // pred_check
          %p786 = pneg %p496
        $region74: #{tpu_custom_call.1} parent=11 // pred_check_branch
          %788 = sbr.rel (%p786) target = $region76
        $region75: #{tpu_custom_call.1} parent=11 // pred_region
          _
        $region76: #{tpu_custom_call.1} parent=11 // pred_fallthru
          _
        // Predicated region
        $region77: #{tpu_custom_call.1} parent=11 // pred_check
          %p789 = pneg %p517
        $region78: #{tpu_custom_call.1} parent=11 // pred_check_branch
          %791 = sbr.rel (%p789) target = $region80
        $region79: #{tpu_custom_call.1} parent=11 // pred_region
          _
        $region80: #{tpu_custom_call.1} parent=11 // pred_fallthru
          _
        // Predicated region
        $region81: #{tpu_custom_call.1} parent=11 // pred_check
          %p792 = pneg %p538
        $region82: #{tpu_custom_call.1} parent=11 // pred_check_branch
          %794 = sbr.rel (%p792) target = $region84
        $region83: #{tpu_custom_call.1} parent=11 // pred_region
          _
        $region84: #{tpu_custom_call.1} parent=11 // pred_fallthru
          _
      $region12: #{tpu_custom_call.1} parent=5 // pred_fallthru
        _
      %p795 = scmp.lt.s32.totalorder %s40, 4
      // Predicated region
      $region85: #{tpu_custom_call.1} parent=5 // pred_check
        %p796 = pneg %p795
      $region86: #{tpu_custom_call.1} parent=5 // pred_check_branch
        %798 = sbr.rel (%p796) target = $region88
      $region87: #{tpu_custom_call.1} parent=5 // pred_region
        // Predicated region
        $region89: #{tpu_custom_call.1} parent=87 // pred_check
          %p799 = pneg %p74
        $region90: #{tpu_custom_call.1} parent=87 // pred_check_branch
          %801 = sbr.rel (%p799) target = $region92
        $region91: #{tpu_custom_call.1} parent=87 // pred_region
          %p802 = scmp.lt.s32.totalorder %s47, 1
          %s803 = scalar_select %p802, %s47, 1
          %p804 = scmp.lt.s32.totalorder %s48, 1
          %s805 = scalar_select %p804, %s48, 1
          %s806 = smul.addr %s805, 2
          %s807 = smul.addr %s803, 4
          %s808 = sadd.s32 %s806, %s807
          %s809 = smul.addr %s808, 8
          %s810 = scalar_lea.vmem %s0, %s809
        $region92: #{tpu_custom_call.1} parent=87 // pred_fallthru
          _
        // Predicated region
        $region93: #{tpu_custom_call.1} parent=87 // pred_check
          %p811 = pneg %p102
        $region94: #{tpu_custom_call.1} parent=87 // pred_check_branch
          %813 = sbr.rel (%p811) target = $region96
        $region95: #{tpu_custom_call.1} parent=87 // pred_region
          %p814 = scmp.lt.s32.totalorder %s47, 1
          %s815 = scalar_select %p814, %s47, 1
          %p816 = scmp.lt.s32.totalorder %s48, 1
          %s817 = scalar_select %p816, %s48, 1
          %s818 = smul.addr %s817, 3
          %s819 = smul.addr %s815, 6
          %s820 = sadd.s32 %s818, %s819
          %s821 = smul.addr %s820, 8
          %s822 = scalar_lea.vmem %s1, %s821
        $region96: #{tpu_custom_call.1} parent=87 // pred_fallthru
          _
        // Predicated region
        $region97: #{tpu_custom_call.1} parent=87 // pred_check
          %p823 = pneg %p128
        $region98: #{tpu_custom_call.1} parent=87 // pred_check_branch
          %825 = sbr.rel (%p823) target = $region100
        $region99: #{tpu_custom_call.1} parent=87 // pred_region
          %p826 = scmp.lt.s32.totalorder %s48, 1
          %s827 = scalar_select %p826, %s48, 1
          %s828 = smul.addr %s827, 2
          %s829 = smul.addr %s828, 8
          %s830 = scalar_lea.vmem %s2, %s829
        $region100: #{tpu_custom_call.1} parent=87 // pred_fallthru
          _
        // Predicated region
        $region101: #{tpu_custom_call.1} parent=87 // pred_check
          %p831 = pneg %p154
        $region102: #{tpu_custom_call.1} parent=87 // pred_check_branch
          %833 = sbr.rel (%p831) target = $region104
        $region103: #{tpu_custom_call.1} parent=87 // pred_region
          %p834 = scmp.lt.s32.totalorder %s48, 1
          %s835 = scalar_select %p834, %s48, 1
          %s836 = smul.addr %s835, 3
          %s837 = smul.addr %s836, 8
          %s838 = scalar_lea.vmem %s3, %s837
        $region104: #{tpu_custom_call.1} parent=87 // pred_fallthru
          _
      $region88: #{tpu_custom_call.1} parent=5 // pred_fallthru
        _
      %p839 = scmp.le.s32.totalorder 1, %s40
      %p840 = scmp.lt.s32.totalorder %s40, 5
      %p841 = pnand %p839, %p840
      %p842 = pneg %p841
      // Predicated region
      $region105: #{tpu_custom_call.1} parent=5 // pred_check
        _
      $region106: #{tpu_custom_call.1} parent=5 // pred_check_branch
        %844 = sbr.rel (%p841) target = $region108
      $region107: #{tpu_custom_call.1} parent=5 // pred_region
        %s845 = ssub.s32 %s40, 1
        // Predicated region
        $region109: #{tpu_custom_call.1} parent=107 // pred_check
          %p846 = pneg %p223
        $region110: #{tpu_custom_call.1} parent=107 // pred_check_branch
          %848 = sbr.rel (%p846) target = $region112
        $region111: #{tpu_custom_call.1} parent=107 // pred_region
          %849 = dma.done [#allocation5], 512
        $region112: #{tpu_custom_call.1} parent=107 // pred_fallthru
          _
        // Predicated region
        $region113: #{tpu_custom_call.1} parent=107 // pred_check
          %p850 = pneg %p265
        $region114: #{tpu_custom_call.1} parent=107 // pred_check_branch
          %852 = sbr.rel (%p850) target = $region116
        $region115: #{tpu_custom_call.1} parent=107 // pred_region
          %853 = dma.done [#allocation7], 512
        $region116: #{tpu_custom_call.1} parent=107 // pred_fallthru
          _
        %p854 = scmp.lt.s32.totalorder %s49, 1
        %s855 = scalar_select %p854, %s49, 1
        %p856 = scmp.lt.s32.totalorder %s50, 1
        %s857 = scalar_select %p856, %s50, 1
        %s858 = smul.addr %s857, 2
        %s859 = smul.addr %s855, 4
        %s860 = sadd.s32 %s858, %s859
        %s861 = smul.addr %s860, 8
        %s862 = scalar_lea.vmem %s0, %s861
        %p863 = pneg %p80
        %p864 = pneg %p77
        %p865 = scmp.lt.s32.totalorder %s49, 1
        %s866 = scalar_select %p865, %s49, 1
        %p867 = scmp.lt.s32.totalorder %s50, 1
        %s868 = scalar_select %p867, %s50, 1
        %s869 = smul.addr %s868, 3
        %s870 = smul.addr %s866, 6
        %s871 = sadd.s32 %s869, %s870
        %s872 = smul.addr %s871, 8
        %s873 = scalar_lea.vmem %s1, %s872
        %p874 = pneg %p108
        %p875 = pneg %p105
        %p876 = scmp.lt.s32.totalorder %s50, 1
        %s877 = scalar_select %p876, %s50, 1
        %s878 = smul.addr %s877, 2
        %s879 = smul.addr %s878, 8
        %s880 = scalar_lea.vmem %s2, %s879
        %p881 = pneg %p134
        %p882 = pneg %p131
        %p883 = scmp.lt.s32.totalorder %s50, 1
        %s884 = scalar_select %p883, %s50, 1
        %s885 = smul.addr %s884, 3
        %s886 = smul.addr %s885, 8
        %s887 = scalar_lea.vmem %s3, %s886
        %p888 = pneg %p160
        %p889 = pneg %p157
        %p890 = pneg %p181
        %p891 = pneg %p178
        %p892 = pneg %p202
        %p893 = pneg %p199
        %p894 = pneg %p223
        %p895 = pneg %p220
        %p896 = pneg %p244
        %p897 = pneg %p241
        %p898 = pneg %p265
        %p899 = pneg %p262
        %p900 = pneg %p286
        %p901 = pneg %p283
        %p902 = pneg %p307
        %p903 = pneg %p304
        %p904 = pneg %p328
        %p905 = pneg %p325
        %p906 = pneg %p349
        %p907 = pneg %p346
        %p908 = pneg %p370
        %p909 = pneg %p367
        %p910 = pneg %p391
        %p911 = pneg %p388
        %p912 = pneg %p412
        %p913 = pneg %p409
        %p914 = pneg %p433
        %p915 = pneg %p430
        %p916 = pneg %p454
        %p917 = pneg %p451
        %p918 = pneg %p475
        %p919 = pneg %p472
        %p920 = pneg %p496
        %p921 = pneg %p493
        %p922 = pneg %p517
        %p923 = pneg %p514
        %p924 = pneg %p538
        %p925 = pneg %p535
        %p926 = pneg %p566
        %p927 = pneg %p563
        %p928 = scmp.lt.s32.totalorder %s49, 1
        %s929 = scalar_select %p928, %s49, 1
        %p930 = scmp.lt.s32.totalorder %s50, 1
        %s931 = scalar_select %p930, %s50, 1
        %s932 = smul.addr %s931, 2
        %s933 = smul.addr %s929, 4
        %s934 = sadd.s32 %s932, %s933
        %s935 = smul.addr %s934, 8
        %s936 = scalar_lea.vmem %s22, %s935
        %p937 = pneg %p594
        %p938 = pneg %p591
        %p939 = scmp.lt.s32.totalorder %s49, 1
        %s940 = scalar_select %p939, %s49, 1
        %p941 = scmp.lt.s32.totalorder %s50, 1
        %s942 = scalar_select %p941, %s50, 1
        %s943 = smul.addr %s942, 2
        %s944 = smul.addr %s940, 4
        %s945 = sadd.s32 %s943, %s944
        %s946 = smul.addr %s945, 8
        %s947 = scalar_lea.vmem %s23, %s946
        %p948 = pneg %p622
        %p949 = pneg %p619
        %p950 = scmp.lt.s32.totalorder %s49, 1
        %s951 = scalar_select %p950, %s49, 1
        %p952 = scmp.lt.s32.totalorder %s50, 1
        %s953 = scalar_select %p952, %s50, 1
        %s954 = smul.addr %s953, 2
        %s955 = smul.addr %s951, 4
        %s956 = sadd.s32 %s954, %s955
        %s957 = smul.addr %s956, 8
        %s958 = scalar_lea.vmem %s24, %s957
        %p959 = pneg %p650
        %p960 = pneg %p647
        %p961 = scmp.lt.s32.totalorder %s49, 1
        %s962 = scalar_select %p961, %s49, 1
        %p963 = scmp.lt.s32.totalorder %s50, 1
        %s964 = scalar_select %p963, %s50, 1
        %s965 = smul.addr %s964, 3
        %s966 = smul.addr %s962, 6
        %s967 = sadd.s32 %s965, %s966
        %s968 = smul.addr %s967, 8
        %s969 = scalar_lea.vmem %s25, %s968
        %p970 = pneg %p678
        %p971 = pneg %p675
        %p972 = scmp.lt.s32.totalorder %s49, 1
        %s973 = scalar_select %p972, %s49, 1
        %p974 = scmp.lt.s32.totalorder %s50, 1
        %s975 = scalar_select %p974, %s50, 1
        %s976 = smul.addr %s975, 3
        %s977 = smul.addr %s973, 6
        %s978 = sadd.s32 %s976, %s977
        %s979 = smul.addr %s978, 8
        %s980 = scalar_lea.vmem %s26, %s979
        %p981 = pneg %p706
        %p982 = pneg %p703
        %p983 = scmp.lt.s32.totalorder %s49, 1
        %s984 = scalar_select %p983, %s49, 1
        %p985 = scmp.lt.s32.totalorder %s50, 1
        %s986 = scalar_select %p985, %s50, 1
        %s987 = smul.addr %s986, 3
        %s988 = smul.addr %s984, 6
        %s989 = sadd.s32 %s987, %s988
        %s990 = smul.addr %s989, 8
        %s991 = scalar_lea.vmem %s27, %s990
        %p992 = scmp.lt.s32.totalorder %s49, 1
        %s993 = scalar_select %p992, %s49, 1
        %p994 = scmp.lt.s32.totalorder %s50, 1
        %s995 = scalar_select %p994, %s50, 1
        %s996 = smul.addr %s995, 2
        %s997 = smul.addr %s993, 4
        %s998 = sadd.s32 %s996, %s997
        %s999 = smul.addr %s998, 8
        %s1000 = scalar_lea.vmem %s0, %s999
        %p1001 = scmp.lt.s32.totalorder %s49, 1
        %s1002 = scalar_select %p1001, %s49, 1
        %p1003 = scmp.lt.s32.totalorder %s50, 1
        %s1004 = scalar_select %p1003, %s50, 1
        %s1005 = smul.addr %s1004, 3
        %s1006 = smul.addr %s1002, 6
        %s1007 = sadd.s32 %s1005, %s1006
        %s1008 = smul.addr %s1007, 8
        %s1009 = scalar_lea.vmem %s1, %s1008
        %p1010 = scmp.lt.s32.totalorder %s50, 1
        %s1011 = scalar_select %p1010, %s50, 1
        %s1012 = smul.addr %s1011, 2
        %s1013 = smul.addr %s1012, 8
        %s1014 = scalar_lea.vmem %s2, %s1013
        %p1015 = scmp.lt.s32.totalorder %s50, 1
        %s1016 = scalar_select %p1015, %s50, 1
        %s1017 = smul.addr %s1016, 3
        %s1018 = smul.addr %s1017, 8
        %s1019 = scalar_lea.vmem %s3, %s1018
        %p1020 = scmp.lt.s32.totalorder %s49, 1
        %s1021 = scalar_select %p1020, %s49, 1
        %p1022 = scmp.lt.s32.totalorder %s50, 1
        %s1023 = scalar_select %p1022, %s50, 1
        %s1024 = smul.addr %s1023, 2
        %s1025 = smul.addr %s1021, 4
        %s1026 = sadd.s32 %s1024, %s1025
        %s1027 = smul.addr %s1026, 8
        %s1028 = scalar_lea.vmem %s22, %s1027
        %p1029 = scmp.lt.s32.totalorder %s49, 1
        %s1030 = scalar_select %p1029, %s49, 1
        %p1031 = scmp.lt.s32.totalorder %s50, 1
        %s1032 = scalar_select %p1031, %s50, 1
        %s1033 = smul.addr %s1032, 2
        %s1034 = smul.addr %s1030, 4
        %s1035 = sadd.s32 %s1033, %s1034
        %s1036 = smul.addr %s1035, 8
        %s1037 = scalar_lea.vmem %s23, %s1036
        %p1038 = scmp.lt.s32.totalorder %s49, 1
        %s1039 = scalar_select %p1038, %s49, 1
        %p1040 = scmp.lt.s32.totalorder %s50, 1
        %s1041 = scalar_select %p1040, %s50, 1
        %s1042 = smul.addr %s1041, 2
        %s1043 = smul.addr %s1039, 4
        %s1044 = sadd.s32 %s1042, %s1043
        %s1045 = smul.addr %s1044, 8
        %s1046 = scalar_lea.vmem %s24, %s1045
        %p1047 = scmp.lt.s32.totalorder %s49, 1
        %s1048 = scalar_select %p1047, %s49, 1
        %p1049 = scmp.lt.s32.totalorder %s50, 1
        %s1050 = scalar_select %p1049, %s50, 1
        %s1051 = smul.addr %s1050, 3
        %s1052 = smul.addr %s1048, 6
        %s1053 = sadd.s32 %s1051, %s1052
        %s1054 = smul.addr %s1053, 8
        %s1055 = scalar_lea.vmem %s25, %s1054
        %p1056 = scmp.lt.s32.totalorder %s49, 1
        %s1057 = scalar_select %p1056, %s49, 1
        %p1058 = scmp.lt.s32.totalorder %s50, 1
        %s1059 = scalar_select %p1058, %s50, 1
        %s1060 = smul.addr %s1059, 3
        %s1061 = smul.addr %s1057, 6
        %s1062 = sadd.s32 %s1060, %s1061
        %s1063 = smul.addr %s1062, 8
        %s1064 = scalar_lea.vmem %s26, %s1063
        %p1065 = scmp.lt.s32.totalorder %s49, 1
        %s1066 = scalar_select %p1065, %s49, 1
        %p1067 = scmp.lt.s32.totalorder %s50, 1
        %s1068 = scalar_select %p1067, %s50, 1
        %s1069 = smul.addr %s1068, 3
        %s1070 = smul.addr %s1066, 6
        %s1071 = sadd.s32 %s1069, %s1070
        %s1072 = smul.addr %s1071, 8
        %s1073 = scalar_lea.vmem %s27, %s1072
        %v1074 = vld [vmem:[%s1000] sm:$0xff]
        %v1075 = vld [vmem:[%s1000 + $0x8] sm:$0xff]
        %v1076 = vld [vmem:[%s1009] sm:$0xff]
        %v1077 = vld [vmem:[%s1009 + $0x8] sm:$0xff]
        %v1078 = vld [vmem:[%s1009 + $0x10] sm:$0xff]
        %v1079 = vld [vmem:[%s1014] sm:$0xff]
        %v1080 = vld [vmem:[%s1014 + $0x8] sm:$0xff]
        %v1081 = vld [vmem:[%s1019] sm:$0xff]
        %v1082 = vld [vmem:[%s1019 + $0x8] sm:$0xff]
        %v1083 = vld [vmem:[%s1019 + $0x10] sm:$0xff]
        %v1084 = vld [vmem:[%s4] sm:$0xff]
        %v1085 = vld [vmem:[%s4 + $0x8] sm:$0xff]
        %v1086 = vld [vmem:[%s4 + $0x10] sm:$0xff]
        %v1087 = vld [vmem:[%s4 + $0x18] sm:$0xff]
        %v1088 = vld [vmem:[%s5] sm:$0x1]
        %v1089 = vld [vmem:[#allocation4] sm:$0xff]
        %v1090 = vld [vmem:[#allocation4 + $0x8] sm:$0xff]
        %v1091 = vld [vmem:[#allocation4 + $0x10] sm:$0xff]
        %v1092 = vld [vmem:[#allocation4 + $0x18] sm:$0xff]
        %v1093 = vld [vmem:[%s7] sm:$0x1]
        %v1095 = vlaneseq
        %v1096 = vshrl.u32 %v1095, 7
        %v1097 = vsub.s32 0, %v1096
        %v1098 = vrot.slane %v1088, %v1097
        %vm1100 = vcmask 261120
        %v1102 = vsel %vm1100, %v1074, 0
        %v1105 = vsel %vm1100, %v1075, 0
        %1107 = vmatprep.subr.mxu0 0.0
        %1108 = vmatpush1.msra.mxu0 %v1084
        %1109 = vmatprep.subr.mxu0 0.0
        %1110 = vmatpush1.msra.mxu0 %v1085
        %1111 = vmatprep.subr.mxu0 0.0
        %1112 = vmatpush1.msra.mxu0 %v1086
        %1113 = vmatprep.subr.mxu0 0.0
        %1114 = vmatpush1.msra.mxu0 %v1087
        %1115 = vmatprep.subr.mxu0 0.0
        %1116 = vmatpush1.msra.mxu0 0.0
        %1117 = vmatprep.subr.mxu0 0.0
        %1118 = vmatpush1.msra.mxu0 0.0
        %1119 = vmatprep.subr.mxu0 0.0
        %1120 = vmatpush1.msra.mxu0 0.0
        %1121 = vmatprep.subr.mxu0 0.0
        %1122 = vmatpush1.msra.mxu0 0.0
        %1123 = vmatprep.subr.mxu0 0.0
        %1124 = vmatpush1.msra.mxu0 0.0
        %1125 = vmatprep.subr.mxu0 0.0
        %1126 = vmatpush1.msra.mxu0 0.0
        %1127 = vmatprep.subr.mxu0 0.0
        %1128 = vmatpush1.msra.mxu0 0.0
        %1129 = vmatprep.subr.mxu0 0.0
        %1130 = vmatpush1.msra.mxu0 0.0
        %1131 = vmatprep.subr.mxu0 0.0
        %1132 = vmatpush1.msra.mxu0 0.0
        %1133 = vmatprep.subr.mxu0 0.0
        %1134 = vmatpush1.msra.mxu0 0.0
        %1135 = vmatprep.subr.mxu0 0.0
        %1136 = vmatpush1.msra.mxu0 0.0
        %1137 = vmatprep.subr.mxu0 0.0
        %1138 = vmatpush1.msra.mxu0 0.0
        %1139 = vmatprep.subr.mxu0 0.0
        %1140 = vmatpush1.msra.mxu0 0.0
        %1141 = vmatprep.subr.mxu0 0.0
        %1142 = vmatpush1.msra.mxu0 0.0
        %1143 = vmatprep.subr.mxu0 0.0
        %1144 = vmatpush1.msra.mxu0 0.0
        %1145 = vmatprep.subr.mxu0 0.0
        %1146 = vmatpush1.msra.mxu0 0.0
        %1147 = vmatprep.subr.mxu0 0.0
        %1148 = vmatpush1.msra.mxu0 0.0
        %1149 = vmatprep.subr.mxu0 0.0
        %1150 = vmatpush1.msra.mxu0 0.0
        %1151 = vmatprep.subr.mxu0 0.0
        %1152 = vmatpush1.msra.mxu0 0.0
        %1153 = vmatprep.subr.mxu0 0.0
        %1154 = vmatpush1.msra.mxu0 0.0
        %1155 = vmatprep.subr.mxu0 0.0
        %1156 = vmatpush1.msra.mxu0 0.0
        %1157 = vmatprep.subr.mxu0 0.0
        %1158 = vmatpush1.msra.mxu0 0.0
        %1159 = vmatprep.subr.mxu0 0.0
        %1160 = vmatpush1.msra.mxu0 0.0
        %1161 = vmatprep.subr.mxu0 0.0
        %1162 = vmatpush1.msra.mxu0 0.0
        %1163 = vmatprep.subr.mxu0 0.0
        %1164 = vmatpush1.msra.mxu0 0.0
        %1165 = vmatprep.subr.mxu0 0.0
        %1166 = vmatpush1.msra.mxu0 0.0
        %1167 = vmatprep.subr.mxu0 0.0
        %1168 = vmatpush1.msra.mxu0 0.0
        %1169 = vmatprep.subr.mxu0 0.0
        %1170 = vmatpush1.msra.mxu0 0.0
        %1171 = vmatprep.mubr.f32.mxu0 0.0
        %1172 = vmatmul.mubr.f32.gmra.mrb[0].mxu0 %v1102
        %v1173 = vpop.f32.mrb[0].mxu0
        %v1174 = vadd.f32 %v1098, %v1173
        %v1175 = vpop.f32.mrb[0].mxu0
        %1176 = vmatprep.mubr.f32.mxu0 0.0
        %1177 = vmatmul.mubr.f32.gmra.mrb[0].mxu0 %v1105
        %v1178 = vpop.f32.mrb[0].mxu0
        %v1179 = vadd.f32 %v1098, %v1178
        %v1180 = vpop.f32.mrb[0].mxu0
        %1181 = vdwg.mxu0
        %v1182 = vmul.f32 %v1174, 0.17677669
        %v1183 = vmul.f32 %v1179, 0.17677669
        %v1185 = vsel %vm1100, %v1076, 0
        %v1188 = vsel %vm1100, %v1077, 0
        %v1191 = vsel %vm1100, %v1078, 0
        %1193 = vmatprep.subr.mxu0 0.0
        %1194 = vmatpush1.msra.mxu0 %v1084
        %1195 = vmatprep.subr.mxu0 0.0
        %1196 = vmatpush1.msra.mxu0 %v1085
        %1197 = vmatprep.subr.mxu0 0.0
        %1198 = vmatpush1.msra.mxu0 %v1086
        %1199 = vmatprep.subr.mxu0 0.0
        %1200 = vmatpush1.msra.mxu0 %v1087
        %1201 = vmatprep.subr.mxu0 0.0
        %1202 = vmatpush1.msra.mxu0 0.0
        %1203 = vmatprep.subr.mxu0 0.0
        %1204 = vmatpush1.msra.mxu0 0.0
        %1205 = vmatprep.subr.mxu0 0.0
        %1206 = vmatpush1.msra.mxu0 0.0
        %1207 = vmatprep.subr.mxu0 0.0
        %1208 = vmatpush1.msra.mxu0 0.0
        %1209 = vmatprep.subr.mxu0 0.0
        %1210 = vmatpush1.msra.mxu0 0.0
        %1211 = vmatprep.subr.mxu0 0.0
        %1212 = vmatpush1.msra.mxu0 0.0
        %1213 = vmatprep.subr.mxu0 0.0
        %1214 = vmatpush1.msra.mxu0 0.0
        %1215 = vmatprep.subr.mxu0 0.0
        %1216 = vmatpush1.msra.mxu0 0.0
        %1217 = vmatprep.subr.mxu0 0.0
        %1218 = vmatpush1.msra.mxu0 0.0
        %1219 = vmatprep.subr.mxu0 0.0
        %1220 = vmatpush1.msra.mxu0 0.0
        %1221 = vmatprep.subr.mxu0 0.0
        %1222 = vmatpush1.msra.mxu0 0.0
        %1223 = vmatprep.subr.mxu0 0.0
        %1224 = vmatpush1.msra.mxu0 0.0
        %1225 = vmatprep.subr.mxu0 0.0
        %1226 = vmatpush1.msra.mxu0 0.0
        %1227 = vmatprep.subr.mxu0 0.0
        %1228 = vmatpush1.msra.mxu0 0.0
        %1229 = vmatprep.subr.mxu0 0.0
        %1230 = vmatpush1.msra.mxu0 0.0
        %1231 = vmatprep.subr.mxu0 0.0
        %1232 = vmatpush1.msra.mxu0 0.0
        %1233 = vmatprep.subr.mxu0 0.0
        %1234 = vmatpush1.msra.mxu0 0.0
        %1235 = vmatprep.subr.mxu0 0.0
        %1236 = vmatpush1.msra.mxu0 0.0
        %1237 = vmatprep.subr.mxu0 0.0
        %1238 = vmatpush1.msra.mxu0 0.0
        %1239 = vmatprep.subr.mxu0 0.0
        %1240 = vmatpush1.msra.mxu0 0.0
        %1241 = vmatprep.subr.mxu0 0.0
        %1242 = vmatpush1.msra.mxu0 0.0
        %1243 = vmatprep.subr.mxu0 0.0
        %1244 = vmatpush1.msra.mxu0 0.0
        %1245 = vmatprep.subr.mxu0 0.0
        %1246 = vmatpush1.msra.mxu0 0.0
        %1247 = vmatprep.subr.mxu0 0.0
        %1248 = vmatpush1.msra.mxu0 0.0
        %1249 = vmatprep.subr.mxu0 0.0
        %1250 = vmatpush1.msra.mxu0 0.0
        %1251 = vmatprep.subr.mxu0 0.0
        %1252 = vmatpush1.msra.mxu0 0.0
        %1253 = vmatprep.subr.mxu0 0.0
        %1254 = vmatpush1.msra.mxu0 0.0
        %1255 = vmatprep.subr.mxu0 0.0
        %1256 = vmatpush1.msra.mxu0 0.0
        %1257 = vmatprep.mubr.f32.mxu0 0.0
        %1258 = vmatmul.mubr.f32.gmra.mrb[0].mxu0 %v1185
        %v1259 = vpop.f32.mrb[0].mxu0
        %v1260 = vadd.f32 %v1098, %v1259
        %v1261 = vpop.f32.mrb[0].mxu0
        %1262 = vmatprep.mubr.f32.mxu0 0.0
        %1263 = vmatmul.mubr.f32.gmra.mrb[0].mxu0 %v1188
        %v1264 = vpop.f32.mrb[0].mxu0
        %v1265 = vadd.f32 %v1098, %v1264
        %v1266 = vpop.f32.mrb[0].mxu0
        %1267 = vmatprep.mubr.f32.mxu0 0.0
        %1268 = vmatmul.mubr.f32.gmra.mrb[0].mxu0 %v1191
        %v1269 = vpop.f32.mrb[0].mxu0
        %v1270 = vadd.f32 %v1098, %v1269
        %v1271 = vpop.f32.mrb[0].mxu0
        %1272 = vdwg.mxu0
        %v1273 = vmul.f32 %v1260, 0.17677669
        %v1274 = vmul.f32 %v1265, 0.17677669
        %v1275 = vmul.f32 %v1270, 0.17677669
        %v1277 = vlaneseq
        %v1278 = vshrl.u32 %v1277, 7
        %v1279 = vsub.s32 0, %v1278
        %v1280 = vrot.slane %v1093, %v1279
        %1282 = vmatprep.subr.mxu0 0.0
        %1283 = vmatpush1.msra.mxu0 %v1089
        %1284 = vmatprep.subr.mxu0 0.0
        %1285 = vmatpush1.msra.mxu0 %v1090
        %1286 = vmatprep.subr.mxu0 0.0
        %1287 = vmatpush1.msra.mxu0 %v1091
        %1288 = vmatprep.subr.mxu0 0.0
        %1289 = vmatpush1.msra.mxu0 %v1092
        %1290 = vmatprep.subr.mxu0 0.0
        %1291 = vmatpush1.msra.mxu0 0.0
        %1292 = vmatprep.subr.mxu0 0.0
        %1293 = vmatpush1.msra.mxu0 0.0
        %1294 = vmatprep.subr.mxu0 0.0
        %1295 = vmatpush1.msra.mxu0 0.0
        %1296 = vmatprep.subr.mxu0 0.0
        %1297 = vmatpush1.msra.mxu0 0.0
        %1298 = vmatprep.subr.mxu0 0.0
        %1299 = vmatpush1.msra.mxu0 0.0
        %1300 = vmatprep.subr.mxu0 0.0
        %1301 = vmatpush1.msra.mxu0 0.0
        %1302 = vmatprep.subr.mxu0 0.0
        %1303 = vmatpush1.msra.mxu0 0.0
        %1304 = vmatprep.subr.mxu0 0.0
        %1305 = vmatpush1.msra.mxu0 0.0
        %1306 = vmatprep.subr.mxu0 0.0
        %1307 = vmatpush1.msra.mxu0 0.0
        %1308 = vmatprep.subr.mxu0 0.0
        %1309 = vmatpush1.msra.mxu0 0.0
        %1310 = vmatprep.subr.mxu0 0.0
        %1311 = vmatpush1.msra.mxu0 0.0
        %1312 = vmatprep.subr.mxu0 0.0
        %1313 = vmatpush1.msra.mxu0 0.0
        %1314 = vmatprep.subr.mxu0 0.0
        %1315 = vmatpush1.msra.mxu0 0.0
        %1316 = vmatprep.subr.mxu0 0.0
        %1317 = vmatpush1.msra.mxu0 0.0
        %1318 = vmatprep.subr.mxu0 0.0
        %1319 = vmatpush1.msra.mxu0 0.0
        %1320 = vmatprep.subr.mxu0 0.0
        %1321 = vmatpush1.msra.mxu0 0.0
        %1322 = vmatprep.subr.mxu0 0.0
        %1323 = vmatpush1.msra.mxu0 0.0
        %1324 = vmatprep.subr.mxu0 0.0
        %1325 = vmatpush1.msra.mxu0 0.0
        %1326 = vmatprep.subr.mxu0 0.0
        %1327 = vmatpush1.msra.mxu0 0.0
        %1328 = vmatprep.subr.mxu0 0.0
        %1329 = vmatpush1.msra.mxu0 0.0
        %1330 = vmatprep.subr.mxu0 0.0
        %1331 = vmatpush1.msra.mxu0 0.0
        %1332 = vmatprep.subr.mxu0 0.0
        %1333 = vmatpush1.msra.mxu0 0.0
        %1334 = vmatprep.subr.mxu0 0.0
        %1335 = vmatpush1.msra.mxu0 0.0
        %1336 = vmatprep.subr.mxu0 0.0
        %1337 = vmatpush1.msra.mxu0 0.0
        %1338 = vmatprep.subr.mxu0 0.0
        %1339 = vmatpush1.msra.mxu0 0.0
        %1340 = vmatprep.subr.mxu0 0.0
        %1341 = vmatpush1.msra.mxu0 0.0
        %1342 = vmatprep.subr.mxu0 0.0
        %1343 = vmatpush1.msra.mxu0 0.0
        %1344 = vmatprep.subr.mxu0 0.0
        %1345 = vmatpush1.msra.mxu0 0.0
        %1346 = vmatprep.mubr.f32.mxu0 0.0
        %1347 = vmatmul.mubr.f32.gmra.mrb[0].mxu0 %v1102
        %v1348 = vpop.f32.mrb[0].mxu0
        %v1349 = vadd.f32 %v1280, %v1348
        %v1350 = vpop.f32.mrb[0].mxu0
        %1351 = vmatprep.mubr.f32.mxu0 0.0
        %1352 = vmatmul.mubr.f32.gmra.mrb[0].mxu0 %v1105
        %v1353 = vpop.f32.mrb[0].mxu0
        %v1354 = vadd.f32 %v1280, %v1353
        %v1355 = vpop.f32.mrb[0].mxu0
        %1356 = vdwg.mxu0
        %1357 = vmatprep.subr.mxu0 0.0
        %1358 = vmatpush1.msra.mxu0 %v1089
        %1359 = vmatprep.subr.mxu0 0.0
        %1360 = vmatpush1.msra.mxu0 %v1090
        %1361 = vmatprep.subr.mxu0 0.0
        %1362 = vmatpush1.msra.mxu0 %v1091
        %1363 = vmatprep.subr.mxu0 0.0
        %1364 = vmatpush1.msra.mxu0 %v1092
        %1365 = vmatprep.subr.mxu0 0.0
        %1366 = vmatpush1.msra.mxu0 0.0
        %1367 = vmatprep.subr.mxu0 0.0
        %1368 = vmatpush1.msra.mxu0 0.0
        %1369 = vmatprep.subr.mxu0 0.0
        %1370 = vmatpush1.msra.mxu0 0.0
        %1371 = vmatprep.subr.mxu0 0.0
        %1372 = vmatpush1.msra.mxu0 0.0
        %1373 = vmatprep.subr.mxu0 0.0
        %1374 = vmatpush1.msra.mxu0 0.0
        %1375 = vmatprep.subr.mxu0 0.0
        %1376 = vmatpush1.msra.mxu0 0.0
        %1377 = vmatprep.subr.mxu0 0.0
        %1378 = vmatpush1.msra.mxu0 0.0
        %1379 = vmatprep.subr.mxu0 0.0
        %1380 = vmatpush1.msra.mxu0 0.0
        %1381 = vmatprep.subr.mxu0 0.0
        %1382 = vmatpush1.msra.mxu0 0.0
        %1383 = vmatprep.subr.mxu0 0.0
        %1384 = vmatpush1.msra.mxu0 0.0
        %1385 = vmatprep.subr.mxu0 0.0
        %1386 = vmatpush1.msra.mxu0 0.0
        %1387 = vmatprep.subr.mxu0 0.0
        %1388 = vmatpush1.msra.mxu0 0.0
        %1389 = vmatprep.subr.mxu0 0.0
        %1390 = vmatpush1.msra.mxu0 0.0
        %1391 = vmatprep.subr.mxu0 0.0
        %1392 = vmatpush1.msra.mxu0 0.0
        %1393 = vmatprep.subr.mxu0 0.0
        %1394 = vmatpush1.msra.mxu0 0.0
        %1395 = vmatprep.subr.mxu0 0.0
        %1396 = vmatpush1.msra.mxu0 0.0
        %1397 = vmatprep.subr.mxu0 0.0
        %1398 = vmatpush1.msra.mxu0 0.0
        %1399 = vmatprep.subr.mxu0 0.0
        %1400 = vmatpush1.msra.mxu0 0.0
        %1401 = vmatprep.subr.mxu0 0.0
        %1402 = vmatpush1.msra.mxu0 0.0
        %1403 = vmatprep.subr.mxu0 0.0
        %1404 = vmatpush1.msra.mxu0 0.0
        %1405 = vmatprep.subr.mxu0 0.0
        %1406 = vmatpush1.msra.mxu0 0.0
        %1407 = vmatprep.subr.mxu0 0.0
        %1408 = vmatpush1.msra.mxu0 0.0
        %1409 = vmatprep.subr.mxu0 0.0
        %1410 = vmatpush1.msra.mxu0 0.0
        %1411 = vmatprep.subr.mxu0 0.0
        %1412 = vmatpush1.msra.mxu0 0.0
        %1413 = vmatprep.subr.mxu0 0.0
        %1414 = vmatpush1.msra.mxu0 0.0
        %1415 = vmatprep.subr.mxu0 0.0
        %1416 = vmatpush1.msra.mxu0 0.0
        %1417 = vmatprep.subr.mxu0 0.0
        %1418 = vmatpush1.msra.mxu0 0.0
        %1419 = vmatprep.subr.mxu0 0.0
        %1420 = vmatpush1.msra.mxu0 0.0
        %1421 = vmatprep.mubr.f32.mxu0 0.0
        %1422 = vmatmul.mubr.f32.gmra.mrb[0].mxu0 %v1185
        %v1423 = vpop.f32.mrb[0].mxu0
        %v1424 = vadd.f32 %v1280, %v1423
        %v1425 = vpop.f32.mrb[0].mxu0
        %1426 = vmatprep.mubr.f32.mxu0 0.0
        %1427 = vmatmul.mubr.f32.gmra.mrb[0].mxu0 %v1188
        %v1428 = vpop.f32.mrb[0].mxu0
        %v1429 = vadd.f32 %v1280, %v1428
        %v1430 = vpop.f32.mrb[0].mxu0
        %1431 = vmatprep.mubr.f32.mxu0 0.0
        %1432 = vmatmul.mubr.f32.gmra.mrb[0].mxu0 %v1191
        %v1433 = vpop.f32.mrb[0].mxu0
        %v1434 = vadd.f32 %v1280, %v1433
        %v1435 = vpop.f32.mrb[0].mxu0
        %1436 = vdwg.mxu0
        %v1438 = vsel %vm1100, %v1182, 0
        %v1441 = vsel %vm1100, %v1183, 0
        %v1444 = vsel %vm1100, %v1424, 0
        %v1447 = vsel %vm1100, %v1429, 0
        %v1450 = vsel %vm1100, %v1434, 0
        %1452 = vmatprep.subr.mxu0 0.0
        %1453 = vmatpush1.xpose.msra.mxu0 %v1444
        %1454 = vmatprep.subr.mxu0 0.0
        %1455 = vmatpush1.xpose.msra.mxu0 %v1447
        %1456 = vmatprep.subr.mxu0 0.0
        %1457 = vmatpush1.xpose.msra.mxu0 %v1450
        %1458 = vmatprep.subr.mxu0 0.0
        %1459 = vmatpush1.xpose.msra.mxu0 0.0
        %1460 = vmatprep.subr.mxu0 0.0
        %1461 = vmatpush1.xpose.msra.mxu0 0.0
        %1462 = vmatprep.subr.mxu0 0.0
        %1463 = vmatpush1.xpose.msra.mxu0 0.0
        %1464 = vmatprep.subr.mxu0 0.0
        %1465 = vmatpush1.xpose.msra.mxu0 0.0
        %1466 = vmatprep.subr.mxu0 0.0
        %1467 = vmatpush1.xpose.msra.mxu0 0.0
        %1468 = vmatprep.subr.mxu0 0.0
        %1469 = vmatpush1.xpose.msra.mxu0 0.0
        %1470 = vmatprep.subr.mxu0 0.0
        %1471 = vmatpush1.xpose.msra.mxu0 0.0
        %1472 = vmatprep.subr.mxu0 0.0
        %1473 = vmatpush1.xpose.msra.mxu0 0.0
        %1474 = vmatprep.subr.mxu0 0.0
        %1475 = vmatpush1.xpose.msra.mxu0 0.0
        %1476 = vmatprep.subr.mxu0 0.0
        %1477 = vmatpush1.xpose.msra.mxu0 0.0
        %1478 = vmatprep.subr.mxu0 0.0
        %1479 = vmatpush1.xpose.msra.mxu0 0.0
        %1480 = vmatprep.subr.mxu0 0.0
        %1481 = vmatpush1.xpose.msra.mxu0 0.0
        %1482 = vmatprep.subr.mxu0 0.0
        %1483 = vmatpush1.xpose.msra.mxu0 0.0
        %1484 = vmatprep.subr.mxu0 0.0
        %1485 = vmatpush1.xpose.msra.mxu0 0.0
        %1486 = vmatprep.subr.mxu0 0.0
        %1487 = vmatpush1.xpose.msra.mxu0 0.0
        %1488 = vmatprep.subr.mxu0 0.0
        %1489 = vmatpush1.xpose.msra.mxu0 0.0
        %1490 = vmatprep.subr.mxu0 0.0
        %1491 = vmatpush1.xpose.msra.mxu0 0.0
        %1492 = vmatprep.subr.mxu0 0.0
        %1493 = vmatpush1.xpose.msra.mxu0 0.0
        %1494 = vmatprep.subr.mxu0 0.0
        %1495 = vmatpush1.xpose.msra.mxu0 0.0
        %1496 = vmatprep.subr.mxu0 0.0
        %1497 = vmatpush1.xpose.msra.mxu0 0.0
        %1498 = vmatprep.subr.mxu0 0.0
        %1499 = vmatpush1.xpose.msra.mxu0 0.0
        %1500 = vmatprep.subr.mxu0 0.0
        %1501 = vmatpush1.xpose.msra.mxu0 0.0
        %1502 = vmatprep.subr.mxu0 0.0
        %1503 = vmatpush1.xpose.msra.mxu0 0.0
        %1504 = vmatprep.subr.mxu0 0.0
        %1505 = vmatpush1.xpose.msra.mxu0 0.0
        %1506 = vmatprep.subr.mxu0 0.0
        %1507 = vmatpush1.xpose.msra.mxu0 0.0
        %1508 = vmatprep.subr.mxu0 0.0
        %1509 = vmatpush1.xpose.msra.mxu0 0.0
        %1510 = vmatprep.subr.mxu0 0.0
        %1511 = vmatpush1.xpose.msra.mxu0 0.0
        %1512 = vmatprep.subr.mxu0 0.0
        %1513 = vmatpush1.xpose.msra.mxu0 0.0
        %1514 = vmatprep.subr.mxu0 0.0
        %1515 = vmatpush1.xpose.msra.mxu0 0.0
        %1516 = vmatprep.mubr.f32.mxu0 0.0
        %1517 = vmatmul.mubr.f32.gmra.mrb[0].mxu0 %v1438
        %v1518 = vpop.f32.mrb[0].mxu0
        %v1519 = vadd.f32 0.0, %v1518
        %v1520 = vpop.f32.mrb[0].mxu0
        %1521 = vmatprep.mubr.f32.mxu0 0.0
        %1522 = vmatmul.mubr.f32.gmra.mrb[0].mxu0 %v1441
        %v1523 = vpop.f32.mrb[0].mxu0
        %v1524 = vadd.f32 0.0, %v1523
        %v1525 = vpop.f32.mrb[0].mxu0
        %1526 = vdwg.mxu0
        %vm1527 = vcmask 195584
        %v1528 = vsel %vm1527, %v1519, -inf
        %1529 = vmax.xlane.f32.xlu0 %v1528
        %v1530 = vpop.xlane.xlu0 %1529
        %v1531 = vsel %vm1527, %v1524, -inf
        %1532 = vmax.xlane.f32.xlu0 %v1531
        %v1533 = vpop.xlane.xlu0 %1532
        %v1534 = vsub.f32 %v1519, %v1530
        %v1535 = vsub.f32 %v1524, %v1533
        %v1536 = vmul.f32 %v1534, 1.442695
        %v1537 = vpow.pop %v1536
        %v1538 = vmul.f32 %v1535, 1.442695
        %v1539 = vpow.pop %v1538
        %v1540 = vsel %vm1527, %v1537, 0.0
        %1541 = vadd.xlane.f32.xlu0 %v1540
        %v1542 = vpop.xlane.xlu0 %1541
        %v1543 = vsel %vm1527, %v1539, 0.0
        %1544 = vadd.xlane.f32.xlu0 %v1543
        %v1545 = vpop.xlane.xlu0 %1544
        %v1546 = vrcp.pop %v1542
        %v1547 = vmul.f32 %v1537, %v1546
        %v1548 = vrcp.pop %v1545
        %v1549 = vmul.f32 %v1539, %v1548
        %v1551 = vsel %vm1527, %v1547, 0
        %v1554 = vsel %vm1527, %v1549, 0
        %1556 = vmatprep.subr.mxu0 0.0
        %1557 = vmatpush1.msra.mxu0 %v1081
        %1558 = vmatprep.subr.mxu0 0.0
        %1559 = vmatpush1.msra.mxu0 %v1082
        %1560 = vmatprep.subr.mxu0 0.0
        %1561 = vmatpush1.msra.mxu0 %v1083
        %1562 = vmatprep.subr.mxu0 0.0
        %1563 = vmatpush1.msra.mxu0 0.0
        %1564 = vmatprep.subr.mxu0 0.0
        %1565 = vmatpush1.msra.mxu0 0.0
        %1566 = vmatprep.subr.mxu0 0.0
        %1567 = vmatpush1.msra.mxu0 0.0
        %1568 = vmatprep.subr.mxu0 0.0
        %1569 = vmatpush1.msra.mxu0 0.0
        %1570 = vmatprep.subr.mxu0 0.0
        %1571 = vmatpush1.msra.mxu0 0.0
        %1572 = vmatprep.subr.mxu0 0.0
        %1573 = vmatpush1.msra.mxu0 0.0
        %1574 = vmatprep.subr.mxu0 0.0
        %1575 = vmatpush1.msra.mxu0 0.0
        %1576 = vmatprep.subr.mxu0 0.0
        %1577 = vmatpush1.msra.mxu0 0.0
        %1578 = vmatprep.subr.mxu0 0.0
        %1579 = vmatpush1.msra.mxu0 0.0
        %1580 = vmatprep.subr.mxu0 0.0
        %1581 = vmatpush1.msra.mxu0 0.0
        %1582 = vmatprep.subr.mxu0 0.0
        %1583 = vmatpush1.msra.mxu0 0.0
        %1584 = vmatprep.subr.mxu0 0.0
        %1585 = vmatpush1.msra.mxu0 0.0
        %1586 = vmatprep.subr.mxu0 0.0
        %1587 = vmatpush1.msra.mxu0 0.0
        %1588 = vmatprep.subr.mxu0 0.0
        %1589 = vmatpush1.msra.mxu0 0.0
        %1590 = vmatprep.subr.mxu0 0.0
        %1591 = vmatpush1.msra.mxu0 0.0
        %1592 = vmatprep.subr.mxu0 0.0
        %1593 = vmatpush1.msra.mxu0 0.0
        %1594 = vmatprep.subr.mxu0 0.0
        %1595 = vmatpush1.msra.mxu0 0.0
        %1596 = vmatprep.subr.mxu0 0.0
        %1597 = vmatpush1.msra.mxu0 0.0
        %1598 = vmatprep.subr.mxu0 0.0
        %1599 = vmatpush1.msra.mxu0 0.0
        %1600 = vmatprep.subr.mxu0 0.0
        %1601 = vmatpush1.msra.mxu0 0.0
        %1602 = vmatprep.subr.mxu0 0.0
        %1603 = vmatpush1.msra.mxu0 0.0
        %1604 = vmatprep.subr.mxu0 0.0
        %1605 = vmatpush1.msra.mxu0 0.0
        %1606 = vmatprep.subr.mxu0 0.0
        %1607 = vmatpush1.msra.mxu0 0.0
        %1608 = vmatprep.subr.mxu0 0.0
        %1609 = vmatpush1.msra.mxu0 0.0
        %1610 = vmatprep.subr.mxu0 0.0
        %1611 = vmatpush1.msra.mxu0 0.0
        %1612 = vmatprep.subr.mxu0 0.0
        %1613 = vmatpush1.msra.mxu0 0.0
        %1614 = vmatprep.subr.mxu0 0.0
        %1615 = vmatpush1.msra.mxu0 0.0
        %1616 = vmatprep.subr.mxu0 0.0
        %1617 = vmatpush1.msra.mxu0 0.0
        %1618 = vmatprep.subr.mxu0 0.0
        %1619 = vmatpush1.msra.mxu0 0.0
        %1620 = vmatprep.mubr.f32.mxu0 0.0
        %1621 = vmatmul.mubr.f32.gmra.mrb[0].mxu0 %v1551
        %v1622 = vpop.f32.mrb[0].mxu0
        %v1623 = vadd.f32 0.0, %v1622
        %v1624 = vpop.f32.mrb[0].mxu0
        %1625 = vmatprep.mubr.f32.mxu0 0.0
        %1626 = vmatmul.mubr.f32.gmra.mrb[0].mxu0 %v1554
        %v1627 = vpop.f32.mrb[0].mxu0
        %v1628 = vadd.f32 0.0, %v1627
        %v1629 = vpop.f32.mrb[0].mxu0
        %1630 = vdwg.mxu0
        %v1632 = vsel %vm1100, %v1273, 0
        %v1635 = vsel %vm1100, %v1274, 0
        %v1638 = vsel %vm1100, %v1275, 0
        %v1641 = vsel %vm1100, %v1349, 0
        %v1644 = vsel %vm1100, %v1354, 0
        %1646 = vmatprep.subr.mxu0 0.0
        %1647 = vmatpush1.xpose.msra.mxu0 %v1641
        %1648 = vmatprep.subr.mxu0 0.0
        %1649 = vmatpush1.xpose.msra.mxu0 %v1644
        %1650 = vmatprep.subr.mxu0 0.0
        %1651 = vmatpush1.xpose.msra.mxu0 0.0
        %1652 = vmatprep.subr.mxu0 0.0
        %1653 = vmatpush1.xpose.msra.mxu0 0.0
        %1654 = vmatprep.subr.mxu0 0.0
        %1655 = vmatpush1.xpose.msra.mxu0 0.0
        %1656 = vmatprep.subr.mxu0 0.0
        %1657 = vmatpush1.xpose.msra.mxu0 0.0
        %1658 = vmatprep.subr.mxu0 0.0
        %1659 = vmatpush1.xpose.msra.mxu0 0.0
        %1660 = vmatprep.subr.mxu0 0.0
        %1661 = vmatpush1.xpose.msra.mxu0 0.0
        %1662 = vmatprep.subr.mxu0 0.0
        %1663 = vmatpush1.xpose.msra.mxu0 0.0
        %1664 = vmatprep.subr.mxu0 0.0
        %1665 = vmatpush1.xpose.msra.mxu0 0.0
        %1666 = vmatprep.subr.mxu0 0.0
        %1667 = vmatpush1.xpose.msra.mxu0 0.0
        %1668 = vmatprep.subr.mxu0 0.0
        %1669 = vmatpush1.xpose.msra.mxu0 0.0
        %1670 = vmatprep.subr.mxu0 0.0
        %1671 = vmatpush1.xpose.msra.mxu0 0.0
        %1672 = vmatprep.subr.mxu0 0.0
        %1673 = vmatpush1.xpose.msra.mxu0 0.0
        %1674 = vmatprep.subr.mxu0 0.0
        %1675 = vmatpush1.xpose.msra.mxu0 0.0
        %1676 = vmatprep.subr.mxu0 0.0
        %1677 = vmatpush1.xpose.msra.mxu0 0.0
        %1678 = vmatprep.subr.mxu0 0.0
        %1679 = vmatpush1.xpose.msra.mxu0 0.0
        %1680 = vmatprep.subr.mxu0 0.0
        %1681 = vmatpush1.xpose.msra.mxu0 0.0
        %1682 = vmatprep.subr.mxu0 0.0
        %1683 = vmatpush1.xpose.msra.mxu0 0.0
        %1684 = vmatprep.subr.mxu0 0.0
        %1685 = vmatpush1.xpose.msra.mxu0 0.0
        %1686 = vmatprep.subr.mxu0 0.0
        %1687 = vmatpush1.xpose.msra.mxu0 0.0
        %1688 = vmatprep.subr.mxu0 0.0
        %1689 = vmatpush1.xpose.msra.mxu0 0.0
        %1690 = vmatprep.subr.mxu0 0.0
        %1691 = vmatpush1.xpose.msra.mxu0 0.0
        %1692 = vmatprep.subr.mxu0 0.0
        %1693 = vmatpush1.xpose.msra.mxu0 0.0
        %1694 = vmatprep.subr.mxu0 0.0
        %1695 = vmatpush1.xpose.msra.mxu0 0.0
        %1696 = vmatprep.subr.mxu0 0.0
        %1697 = vmatpush1.xpose.msra.mxu0 0.0
        %1698 = vmatprep.subr.mxu0 0.0
        %1699 = vmatpush1.xpose.msra.mxu0 0.0
        %1700 = vmatprep.subr.mxu0 0.0
        %1701 = vmatpush1.xpose.msra.mxu0 0.0
        %1702 = vmatprep.subr.mxu0 0.0
        %1703 = vmatpush1.xpose.msra.mxu0 0.0
        %1704 = vmatprep.subr.mxu0 0.0
        %1705 = vmatpush1.xpose.msra.mxu0 0.0
        %1706 = vmatprep.subr.mxu0 0.0
        %1707 = vmatpush1.xpose.msra.mxu0 0.0
        %1708 = vmatprep.subr.mxu0 0.0
        %1709 = vmatpush1.xpose.msra.mxu0 0.0
        %1710 = vmatprep.mubr.f32.mxu0 0.0
        %1711 = vmatmul.mubr.f32.gmra.mrb[0].mxu0 %v1632
        %v1712 = vpop.f32.mrb[0].mxu0
        %v1713 = vadd.f32 0.0, %v1712
        %v1714 = vpop.f32.mrb[0].mxu0
        %1715 = vmatprep.mubr.f32.mxu0 0.0
        %1716 = vmatmul.mubr.f32.gmra.mrb[0].mxu0 %v1635
        %v1717 = vpop.f32.mrb[0].mxu0
        %v1718 = vadd.f32 0.0, %v1717
        %v1719 = vpop.f32.mrb[0].mxu0
        %1720 = vmatprep.mubr.f32.mxu0 0.0
        %1721 = vmatmul.mubr.f32.gmra.mrb[0].mxu0 %v1638
        %v1722 = vpop.f32.mrb[0].mxu0
        %v1723 = vadd.f32 0.0, %v1722
        %v1724 = vpop.f32.mrb[0].mxu0
        %1725 = vdwg.mxu0
        %vm1726 = vcmask 130048
        %v1727 = vsel %vm1726, %v1713, -inf
        %1728 = vmax.xlane.f32.xlu0 %v1727
        %v1729 = vpop.xlane.xlu0 %1728
        %v1730 = vsel %vm1726, %v1718, -inf
        %1731 = vmax.xlane.f32.xlu0 %v1730
        %v1732 = vpop.xlane.xlu0 %1731
        %v1733 = vsel %vm1726, %v1723, -inf
        %1734 = vmax.xlane.f32.xlu0 %v1733
        %v1735 = vpop.xlane.xlu0 %1734
        %v1736 = vsub.f32 %v1713, %v1729
        %v1737 = vsub.f32 %v1718, %v1732
        %v1738 = vsub.f32 %v1723, %v1735
        %v1739 = vmul.f32 %v1736, 1.442695
        %v1740 = vpow.pop %v1739
        %v1741 = vmul.f32 %v1737, 1.442695
        %v1742 = vpow.pop %v1741
        %v1743 = vmul.f32 %v1738, 1.442695
        %v1744 = vpow.pop %v1743
        %v1745 = vsel %vm1726, %v1740, 0.0
        %1746 = vadd.xlane.f32.xlu0 %v1745
        %v1747 = vpop.xlane.xlu0 %1746
        %v1748 = vsel %vm1726, %v1742, 0.0
        %1749 = vadd.xlane.f32.xlu0 %v1748
        %v1750 = vpop.xlane.xlu0 %1749
        %v1751 = vsel %vm1726, %v1744, 0.0
        %1752 = vadd.xlane.f32.xlu0 %v1751
        %v1753 = vpop.xlane.xlu0 %1752
        %v1754 = vrcp.pop %v1747
        %v1755 = vmul.f32 %v1740, %v1754
        %v1756 = vrcp.pop %v1750
        %v1757 = vmul.f32 %v1742, %v1756
        %v1758 = vrcp.pop %v1753
        %v1759 = vmul.f32 %v1744, %v1758
        %v1761 = vsel %vm1726, %v1755, 0
        %v1764 = vsel %vm1726, %v1757, 0
        %v1767 = vsel %vm1726, %v1759, 0
        %1769 = vmatprep.subr.mxu0 0.0
        %1770 = vmatpush1.msra.mxu0 %v1079
        %1771 = vmatprep.subr.mxu0 0.0
        %1772 = vmatpush1.msra.mxu0 %v1080
        %1773 = vmatprep.subr.mxu0 0.0
        %1774 = vmatpush1.msra.mxu0 0.0
        %1775 = vmatprep.subr.mxu0 0.0
        %1776 = vmatpush1.msra.mxu0 0.0
        %1777 = vmatprep.subr.mxu0 0.0
        %1778 = vmatpush1.msra.mxu0 0.0
        %1779 = vmatprep.subr.mxu0 0.0
        %1780 = vmatpush1.msra.mxu0 0.0
        %1781 = vmatprep.subr.mxu0 0.0
        %1782 = vmatpush1.msra.mxu0 0.0
        %1783 = vmatprep.subr.mxu0 0.0
        %1784 = vmatpush1.msra.mxu0 0.0
        %1785 = vmatprep.subr.mxu0 0.0
        %1786 = vmatpush1.msra.mxu0 0.0
        %1787 = vmatprep.subr.mxu0 0.0
        %1788 = vmatpush1.msra.mxu0 0.0
        %1789 = vmatprep.subr.mxu0 0.0
        %1790 = vmatpush1.msra.mxu0 0.0
        %1791 = vmatprep.subr.mxu0 0.0
        %1792 = vmatpush1.msra.mxu0 0.0
        %1793 = vmatprep.subr.mxu0 0.0
        %1794 = vmatpush1.msra.mxu0 0.0
        %1795 = vmatprep.subr.mxu0 0.0
        %1796 = vmatpush1.msra.mxu0 0.0
        %1797 = vmatprep.subr.mxu0 0.0
        %1798 = vmatpush1.msra.mxu0 0.0
        %1799 = vmatprep.subr.mxu0 0.0
        %1800 = vmatpush1.msra.mxu0 0.0
        %1801 = vmatprep.subr.mxu0 0.0
        %1802 = vmatpush1.msra.mxu0 0.0
        %1803 = vmatprep.subr.mxu0 0.0
        %1804 = vmatpush1.msra.mxu0 0.0
        %1805 = vmatprep.subr.mxu0 0.0
        %1806 = vmatpush1.msra.mxu0 0.0
        %1807 = vmatprep.subr.mxu0 0.0
        %1808 = vmatpush1.msra.mxu0 0.0
        %1809 = vmatprep.subr.mxu0 0.0
        %1810 = vmatpush1.msra.mxu0 0.0
        %1811 = vmatprep.subr.mxu0 0.0
        %1812 = vmatpush1.msra.mxu0 0.0
        %1813 = vmatprep.subr.mxu0 0.0
        %1814 = vmatpush1.msra.mxu0 0.0
        %1815 = vmatprep.subr.mxu0 0.0
        %1816 = vmatpush1.msra.mxu0 0.0
        %1817 = vmatprep.subr.mxu0 0.0
        %1818 = vmatpush1.msra.mxu0 0.0
        %1819 = vmatprep.subr.mxu0 0.0
        %1820 = vmatpush1.msra.mxu0 0.0
        %1821 = vmatprep.subr.mxu0 0.0
        %1822 = vmatpush1.msra.mxu0 0.0
        %1823 = vmatprep.subr.mxu0 0.0
        %1824 = vmatpush1.msra.mxu0 0.0
        %1825 = vmatprep.subr.mxu0 0.0
        %1826 = vmatpush1.msra.mxu0 0.0
        %1827 = vmatprep.subr.mxu0 0.0
        %1828 = vmatpush1.msra.mxu0 0.0
        %1829 = vmatprep.subr.mxu0 0.0
        %1830 = vmatpush1.msra.mxu0 0.0
        %1831 = vmatprep.subr.mxu0 0.0
        %1832 = vmatpush1.msra.mxu0 0.0
        %1833 = vmatprep.mubr.f32.mxu0 0.0
        %1834 = vmatmul.mubr.f32.gmra.mrb[0].mxu0 %v1761
        %v1835 = vpop.f32.mrb[0].mxu0
        %v1836 = vadd.f32 0.0, %v1835
        %v1837 = vpop.f32.mrb[0].mxu0
        %1838 = vmatprep.mubr.f32.mxu0 0.0
        %1839 = vmatmul.mubr.f32.gmra.mrb[0].mxu0 %v1764
        %v1840 = vpop.f32.mrb[0].mxu0
        %v1841 = vadd.f32 0.0, %v1840
        %v1842 = vpop.f32.mrb[0].mxu0
        %1843 = vmatprep.mubr.f32.mxu0 0.0
        %1844 = vmatmul.mubr.f32.gmra.mrb[0].mxu0 %v1767
        %v1845 = vpop.f32.mrb[0].mxu0
        %v1846 = vadd.f32 0.0, %v1845
        %v1847 = vpop.f32.mrb[0].mxu0
        %1848 = vdwg.mxu0
        %v1849 = vld [vmem:[#allocation6] sm:$0xff]
        %v1850 = vld [vmem:[#allocation6 + $0x8] sm:$0xff]
        %v1851 = vld [vmem:[#allocation6 + $0x10] sm:$0xff]
        %v1852 = vld [vmem:[#allocation6 + $0x18] sm:$0xff]
        %v1853 = vld [vmem:[%s9] sm:$0x7]
        %1855 = vset.pattern.permute.xlu0 0
        %1856 = vperm.xlu0 %1855, %v1079
        %v1857 = vpop.permute.xlu0 %1856
        %1860 = vset.pattern.permute.xlu0 0
        %1861 = vperm.xlu0 %1860, %v1080
        %v1862 = vpop.permute.xlu0 %1861
        %v1864 = vlaneseq
        %v1865 = vshrl.u32 %v1864, 7
        %v1866 = vsub.s32 0, %v1865
        %v1867 = vrot.slane %v1853, %v1866
        %v1868 = vmul.f32 %v1857, %v1867
        %v1869 = vmul.f32 %v1862, %v1867
        %1870 = vset.pattern.permute.xlu0 1
        %1871 = vperm.xlu0 %1870, %v1079
        %v1872 = vpop.permute.xlu0 %1871
        %1874 = vset.pattern.permute.xlu0 1
        %1875 = vperm.xlu0 %1874, %v1080
        %v1876 = vpop.permute.xlu0 %1875
        %v1878 = vlaneseq
        %v1879 = vshrl.u32 %v1878, 7
        %v1880 = vsub.s32 1, %v1879
        %v1881 = vrot.slane %v1853, %v1880
        %v1882 = vmul.f32 %v1872, %v1881
        %v1883 = vmul.f32 %v1876, %v1881
        %v1884 = vadd.f32 %v1868, %v1882
        %v1885 = vadd.f32 %v1869, %v1883
        %1886 = vset.pattern.permute.xlu0 2
        %1887 = vperm.xlu0 %1886, %v1079
        %v1888 = vpop.permute.xlu0 %1887
        %1890 = vset.pattern.permute.xlu0 2
        %1891 = vperm.xlu0 %1890, %v1080
        %v1892 = vpop.permute.xlu0 %1891
        %v1894 = vlaneseq
        %v1895 = vshrl.u32 %v1894, 7
        %v1896 = vsub.s32 2, %v1895
        %v1897 = vrot.slane %v1853, %v1896
        %v1898 = vmul.f32 %v1888, %v1897
        %v1899 = vmul.f32 %v1892, %v1897
        %v1900 = vadd.f32 %v1884, %v1898
        %v1901 = vadd.f32 %v1885, %v1899
        %1902 = vmatprep.subr.mxu0 0.0
        %1903 = vmatpush1.msra.mxu0 %v1849
        %1904 = vmatprep.subr.mxu0 0.0
        %1905 = vmatpush1.msra.mxu0 %v1850
        %1906 = vmatprep.subr.mxu0 0.0
        %1907 = vmatpush1.msra.mxu0 %v1851
        %1908 = vmatprep.subr.mxu0 0.0
        %1909 = vmatpush1.msra.mxu0 %v1852
        %1910 = vmatprep.subr.mxu0 0.0
        %1911 = vmatpush1.msra.mxu0 0.0
        %1912 = vmatprep.subr.mxu0 0.0
        %1913 = vmatpush1.msra.mxu0 0.0
        %1914 = vmatprep.subr.mxu0 0.0
        %1915 = vmatpush1.msra.mxu0 0.0
        %1916 = vmatprep.subr.mxu0 0.0
        %1917 = vmatpush1.msra.mxu0 0.0
        %1918 = vmatprep.subr.mxu0 0.0
        %1919 = vmatpush1.msra.mxu0 0.0
        %1920 = vmatprep.subr.mxu0 0.0
        %1921 = vmatpush1.msra.mxu0 0.0
        %1922 = vmatprep.subr.mxu0 0.0
        %1923 = vmatpush1.msra.mxu0 0.0
        %1924 = vmatprep.subr.mxu0 0.0
        %1925 = vmatpush1.msra.mxu0 0.0
        %1926 = vmatprep.subr.mxu0 0.0
        %1927 = vmatpush1.msra.mxu0 0.0
        %1928 = vmatprep.subr.mxu0 0.0
        %1929 = vmatpush1.msra.mxu0 0.0
        %1930 = vmatprep.subr.mxu0 0.0
        %1931 = vmatpush1.msra.mxu0 0.0
        %1932 = vmatprep.subr.mxu0 0.0
        %1933 = vmatpush1.msra.mxu0 0.0
        %1934 = vmatprep.subr.mxu0 0.0
        %1935 = vmatpush1.msra.mxu0 0.0
        %1936 = vmatprep.subr.mxu0 0.0
        %1937 = vmatpush1.msra.mxu0 0.0
        %1938 = vmatprep.subr.mxu0 0.0
        %1939 = vmatpush1.msra.mxu0 0.0
        %1940 = vmatprep.subr.mxu0 0.0
        %1941 = vmatpush1.msra.mxu0 0.0
        %1942 = vmatprep.subr.mxu0 0.0
        %1943 = vmatpush1.msra.mxu0 0.0
        %1944 = vmatprep.subr.mxu0 0.0
        %1945 = vmatpush1.msra.mxu0 0.0
        %1946 = vmatprep.subr.mxu0 0.0
        %1947 = vmatpush1.msra.mxu0 0.0
        %1948 = vmatprep.subr.mxu0 0.0
        %1949 = vmatpush1.msra.mxu0 0.0
        %1950 = vmatprep.subr.mxu0 0.0
        %1951 = vmatpush1.msra.mxu0 0.0
        %1952 = vmatprep.subr.mxu0 0.0
        %1953 = vmatpush1.msra.mxu0 0.0
        %1954 = vmatprep.subr.mxu0 0.0
        %1955 = vmatpush1.msra.mxu0 0.0
        %1956 = vmatprep.subr.mxu0 0.0
        %1957 = vmatpush1.msra.mxu0 0.0
        %1958 = vmatprep.subr.mxu0 0.0
        %1959 = vmatpush1.msra.mxu0 0.0
        %1960 = vmatprep.subr.mxu0 0.0
        %1961 = vmatpush1.msra.mxu0 0.0
        %1962 = vmatprep.subr.mxu0 0.0
        %1963 = vmatpush1.msra.mxu0 0.0
        %1964 = vmatprep.subr.mxu0 0.0
        %1965 = vmatpush1.msra.mxu0 0.0
        %1966 = vmatprep.mubr.f32.mxu0 0.0
        %1967 = vmatmul.mubr.f32.gmra.mrb[0].mxu0 %v1102
        %v1968 = vpop.f32.mrb[0].mxu0
        %v1969 = vadd.f32 %v1900, %v1968
        %v1970 = vpop.f32.mrb[0].mxu0
        %1971 = vmatprep.mubr.f32.mxu0 0.0
        %1972 = vmatmul.mubr.f32.gmra.mrb[0].mxu0 %v1105
        %v1973 = vpop.f32.mrb[0].mxu0
        %v1974 = vadd.f32 %v1901, %v1973
        %v1975 = vpop.f32.mrb[0].mxu0
        %1976 = vdwg.mxu0
        %v1977 = vld [vmem:[%s10] sm:$0x7]
        %1979 = vset.pattern.permute.xlu0 0
        %1980 = vperm.xlu0 %1979, %v1623
        %v1981 = vpop.permute.xlu0 %1980
        %1984 = vset.pattern.permute.xlu0 0
        %1985 = vperm.xlu0 %1984, %v1628
        %v1986 = vpop.permute.xlu0 %1985
        %v1988 = vlaneseq
        %v1989 = vshrl.u32 %v1988, 7
        %v1990 = vsub.s32 0, %v1989
        %v1991 = vrot.slane %v1977, %v1990
        %v1992 = vmul.f32 %v1981, %v1991
        %v1993 = vmul.f32 %v1986, %v1991
        %1994 = vset.pattern.permute.xlu0 1
        %1995 = vperm.xlu0 %1994, %v1623
        %v1996 = vpop.permute.xlu0 %1995
        %1998 = vset.pattern.permute.xlu0 1
        %1999 = vperm.xlu0 %1998, %v1628
        %v2000 = vpop.permute.xlu0 %1999
        %v2002 = vlaneseq
        %v2003 = vshrl.u32 %v2002, 7
        %v2004 = vsub.s32 1, %v2003
        %v2005 = vrot.slane %v1977, %v2004
        %v2006 = vmul.f32 %v1996, %v2005
        %v2007 = vmul.f32 %v2000, %v2005
        %v2008 = vadd.f32 %v1992, %v2006
        %v2009 = vadd.f32 %v1993, %v2007
        %2010 = vset.pattern.permute.xlu0 2
        %2011 = vperm.xlu0 %2010, %v1623
        %v2012 = vpop.permute.xlu0 %2011
        %2014 = vset.pattern.permute.xlu0 2
        %2015 = vperm.xlu0 %2014, %v1628
        %v2016 = vpop.permute.xlu0 %2015
        %v2018 = vlaneseq
        %v2019 = vshrl.u32 %v2018, 7
        %v2020 = vsub.s32 2, %v2019
        %v2021 = vrot.slane %v1977, %v2020
        %v2022 = vmul.f32 %v2012, %v2021
        %v2023 = vmul.f32 %v2016, %v2021
        %v2024 = vadd.f32 %v2008, %v2022
        %v2025 = vadd.f32 %v2009, %v2023
        %v2026 = vadd.f32 %v1969, %v2024
        %v2027 = vadd.f32 %v1974, %v2025
        %v2028 = vld [vmem:[%s11] sm:$0x1]
        %v2030 = vlaneseq
        %v2031 = vshrl.u32 %v2030, 7
        %v2032 = vsub.s32 0, %v2031
        %v2033 = vrot.slane %v2028, %v2032
        %v2035 = vadd.f32 %v2026, %v2033
        %v2036 = vadd.f32 %v2027, %v2033
        %v2037 = vmax.f32 %v2035, 0.0
        %v2038 = vmax.f32 %v2036, 0.0
        %v2039 = vld [vmem:[%s12] sm:$0xff]
        %v2040 = vld [vmem:[%s12 + $0x8] sm:$0xff]
        %v2041 = vld [vmem:[%s12 + $0x10] sm:$0xff]
        %v2042 = vld [vmem:[%s12 + $0x18] sm:$0xff]
        %v2043 = vld [vmem:[%s12 + $0x20] sm:$0x3f]
        %v2044 = vld [vmem:[%s13] sm:$0x1]
        %v2046 = vlaneseq
        %v2047 = vshrl.u32 %v2046, 7
        %v2048 = vsub.s32 0, %v2047
        %v2049 = vrot.slane %v2044, %v2048
        %vm2051 = vcmask 310272
        %v2053 = vsel %vm2051, %v2037, 0
        %v2056 = vsel %vm2051, %v2038, 0
        %vm2058 = vcmask 1045504
        %v2060 = vsel %vm2058, %v2043, 0
        %2062 = vmatprep.subr.mxu0 0.0
        %2063 = vmatpush1.msra.mxu0 %v2039
        %2064 = vmatprep.subr.mxu0 0.0
        %2065 = vmatpush1.msra.mxu0 %v2040
        %2066 = vmatprep.subr.mxu0 0.0
        %2067 = vmatpush1.msra.mxu0 %v2041
        %2068 = vmatprep.subr.mxu0 0.0
        %2069 = vmatpush1.msra.mxu0 %v2042
        %2070 = vmatprep.subr.mxu0 0.0
        %2071 = vmatpush1.msra.mxu0 %v2060
        %2072 = vmatprep.subr.mxu0 0.0
        %2073 = vmatpush1.msra.mxu0 0.0
        %2074 = vmatprep.subr.mxu0 0.0
        %2075 = vmatpush1.msra.mxu0 0.0
        %2076 = vmatprep.subr.mxu0 0.0
        %2077 = vmatpush1.msra.mxu0 0.0
        %2078 = vmatprep.subr.mxu0 0.0
        %2079 = vmatpush1.msra.mxu0 0.0
        %2080 = vmatprep.subr.mxu0 0.0
        %2081 = vmatpush1.msra.mxu0 0.0
        %2082 = vmatprep.subr.mxu0 0.0
        %2083 = vmatpush1.msra.mxu0 0.0
        %2084 = vmatprep.subr.mxu0 0.0
        %2085 = vmatpush1.msra.mxu0 0.0
        %2086 = vmatprep.subr.mxu0 0.0
        %2087 = vmatpush1.msra.mxu0 0.0
        %2088 = vmatprep.subr.mxu0 0.0
        %2089 = vmatpush1.msra.mxu0 0.0
        %2090 = vmatprep.subr.mxu0 0.0
        %2091 = vmatpush1.msra.mxu0 0.0
        %2092 = vmatprep.subr.mxu0 0.0
        %2093 = vmatpush1.msra.mxu0 0.0
        %2094 = vmatprep.subr.mxu0 0.0
        %2095 = vmatpush1.msra.mxu0 0.0
        %2096 = vmatprep.subr.mxu0 0.0
        %2097 = vmatpush1.msra.mxu0 0.0
        %2098 = vmatprep.subr.mxu0 0.0
        %2099 = vmatpush1.msra.mxu0 0.0
        %2100 = vmatprep.subr.mxu0 0.0
        %2101 = vmatpush1.msra.mxu0 0.0
        %2102 = vmatprep.subr.mxu0 0.0
        %2103 = vmatpush1.msra.mxu0 0.0
        %2104 = vmatprep.subr.mxu0 0.0
        %2105 = vmatpush1.msra.mxu0 0.0
        %2106 = vmatprep.subr.mxu0 0.0
        %2107 = vmatpush1.msra.mxu0 0.0
        %2108 = vmatprep.subr.mxu0 0.0
        %2109 = vmatpush1.msra.mxu0 0.0
        %2110 = vmatprep.subr.mxu0 0.0
        %2111 = vmatpush1.msra.mxu0 0.0
        %2112 = vmatprep.subr.mxu0 0.0
        %2113 = vmatpush1.msra.mxu0 0.0
        %2114 = vmatprep.subr.mxu0 0.0
        %2115 = vmatpush1.msra.mxu0 0.0
        %2116 = vmatprep.subr.mxu0 0.0
        %2117 = vmatpush1.msra.mxu0 0.0
        %2118 = vmatprep.subr.mxu0 0.0
        %2119 = vmatpush1.msra.mxu0 0.0
        %2120 = vmatprep.subr.mxu0 0.0
        %2121 = vmatpush1.msra.mxu0 0.0
        %2122 = vmatprep.subr.mxu0 0.0
        %2123 = vmatpush1.msra.mxu0 0.0
        %2124 = vmatprep.subr.mxu0 0.0
        %2125 = vmatpush1.msra.mxu0 0.0
        %2126 = vmatprep.mubr.f32.mxu0 0.0
        %2127 = vmatmul.mubr.f32.gmra.mrb[0].mxu0 %v2053
        %v2128 = vpop.f32.mrb[0].mxu0
        %v2129 = vadd.f32 %v2049, %v2128
        %v2130 = vpop.f32.mrb[0].mxu0
        %2131 = vmatprep.mubr.f32.mxu0 0.0
        %2132 = vmatmul.mubr.f32.gmra.mrb[0].mxu0 %v2056
        %v2133 = vpop.f32.mrb[0].mxu0
        %v2134 = vadd.f32 %v2049, %v2133
        %v2135 = vpop.f32.mrb[0].mxu0
        %2136 = vdwg.mxu0
        %v2137 = vmax.f32 %v2129, 0.0
        %v2138 = vmax.f32 %v2134, 0.0
        %v2139 = vld [vmem:[%s14] sm:$0xff]
        %v2140 = vld [vmem:[%s14 + $0x8] sm:$0xff]
        %v2141 = vld [vmem:[%s14 + $0x10] sm:$0xff]
        %v2142 = vld [vmem:[%s14 + $0x18] sm:$0xff]
        %v2143 = vld [vmem:[%s14 + $0x20] sm:$0x3f]
        %v2144 = vld [vmem:[%s15] sm:$0x1]
        %v2146 = vlaneseq
        %v2147 = vshrl.u32 %v2146, 7
        %v2148 = vsub.s32 0, %v2147
        %v2149 = vrot.slane %v2144, %v2148
        %v2152 = vsel %vm2051, %v2137, 0
        %v2155 = vsel %vm2051, %v2138, 0
        %v2158 = vsel %vm2058, %v2143, 0
        %2160 = vmatprep.subr.mxu0 0.0
        %2161 = vmatpush1.msra.mxu0 %v2139
        %2162 = vmatprep.subr.mxu0 0.0
        %2163 = vmatpush1.msra.mxu0 %v2140
        %2164 = vmatprep.subr.mxu0 0.0
        %2165 = vmatpush1.msra.mxu0 %v2141
        %2166 = vmatprep.subr.mxu0 0.0
        %2167 = vmatpush1.msra.mxu0 %v2142
        %2168 = vmatprep.subr.mxu0 0.0
        %2169 = vmatpush1.msra.mxu0 %v2158
        %2170 = vmatprep.subr.mxu0 0.0
        %2171 = vmatpush1.msra.mxu0 0.0
        %2172 = vmatprep.subr.mxu0 0.0
        %2173 = vmatpush1.msra.mxu0 0.0
        %2174 = vmatprep.subr.mxu0 0.0
        %2175 = vmatpush1.msra.mxu0 0.0
        %2176 = vmatprep.subr.mxu0 0.0
        %2177 = vmatpush1.msra.mxu0 0.0
        %2178 = vmatprep.subr.mxu0 0.0
        %2179 = vmatpush1.msra.mxu0 0.0
        %2180 = vmatprep.subr.mxu0 0.0
        %2181 = vmatpush1.msra.mxu0 0.0
        %2182 = vmatprep.subr.mxu0 0.0
        %2183 = vmatpush1.msra.mxu0 0.0
        %2184 = vmatprep.subr.mxu0 0.0
        %2185 = vmatpush1.msra.mxu0 0.0
        %2186 = vmatprep.subr.mxu0 0.0
        %2187 = vmatpush1.msra.mxu0 0.0
        %2188 = vmatprep.subr.mxu0 0.0
        %2189 = vmatpush1.msra.mxu0 0.0
        %2190 = vmatprep.subr.mxu0 0.0
        %2191 = vmatpush1.msra.mxu0 0.0
        %2192 = vmatprep.subr.mxu0 0.0
        %2193 = vmatpush1.msra.mxu0 0.0
        %2194 = vmatprep.subr.mxu0 0.0
        %2195 = vmatpush1.msra.mxu0 0.0
        %2196 = vmatprep.subr.mxu0 0.0
        %2197 = vmatpush1.msra.mxu0 0.0
        %2198 = vmatprep.subr.mxu0 0.0
        %2199 = vmatpush1.msra.mxu0 0.0
        %2200 = vmatprep.subr.mxu0 0.0
        %2201 = vmatpush1.msra.mxu0 0.0
        %2202 = vmatprep.subr.mxu0 0.0
        %2203 = vmatpush1.msra.mxu0 0.0
        %2204 = vmatprep.subr.mxu0 0.0
        %2205 = vmatpush1.msra.mxu0 0.0
        %2206 = vmatprep.subr.mxu0 0.0
        %2207 = vmatpush1.msra.mxu0 0.0
        %2208 = vmatprep.subr.mxu0 0.0
        %2209 = vmatpush1.msra.mxu0 0.0
        %2210 = vmatprep.subr.mxu0 0.0
        %2211 = vmatpush1.msra.mxu0 0.0
        %2212 = vmatprep.subr.mxu0 0.0
        %2213 = vmatpush1.msra.mxu0 0.0
        %2214 = vmatprep.subr.mxu0 0.0
        %2215 = vmatpush1.msra.mxu0 0.0
        %2216 = vmatprep.subr.mxu0 0.0
        %2217 = vmatpush1.msra.mxu0 0.0
        %2218 = vmatprep.subr.mxu0 0.0
        %2219 = vmatpush1.msra.mxu0 0.0
        %2220 = vmatprep.subr.mxu0 0.0
        %2221 = vmatpush1.msra.mxu0 0.0
        %2222 = vmatprep.subr.mxu0 0.0
        %2223 = vmatpush1.msra.mxu0 0.0
        %2224 = vmatprep.mubr.f32.mxu0 0.0
        %2225 = vmatmul.mubr.f32.gmra.mrb[0].mxu0 %v2152
        %v2226 = vpop.f32.mrb[0].mxu0
        %v2227 = vadd.f32 %v2149, %v2226
        %v2228 = vpop.f32.mrb[0].mxu0
        %2229 = vmatprep.mubr.f32.mxu0 0.0
        %2230 = vmatmul.mubr.f32.gmra.mrb[0].mxu0 %v2155
        %v2231 = vpop.f32.mrb[0].mxu0
        %v2232 = vadd.f32 %v2149, %v2231
        %v2233 = vpop.f32.mrb[0].mxu0
        %2234 = vdwg.mxu0
        %v2235 = vadd.f32 %v1623, %v2227
        %v2236 = vadd.f32 %v1628, %v2232
        %v2237 = vld [vmem:[%s16] sm:$0xff]
        %v2238 = vld [vmem:[%s16 + $0x8] sm:$0xff]
        %v2239 = vld [vmem:[%s16 + $0x10] sm:$0xff]
        %v2240 = vld [vmem:[%s16 + $0x18] sm:$0xff]
        %v2241 = vld [vmem:[%s17] sm:$0x7]
        %v2242 = vlaneseq
        %v2243 = vshrl.u32 %v2242, 7
        %v2244 = vsub.s32 0, %v2243
        %v2245 = vrot.slane %v2241, %v2244
        %v2246 = vmul.f32 %v1079, %v2245
        %v2247 = vmul.f32 %v1080, %v2245
        %v2248 = vlaneseq
        %v2249 = vshrl.u32 %v2248, 7
        %v2250 = vsub.s32 1, %v2249
        %v2251 = vrot.slane %v2241, %v2250
        %2253 = vrot.lane.b32.xlu0 %v2251, 1
        %v2254 = vpop.permute.xlu0 %2253
        %v2256 = vmul.f32 %v1079, %v2254
        %v2257 = vmul.f32 %v1080, %v2254
        %2260 = vrot.lane.b32.xlu0 %v2256, 127
        %v2261 = vpop.permute.xlu0 %2260
        %2262 = vrot.lane.b32.xlu0 %v2257, 127
        %v2263 = vpop.permute.xlu0 %2262
        %v2266 = vadd.f32 %v2246, %v2261
        %v2267 = vadd.f32 %v2247, %v2263
        %v2268 = vlaneseq
        %v2269 = vshrl.u32 %v2268, 7
        %v2270 = vsub.s32 2, %v2269
        %v2271 = vrot.slane %v2241, %v2270
        %2273 = vrot.lane.b32.xlu0 %v2271, 2
        %v2274 = vpop.permute.xlu0 %2273
        %v2276 = vmul.f32 %v1079, %v2274
        %v2277 = vmul.f32 %v1080, %v2274
        %2280 = vrot.lane.b32.xlu0 %v2276, 126
        %v2281 = vpop.permute.xlu0 %2280
        %2282 = vrot.lane.b32.xlu0 %v2277, 126
        %v2283 = vpop.permute.xlu0 %2282
        %v2286 = vadd.f32 %v2266, %v2281
        %v2287 = vadd.f32 %v2267, %v2283
        %2288 = vmatprep.subr.mxu0 0.0
        %2289 = vmatpush1.msra.mxu0 %v2237
        %2290 = vmatprep.subr.mxu0 0.0
        %2291 = vmatpush1.msra.mxu0 %v2238
        %2292 = vmatprep.subr.mxu0 0.0
        %2293 = vmatpush1.msra.mxu0 %v2239
        %2294 = vmatprep.subr.mxu0 0.0
        %2295 = vmatpush1.msra.mxu0 %v2240
        %2296 = vmatprep.subr.mxu0 0.0
        %2297 = vmatpush1.msra.mxu0 0.0
        %2298 = vmatprep.subr.mxu0 0.0
        %2299 = vmatpush1.msra.mxu0 0.0
        %2300 = vmatprep.subr.mxu0 0.0
        %2301 = vmatpush1.msra.mxu0 0.0
        %2302 = vmatprep.subr.mxu0 0.0
        %2303 = vmatpush1.msra.mxu0 0.0
        %2304 = vmatprep.subr.mxu0 0.0
        %2305 = vmatpush1.msra.mxu0 0.0
        %2306 = vmatprep.subr.mxu0 0.0
        %2307 = vmatpush1.msra.mxu0 0.0
        %2308 = vmatprep.subr.mxu0 0.0
        %2309 = vmatpush1.msra.mxu0 0.0
        %2310 = vmatprep.subr.mxu0 0.0
        %2311 = vmatpush1.msra.mxu0 0.0
        %2312 = vmatprep.subr.mxu0 0.0
        %2313 = vmatpush1.msra.mxu0 0.0
        %2314 = vmatprep.subr.mxu0 0.0
        %2315 = vmatpush1.msra.mxu0 0.0
        %2316 = vmatprep.subr.mxu0 0.0
        %2317 = vmatpush1.msra.mxu0 0.0
        %2318 = vmatprep.subr.mxu0 0.0
        %2319 = vmatpush1.msra.mxu0 0.0
        %2320 = vmatprep.subr.mxu0 0.0
        %2321 = vmatpush1.msra.mxu0 0.0
        %2322 = vmatprep.subr.mxu0 0.0
        %2323 = vmatpush1.msra.mxu0 0.0
        %2324 = vmatprep.subr.mxu0 0.0
        %2325 = vmatpush1.msra.mxu0 0.0
        %2326 = vmatprep.subr.mxu0 0.0
        %2327 = vmatpush1.msra.mxu0 0.0
        %2328 = vmatprep.subr.mxu0 0.0
        %2329 = vmatpush1.msra.mxu0 0.0
        %2330 = vmatprep.subr.mxu0 0.0
        %2331 = vmatpush1.msra.mxu0 0.0
        %2332 = vmatprep.subr.mxu0 0.0
        %2333 = vmatpush1.msra.mxu0 0.0
        %2334 = vmatprep.subr.mxu0 0.0
        %2335 = vmatpush1.msra.mxu0 0.0
        %2336 = vmatprep.subr.mxu0 0.0
        %2337 = vmatpush1.msra.mxu0 0.0
        %2338 = vmatprep.subr.mxu0 0.0
        %2339 = vmatpush1.msra.mxu0 0.0
        %2340 = vmatprep.subr.mxu0 0.0
        %2341 = vmatpush1.msra.mxu0 0.0
        %2342 = vmatprep.subr.mxu0 0.0
        %2343 = vmatpush1.msra.mxu0 0.0
        %2344 = vmatprep.subr.mxu0 0.0
        %2345 = vmatpush1.msra.mxu0 0.0
        %2346 = vmatprep.subr.mxu0 0.0
        %2347 = vmatpush1.msra.mxu0 0.0
        %2348 = vmatprep.subr.mxu0 0.0
        %2349 = vmatpush1.msra.mxu0 0.0
        %2350 = vmatprep.subr.mxu0 0.0
        %2351 = vmatpush1.msra.mxu0 0.0
        %2352 = vmatprep.mubr.f32.mxu0 0.0
        %2353 = vmatmul.mubr.f32.gmra.mrb[0].mxu0 %v1102
        %v2354 = vpop.f32.mrb[0].mxu0
        %v2355 = vadd.f32 %v2286, %v2354
        %v2356 = vpop.f32.mrb[0].mxu0
        %2357 = vmatprep.mubr.f32.mxu0 0.0
        %2358 = vmatmul.mubr.f32.gmra.mrb[0].mxu0 %v1105
        %v2359 = vpop.f32.mrb[0].mxu0
        %v2360 = vadd.f32 %v2287, %v2359
        %v2361 = vpop.f32.mrb[0].mxu0
        %2362 = vdwg.mxu0
        %v2363 = vld [vmem:[%s18] sm:$0x7]
        %v2364 = vlaneseq
        %v2365 = vshrl.u32 %v2364, 7
        %v2366 = vsub.s32 0, %v2365
        %v2367 = vrot.slane %v2363, %v2366
        %v2368 = vmul.f32 %v2235, %v2367
        %v2369 = vmul.f32 %v2236, %v2367
        %v2370 = vlaneseq
        %v2371 = vshrl.u32 %v2370, 7
        %v2372 = vsub.s32 1, %v2371
        %v2373 = vrot.slane %v2363, %v2372
        %2375 = vrot.lane.b32.xlu0 %v2373, 1
        %v2376 = vpop.permute.xlu0 %2375
        %v2378 = vmul.f32 %v2235, %v2376
        %v2379 = vmul.f32 %v2236, %v2376
        %2382 = vrot.lane.b32.xlu0 %v2378, 127
        %v2383 = vpop.permute.xlu0 %2382
        %2384 = vrot.lane.b32.xlu0 %v2379, 127
        %v2385 = vpop.permute.xlu0 %2384
        %v2388 = vadd.f32 %v2368, %v2383
        %v2389 = vadd.f32 %v2369, %v2385
        %v2390 = vlaneseq
        %v2391 = vshrl.u32 %v2390, 7
        %v2392 = vsub.s32 2, %v2391
        %v2393 = vrot.slane %v2363, %v2392
        %2395 = vrot.lane.b32.xlu0 %v2393, 2
        %v2396 = vpop.permute.xlu0 %2395
        %v2398 = vmul.f32 %v2235, %v2396
        %v2399 = vmul.f32 %v2236, %v2396
        %2402 = vrot.lane.b32.xlu0 %v2398, 126
        %v2403 = vpop.permute.xlu0 %2402
        %2404 = vrot.lane.b32.xlu0 %v2399, 126
        %v2405 = vpop.permute.xlu0 %2404
        %v2408 = vadd.f32 %v2388, %v2403
        %v2409 = vadd.f32 %v2389, %v2405
        %v2410 = vadd.f32 %v2355, %v2408
        %v2411 = vadd.f32 %v2360, %v2409
        %v2412 = vld [vmem:[#allocation2] sm:$0x1]
        %v2414 = vlaneseq
        %v2415 = vshrl.u32 %v2414, 7
        %v2416 = vsub.s32 0, %v2415
        %v2417 = vrot.slane %v2412, %v2416
        %v2419 = vadd.f32 %v2410, %v2417
        %v2420 = vadd.f32 %v2411, %v2417
        %v2421 = vld [vmem:[%s20] sm:$0xff]
        %v2422 = vld [vmem:[%s20 + $0x8] sm:$0xff]
        %v2423 = vld [vmem:[%s20 + $0x10] sm:$0xff]
        %v2424 = vld [vmem:[%s20 + $0x18] sm:$0xff]
        %v2425 = vld [vmem:[#allocation3] sm:$0x1]
        %v2427 = vlaneseq
        %v2428 = vshrl.u32 %v2427, 7
        %v2429 = vsub.s32 0, %v2428
        %v2430 = vrot.slane %v2425, %v2429
        %2432 = vmatprep.subr.mxu0 0.0
        %2433 = vmatpush1.msra.mxu0 %v2421
        %2434 = vmatprep.subr.mxu0 0.0
        %2435 = vmatpush1.msra.mxu0 %v2422
        %2436 = vmatprep.subr.mxu0 0.0
        %2437 = vmatpush1.msra.mxu0 %v2423
        %2438 = vmatprep.subr.mxu0 0.0
        %2439 = vmatpush1.msra.mxu0 %v2424
        %2440 = vmatprep.subr.mxu0 0.0
        %2441 = vmatpush1.msra.mxu0 0.0
        %2442 = vmatprep.subr.mxu0 0.0
        %2443 = vmatpush1.msra.mxu0 0.0
        %2444 = vmatprep.subr.mxu0 0.0
        %2445 = vmatpush1.msra.mxu0 0.0
        %2446 = vmatprep.subr.mxu0 0.0
        %2447 = vmatpush1.msra.mxu0 0.0
        %2448 = vmatprep.subr.mxu0 0.0
        %2449 = vmatpush1.msra.mxu0 0.0
        %2450 = vmatprep.subr.mxu0 0.0
        %2451 = vmatpush1.msra.mxu0 0.0
        %2452 = vmatprep.subr.mxu0 0.0
        %2453 = vmatpush1.msra.mxu0 0.0
        %2454 = vmatprep.subr.mxu0 0.0
        %2455 = vmatpush1.msra.mxu0 0.0
        %2456 = vmatprep.subr.mxu0 0.0
        %2457 = vmatpush1.msra.mxu0 0.0
        %2458 = vmatprep.subr.mxu0 0.0
        %2459 = vmatpush1.msra.mxu0 0.0
        %2460 = vmatprep.subr.mxu0 0.0
        %2461 = vmatpush1.msra.mxu0 0.0
        %2462 = vmatprep.subr.mxu0 0.0
        %2463 = vmatpush1.msra.mxu0 0.0
        %2464 = vmatprep.subr.mxu0 0.0
        %2465 = vmatpush1.msra.mxu0 0.0
        %2466 = vmatprep.subr.mxu0 0.0
        %2467 = vmatpush1.msra.mxu0 0.0
        %2468 = vmatprep.subr.mxu0 0.0
        %2469 = vmatpush1.msra.mxu0 0.0
        %2470 = vmatprep.subr.mxu0 0.0
        %2471 = vmatpush1.msra.mxu0 0.0
        %2472 = vmatprep.subr.mxu0 0.0
        %2473 = vmatpush1.msra.mxu0 0.0
        %2474 = vmatprep.subr.mxu0 0.0
        %2475 = vmatpush1.msra.mxu0 0.0
        %2476 = vmatprep.subr.mxu0 0.0
        %2477 = vmatpush1.msra.mxu0 0.0
        %2478 = vmatprep.subr.mxu0 0.0
        %2479 = vmatpush1.msra.mxu0 0.0
        %2480 = vmatprep.subr.mxu0 0.0
        %2481 = vmatpush1.msra.mxu0 0.0
        %2482 = vmatprep.subr.mxu0 0.0
        %2483 = vmatpush1.msra.mxu0 0.0
        %2484 = vmatprep.subr.mxu0 0.0
        %2485 = vmatpush1.msra.mxu0 0.0
        %2486 = vmatprep.subr.mxu0 0.0
        %2487 = vmatpush1.msra.mxu0 0.0
        %2488 = vmatprep.subr.mxu0 0.0
        %2489 = vmatpush1.msra.mxu0 0.0
        %2490 = vmatprep.subr.mxu0 0.0
        %2491 = vmatpush1.msra.mxu0 0.0
        %2492 = vmatprep.subr.mxu0 0.0
        %2493 = vmatpush1.msra.mxu0 0.0
        %2494 = vmatprep.subr.mxu0 0.0
        %2495 = vmatpush1.msra.mxu0 0.0
        %2496 = vmatprep.mubr.f32.mxu0 0.0
        %2497 = vmatmul.mubr.f32.gmra.mrb[0].mxu0 %v1102
        %v2498 = vpop.f32.mrb[0].mxu0
        %v2499 = vadd.f32 %v2430, %v2498
        %v2500 = vpop.f32.mrb[0].mxu0
        %2501 = vmatprep.mubr.f32.mxu0 0.0
        %2502 = vmatmul.mubr.f32.gmra.mrb[0].mxu0 %v1105
        %v2503 = vpop.f32.mrb[0].mxu0
        %v2504 = vadd.f32 %v2430, %v2503
        %v2505 = vpop.f32.mrb[0].mxu0
        %2506 = vdwg.mxu0
        %vm2507 = vcmask 23552
        %2508 = vst.msk [vmem:[%s1028] sm:$0xff] %vm2507, %v2235
        %2509 = vst.msk [vmem:[%s1028 + $0x8] sm:$0xff] %vm2507, %v2236
        %vm2510 = vcmask 7168
        %2511 = vst.msk [vmem:[%s1037] sm:$0xff] %vm2510, %v2419
        %2512 = vst.msk [vmem:[%s1037 + $0x8] sm:$0xff] %vm2510, %v2420
        %2513 = vst.msk [vmem:[%s1046] sm:$0xff] %vm2510, %v2499
        %2514 = vst.msk [vmem:[%s1046 + $0x8] sm:$0xff] %vm2510, %v2504
        %v2515 = vld [vmem:[#allocation6] sm:$0xff]
        %v2516 = vld [vmem:[#allocation6 + $0x8] sm:$0xff]
        %v2517 = vld [vmem:[#allocation6 + $0x10] sm:$0xff]
        %v2518 = vld [vmem:[#allocation6 + $0x18] sm:$0xff]
        %v2519 = vld [vmem:[%s9] sm:$0x7]
        %2521 = vset.pattern.permute.xlu0 0
        %2522 = vperm.xlu0 %2521, %v1081
        %v2523 = vpop.permute.xlu0 %2522
        %2526 = vset.pattern.permute.xlu0 0
        %2527 = vperm.xlu0 %2526, %v1082
        %v2528 = vpop.permute.xlu0 %2527
        %2531 = vset.pattern.permute.xlu0 0
        %2532 = vperm.xlu0 %2531, %v1083
        %v2533 = vpop.permute.xlu0 %2532
        %v2535 = vlaneseq
        %v2536 = vshrl.u32 %v2535, 7
        %v2537 = vsub.s32 0, %v2536
        %v2538 = vrot.slane %v2519, %v2537
        %v2539 = vmul.f32 %v2523, %v2538
        %v2540 = vmul.f32 %v2528, %v2538
        %v2541 = vmul.f32 %v2533, %v2538
        %2542 = vset.pattern.permute.xlu0 1
        %2543 = vperm.xlu0 %2542, %v1081
        %v2544 = vpop.permute.xlu0 %2543
        %2546 = vset.pattern.permute.xlu0 1
        %2547 = vperm.xlu0 %2546, %v1082
        %v2548 = vpop.permute.xlu0 %2547
        %2550 = vset.pattern.permute.xlu0 1
        %2551 = vperm.xlu0 %2550, %v1083
        %v2552 = vpop.permute.xlu0 %2551
        %v2554 = vlaneseq
        %v2555 = vshrl.u32 %v2554, 7
        %v2556 = vsub.s32 1, %v2555
        %v2557 = vrot.slane %v2519, %v2556
        %v2558 = vmul.f32 %v2544, %v2557
        %v2559 = vmul.f32 %v2548, %v2557
        %v2560 = vmul.f32 %v2552, %v2557
        %v2561 = vadd.f32 %v2539, %v2558
        %v2562 = vadd.f32 %v2540, %v2559
        %v2563 = vadd.f32 %v2541, %v2560
        %2564 = vset.pattern.permute.xlu0 2
        %2565 = vperm.xlu0 %2564, %v1081
        %v2566 = vpop.permute.xlu0 %2565
        %2568 = vset.pattern.permute.xlu0 2
        %2569 = vperm.xlu0 %2568, %v1082
        %v2570 = vpop.permute.xlu0 %2569
        %2572 = vset.pattern.permute.xlu0 2
        %2573 = vperm.xlu0 %2572, %v1083
        %v2574 = vpop.permute.xlu0 %2573
        %v2576 = vlaneseq
        %v2577 = vshrl.u32 %v2576, 7
        %v2578 = vsub.s32 2, %v2577
        %v2579 = vrot.slane %v2519, %v2578
        %v2580 = vmul.f32 %v2566, %v2579
        %v2581 = vmul.f32 %v2570, %v2579
        %v2582 = vmul.f32 %v2574, %v2579
        %v2583 = vadd.f32 %v2561, %v2580
        %v2584 = vadd.f32 %v2562, %v2581
        %v2585 = vadd.f32 %v2563, %v2582
        %2586 = vmatprep.subr.mxu0 0.0
        %2587 = vmatpush1.msra.mxu0 %v2515
        %2588 = vmatprep.subr.mxu0 0.0
        %2589 = vmatpush1.msra.mxu0 %v2516
        %2590 = vmatprep.subr.mxu0 0.0
        %2591 = vmatpush1.msra.mxu0 %v2517
        %2592 = vmatprep.subr.mxu0 0.0
        %2593 = vmatpush1.msra.mxu0 %v2518
        %2594 = vmatprep.subr.mxu0 0.0
        %2595 = vmatpush1.msra.mxu0 0.0
        %2596 = vmatprep.subr.mxu0 0.0
        %2597 = vmatpush1.msra.mxu0 0.0
        %2598 = vmatprep.subr.mxu0 0.0
        %2599 = vmatpush1.msra.mxu0 0.0
        %2600 = vmatprep.subr.mxu0 0.0
        %2601 = vmatpush1.msra.mxu0 0.0
        %2602 = vmatprep.subr.mxu0 0.0
        %2603 = vmatpush1.msra.mxu0 0.0
        %2604 = vmatprep.subr.mxu0 0.0
        %2605 = vmatpush1.msra.mxu0 0.0
        %2606 = vmatprep.subr.mxu0 0.0
        %2607 = vmatpush1.msra.mxu0 0.0
        %2608 = vmatprep.subr.mxu0 0.0
        %2609 = vmatpush1.msra.mxu0 0.0
        %2610 = vmatprep.subr.mxu0 0.0
        %2611 = vmatpush1.msra.mxu0 0.0
        %2612 = vmatprep.subr.mxu0 0.0
        %2613 = vmatpush1.msra.mxu0 0.0
        %2614 = vmatprep.subr.mxu0 0.0
        %2615 = vmatpush1.msra.mxu0 0.0
        %2616 = vmatprep.subr.mxu0 0.0
        %2617 = vmatpush1.msra.mxu0 0.0
        %2618 = vmatprep.subr.mxu0 0.0
        %2619 = vmatpush1.msra.mxu0 0.0
        %2620 = vmatprep.subr.mxu0 0.0
        %2621 = vmatpush1.msra.mxu0 0.0
        %2622 = vmatprep.subr.mxu0 0.0
        %2623 = vmatpush1.msra.mxu0 0.0
        %2624 = vmatprep.subr.mxu0 0.0
        %2625 = vmatpush1.msra.mxu0 0.0
        %2626 = vmatprep.subr.mxu0 0.0
        %2627 = vmatpush1.msra.mxu0 0.0
        %2628 = vmatprep.subr.mxu0 0.0
        %2629 = vmatpush1.msra.mxu0 0.0
        %2630 = vmatprep.subr.mxu0 0.0
        %2631 = vmatpush1.msra.mxu0 0.0
        %2632 = vmatprep.subr.mxu0 0.0
        %2633 = vmatpush1.msra.mxu0 0.0
        %2634 = vmatprep.subr.mxu0 0.0
        %2635 = vmatpush1.msra.mxu0 0.0
        %2636 = vmatprep.subr.mxu0 0.0
        %2637 = vmatpush1.msra.mxu0 0.0
        %2638 = vmatprep.subr.mxu0 0.0
        %2639 = vmatpush1.msra.mxu0 0.0
        %2640 = vmatprep.subr.mxu0 0.0
        %2641 = vmatpush1.msra.mxu0 0.0
        %2642 = vmatprep.subr.mxu0 0.0
        %2643 = vmatpush1.msra.mxu0 0.0
        %2644 = vmatprep.subr.mxu0 0.0
        %2645 = vmatpush1.msra.mxu0 0.0
        %2646 = vmatprep.subr.mxu0 0.0
        %2647 = vmatpush1.msra.mxu0 0.0
        %2648 = vmatprep.subr.mxu0 0.0
        %2649 = vmatpush1.msra.mxu0 0.0
        %2650 = vmatprep.mubr.f32.mxu0 0.0
        %2651 = vmatmul.mubr.f32.gmra.mrb[0].mxu0 %v1185
        %v2652 = vpop.f32.mrb[0].mxu0
        %v2653 = vadd.f32 %v2583, %v2652
        %v2654 = vpop.f32.mrb[0].mxu0
        %2655 = vmatprep.mubr.f32.mxu0 0.0
        %2656 = vmatmul.mubr.f32.gmra.mrb[0].mxu0 %v1188
        %v2657 = vpop.f32.mrb[0].mxu0
        %v2658 = vadd.f32 %v2584, %v2657
        %v2659 = vpop.f32.mrb[0].mxu0
        %2660 = vmatprep.mubr.f32.mxu0 0.0
        %2661 = vmatmul.mubr.f32.gmra.mrb[0].mxu0 %v1191
        %v2662 = vpop.f32.mrb[0].mxu0
        %v2663 = vadd.f32 %v2585, %v2662
        %v2664 = vpop.f32.mrb[0].mxu0
        %2665 = vdwg.mxu0
        %v2666 = vld [vmem:[%s10] sm:$0x7]
        %2668 = vset.pattern.permute.xlu0 0
        %2669 = vperm.xlu0 %2668, %v1836
        %v2670 = vpop.permute.xlu0 %2669
        %2673 = vset.pattern.permute.xlu0 0
        %2674 = vperm.xlu0 %2673, %v1841
        %v2675 = vpop.permute.xlu0 %2674
        %2678 = vset.pattern.permute.xlu0 0
        %2679 = vperm.xlu0 %2678, %v1846
        %v2680 = vpop.permute.xlu0 %2679
        %v2682 = vlaneseq
        %v2683 = vshrl.u32 %v2682, 7
        %v2684 = vsub.s32 0, %v2683
        %v2685 = vrot.slane %v2666, %v2684
        %v2686 = vmul.f32 %v2670, %v2685
        %v2687 = vmul.f32 %v2675, %v2685
        %v2688 = vmul.f32 %v2680, %v2685
        %2689 = vset.pattern.permute.xlu0 1
        %2690 = vperm.xlu0 %2689, %v1836
        %v2691 = vpop.permute.xlu0 %2690
        %2693 = vset.pattern.permute.xlu0 1
        %2694 = vperm.xlu0 %2693, %v1841
        %v2695 = vpop.permute.xlu0 %2694
        %2697 = vset.pattern.permute.xlu0 1
        %2698 = vperm.xlu0 %2697, %v1846
        %v2699 = vpop.permute.xlu0 %2698
        %v2701 = vlaneseq
        %v2702 = vshrl.u32 %v2701, 7
        %v2703 = vsub.s32 1, %v2702
        %v2704 = vrot.slane %v2666, %v2703
        %v2705 = vmul.f32 %v2691, %v2704
        %v2706 = vmul.f32 %v2695, %v2704
        %v2707 = vmul.f32 %v2699, %v2704
        %v2708 = vadd.f32 %v2686, %v2705
        %v2709 = vadd.f32 %v2687, %v2706
        %v2710 = vadd.f32 %v2688, %v2707
        %2711 = vset.pattern.permute.xlu0 2
        %2712 = vperm.xlu0 %2711, %v1836
        %v2713 = vpop.permute.xlu0 %2712
        %2715 = vset.pattern.permute.xlu0 2
        %2716 = vperm.xlu0 %2715, %v1841
        %v2717 = vpop.permute.xlu0 %2716
        %2719 = vset.pattern.permute.xlu0 2
        %2720 = vperm.xlu0 %2719, %v1846
        %v2721 = vpop.permute.xlu0 %2720
        %v2723 = vlaneseq
        %v2724 = vshrl.u32 %v2723, 7
        %v2725 = vsub.s32 2, %v2724
        %v2726 = vrot.slane %v2666, %v2725
        %v2727 = vmul.f32 %v2713, %v2726
        %v2728 = vmul.f32 %v2717, %v2726
        %v2729 = vmul.f32 %v2721, %v2726
        %v2730 = vadd.f32 %v2708, %v2727
        %v2731 = vadd.f32 %v2709, %v2728
        %v2732 = vadd.f32 %v2710, %v2729
        %v2733 = vadd.f32 %v2653, %v2730
        %v2734 = vadd.f32 %v2658, %v2731
        %v2735 = vadd.f32 %v2663, %v2732
        %v2736 = vld [vmem:[%s11] sm:$0x1]
        %v2738 = vlaneseq
        %v2739 = vshrl.u32 %v2738, 7
        %v2740 = vsub.s32 0, %v2739
        %v2741 = vrot.slane %v2736, %v2740
        %v2743 = vadd.f32 %v2733, %v2741
        %v2744 = vadd.f32 %v2734, %v2741
        %v2745 = vadd.f32 %v2735, %v2741
        %v2746 = vmax.f32 %v2743, 0.0
        %v2747 = vmax.f32 %v2744, 0.0
        %v2748 = vmax.f32 %v2745, 0.0
        %v2749 = vld [vmem:[%s12] sm:$0xff]
        %v2750 = vld [vmem:[%s12 + $0x8] sm:$0xff]
        %v2751 = vld [vmem:[%s12 + $0x10] sm:$0xff]
        %v2752 = vld [vmem:[%s12 + $0x18] sm:$0xff]
        %v2753 = vld [vmem:[%s12 + $0x20] sm:$0x3f]
        %v2754 = vld [vmem:[%s13] sm:$0x1]
        %v2756 = vlaneseq
        %v2757 = vshrl.u32 %v2756, 7
        %v2758 = vsub.s32 0, %v2757
        %v2759 = vrot.slane %v2754, %v2758
        %v2762 = vsel %vm2051, %v2746, 0
        %v2765 = vsel %vm2051, %v2747, 0
        %v2768 = vsel %vm2051, %v2748, 0
        %v2771 = vsel %vm2058, %v2753, 0
        %2773 = vmatprep.subr.mxu0 0.0
        %2774 = vmatpush1.msra.mxu0 %v2749
        %2775 = vmatprep.subr.mxu0 0.0
        %2776 = vmatpush1.msra.mxu0 %v2750
        %2777 = vmatprep.subr.mxu0 0.0
        %2778 = vmatpush1.msra.mxu0 %v2751
        %2779 = vmatprep.subr.mxu0 0.0
        %2780 = vmatpush1.msra.mxu0 %v2752
        %2781 = vmatprep.subr.mxu0 0.0
        %2782 = vmatpush1.msra.mxu0 %v2771
        %2783 = vmatprep.subr.mxu0 0.0
        %2784 = vmatpush1.msra.mxu0 0.0
        %2785 = vmatprep.subr.mxu0 0.0
        %2786 = vmatpush1.msra.mxu0 0.0
        %2787 = vmatprep.subr.mxu0 0.0
        %2788 = vmatpush1.msra.mxu0 0.0
        %2789 = vmatprep.subr.mxu0 0.0
        %2790 = vmatpush1.msra.mxu0 0.0
        %2791 = vmatprep.subr.mxu0 0.0
        %2792 = vmatpush1.msra.mxu0 0.0
        %2793 = vmatprep.subr.mxu0 0.0
        %2794 = vmatpush1.msra.mxu0 0.0
        %2795 = vmatprep.subr.mxu0 0.0
        %2796 = vmatpush1.msra.mxu0 0.0
        %2797 = vmatprep.subr.mxu0 0.0
        %2798 = vmatpush1.msra.mxu0 0.0
        %2799 = vmatprep.subr.mxu0 0.0
        %2800 = vmatpush1.msra.mxu0 0.0
        %2801 = vmatprep.subr.mxu0 0.0
        %2802 = vmatpush1.msra.mxu0 0.0
        %2803 = vmatprep.subr.mxu0 0.0
        %2804 = vmatpush1.msra.mxu0 0.0
        %2805 = vmatprep.subr.mxu0 0.0
        %2806 = vmatpush1.msra.mxu0 0.0
        %2807 = vmatprep.subr.mxu0 0.0
        %2808 = vmatpush1.msra.mxu0 0.0
        %2809 = vmatprep.subr.mxu0 0.0
        %2810 = vmatpush1.msra.mxu0 0.0
        %2811 = vmatprep.subr.mxu0 0.0
        %2812 = vmatpush1.msra.mxu0 0.0
        %2813 = vmatprep.subr.mxu0 0.0
        %2814 = vmatpush1.msra.mxu0 0.0
        %2815 = vmatprep.subr.mxu0 0.0
        %2816 = vmatpush1.msra.mxu0 0.0
        %2817 = vmatprep.subr.mxu0 0.0
        %2818 = vmatpush1.msra.mxu0 0.0
        %2819 = vmatprep.subr.mxu0 0.0
        %2820 = vmatpush1.msra.mxu0 0.0
        %2821 = vmatprep.subr.mxu0 0.0
        %2822 = vmatpush1.msra.mxu0 0.0
        %2823 = vmatprep.subr.mxu0 0.0
        %2824 = vmatpush1.msra.mxu0 0.0
        %2825 = vmatprep.subr.mxu0 0.0
        %2826 = vmatpush1.msra.mxu0 0.0
        %2827 = vmatprep.subr.mxu0 0.0
        %2828 = vmatpush1.msra.mxu0 0.0
        %2829 = vmatprep.subr.mxu0 0.0
        %2830 = vmatpush1.msra.mxu0 0.0
        %2831 = vmatprep.subr.mxu0 0.0
        %2832 = vmatpush1.msra.mxu0 0.0
        %2833 = vmatprep.subr.mxu0 0.0
        %2834 = vmatpush1.msra.mxu0 0.0
        %2835 = vmatprep.subr.mxu0 0.0
        %2836 = vmatpush1.msra.mxu0 0.0
        %2837 = vmatprep.mubr.f32.mxu0 0.0
        %2838 = vmatmul.mubr.f32.gmra.mrb[0].mxu0 %v2762
        %v2839 = vpop.f32.mrb[0].mxu0
        %v2840 = vadd.f32 %v2759, %v2839
        %v2841 = vpop.f32.mrb[0].mxu0
        %2842 = vmatprep.mubr.f32.mxu0 0.0
        %2843 = vmatmul.mubr.f32.gmra.mrb[0].mxu0 %v2765
        %v2844 = vpop.f32.mrb[0].mxu0
        %v2845 = vadd.f32 %v2759, %v2844
        %v2846 = vpop.f32.mrb[0].mxu0
        %2847 = vmatprep.mubr.f32.mxu0 0.0
        %2848 = vmatmul.mubr.f32.gmra.mrb[0].mxu0 %v2768
        %v2849 = vpop.f32.mrb[0].mxu0
        %v2850 = vadd.f32 %v2759, %v2849
        %v2851 = vpop.f32.mrb[0].mxu0
        %2852 = vdwg.mxu0
        %v2853 = vmax.f32 %v2840, 0.0
        %v2854 = vmax.f32 %v2845, 0.0
        %v2855 = vmax.f32 %v2850, 0.0
        %v2856 = vld [vmem:[%s14] sm:$0xff]
        %v2857 = vld [vmem:[%s14 + $0x8] sm:$0xff]
        %v2858 = vld [vmem:[%s14 + $0x10] sm:$0xff]
        %v2859 = vld [vmem:[%s14 + $0x18] sm:$0xff]
        %v2860 = vld [vmem:[%s14 + $0x20] sm:$0x3f]
        %v2861 = vld [vmem:[%s15] sm:$0x1]
        %v2863 = vlaneseq
        %v2864 = vshrl.u32 %v2863, 7
        %v2865 = vsub.s32 0, %v2864
        %v2866 = vrot.slane %v2861, %v2865
        %v2869 = vsel %vm2051, %v2853, 0
        %v2872 = vsel %vm2051, %v2854, 0
        %v2875 = vsel %vm2051, %v2855, 0
        %v2878 = vsel %vm2058, %v2860, 0
        %2880 = vmatprep.subr.mxu0 0.0
        %2881 = vmatpush1.msra.mxu0 %v2856
        %2882 = vmatprep.subr.mxu0 0.0
        %2883 = vmatpush1.msra.mxu0 %v2857
        %2884 = vmatprep.subr.mxu0 0.0
        %2885 = vmatpush1.msra.mxu0 %v2858
        %2886 = vmatprep.subr.mxu0 0.0
        %2887 = vmatpush1.msra.mxu0 %v2859
        %2888 = vmatprep.subr.mxu0 0.0
        %2889 = vmatpush1.msra.mxu0 %v2878
        %2890 = vmatprep.subr.mxu0 0.0
        %2891 = vmatpush1.msra.mxu0 0.0
        %2892 = vmatprep.subr.mxu0 0.0
        %2893 = vmatpush1.msra.mxu0 0.0
        %2894 = vmatprep.subr.mxu0 0.0
        %2895 = vmatpush1.msra.mxu0 0.0
        %2896 = vmatprep.subr.mxu0 0.0
        %2897 = vmatpush1.msra.mxu0 0.0
        %2898 = vmatprep.subr.mxu0 0.0
        %2899 = vmatpush1.msra.mxu0 0.0
        %2900 = vmatprep.subr.mxu0 0.0
        %2901 = vmatpush1.msra.mxu0 0.0
        %2902 = vmatprep.subr.mxu0 0.0
        %2903 = vmatpush1.msra.mxu0 0.0
        %2904 = vmatprep.subr.mxu0 0.0
        %2905 = vmatpush1.msra.mxu0 0.0
        %2906 = vmatprep.subr.mxu0 0.0
        %2907 = vmatpush1.msra.mxu0 0.0
        %2908 = vmatprep.subr.mxu0 0.0
        %2909 = vmatpush1.msra.mxu0 0.0
        %2910 = vmatprep.subr.mxu0 0.0
        %2911 = vmatpush1.msra.mxu0 0.0
        %2912 = vmatprep.subr.mxu0 0.0
        %2913 = vmatpush1.msra.mxu0 0.0
        %2914 = vmatprep.subr.mxu0 0.0
        %2915 = vmatpush1.msra.mxu0 0.0
        %2916 = vmatprep.subr.mxu0 0.0
        %2917 = vmatpush1.msra.mxu0 0.0
        %2918 = vmatprep.subr.mxu0 0.0
        %2919 = vmatpush1.msra.mxu0 0.0
        %2920 = vmatprep.subr.mxu0 0.0
        %2921 = vmatpush1.msra.mxu0 0.0
        %2922 = vmatprep.subr.mxu0 0.0
        %2923 = vmatpush1.msra.mxu0 0.0
        %2924 = vmatprep.subr.mxu0 0.0
        %2925 = vmatpush1.msra.mxu0 0.0
        %2926 = vmatprep.subr.mxu0 0.0
        %2927 = vmatpush1.msra.mxu0 0.0
        %2928 = vmatprep.subr.mxu0 0.0
        %2929 = vmatpush1.msra.mxu0 0.0
        %2930 = vmatprep.subr.mxu0 0.0
        %2931 = vmatpush1.msra.mxu0 0.0
        %2932 = vmatprep.subr.mxu0 0.0
        %2933 = vmatpush1.msra.mxu0 0.0
        %2934 = vmatprep.subr.mxu0 0.0
        %2935 = vmatpush1.msra.mxu0 0.0
        %2936 = vmatprep.subr.mxu0 0.0
        %2937 = vmatpush1.msra.mxu0 0.0
        %2938 = vmatprep.subr.mxu0 0.0
        %2939 = vmatpush1.msra.mxu0 0.0
        %2940 = vmatprep.subr.mxu0 0.0
        %2941 = vmatpush1.msra.mxu0 0.0
        %2942 = vmatprep.subr.mxu0 0.0
        %2943 = vmatpush1.msra.mxu0 0.0
        %2944 = vmatprep.mubr.f32.mxu0 0.0
        %2945 = vmatmul.mubr.f32.gmra.mrb[0].mxu0 %v2869
        %v2946 = vpop.f32.mrb[0].mxu0
        %v2947 = vadd.f32 %v2866, %v2946
        %v2948 = vpop.f32.mrb[0].mxu0
        %2949 = vmatprep.mubr.f32.mxu0 0.0
        %2950 = vmatmul.mubr.f32.gmra.mrb[0].mxu0 %v2872
        %v2951 = vpop.f32.mrb[0].mxu0
        %v2952 = vadd.f32 %v2866, %v2951
        %v2953 = vpop.f32.mrb[0].mxu0
        %2954 = vmatprep.mubr.f32.mxu0 0.0
        %2955 = vmatmul.mubr.f32.gmra.mrb[0].mxu0 %v2875
        %v2956 = vpop.f32.mrb[0].mxu0
        %v2957 = vadd.f32 %v2866, %v2956
        %v2958 = vpop.f32.mrb[0].mxu0
        %2959 = vdwg.mxu0
        %v2960 = vadd.f32 %v1836, %v2947
        %v2961 = vadd.f32 %v1841, %v2952
        %v2962 = vadd.f32 %v1846, %v2957
        %v2963 = vld [vmem:[%s16] sm:$0xff]
        %v2964 = vld [vmem:[%s16 + $0x8] sm:$0xff]
        %v2965 = vld [vmem:[%s16 + $0x10] sm:$0xff]
        %v2966 = vld [vmem:[%s16 + $0x18] sm:$0xff]
        %v2967 = vld [vmem:[%s17] sm:$0x7]
        %v2968 = vlaneseq
        %v2969 = vshrl.u32 %v2968, 7
        %v2970 = vsub.s32 0, %v2969
        %v2971 = vrot.slane %v2967, %v2970
        %v2972 = vmul.f32 %v1081, %v2971
        %v2973 = vmul.f32 %v1082, %v2971
        %v2974 = vmul.f32 %v1083, %v2971
        %v2975 = vlaneseq
        %v2976 = vshrl.u32 %v2975, 7
        %v2977 = vsub.s32 1, %v2976
        %v2978 = vrot.slane %v2967, %v2977
        %2980 = vrot.lane.b32.xlu0 %v2978, 1
        %v2981 = vpop.permute.xlu0 %2980
        %v2983 = vmul.f32 %v1081, %v2981
        %v2984 = vmul.f32 %v1082, %v2981
        %v2985 = vmul.f32 %v1083, %v2981
        %2989 = vrot.lane.b32.xlu0 %v2983, 127
        %v2990 = vpop.permute.xlu0 %2989
        %2991 = vrot.lane.b32.xlu0 %v2984, 127
        %v2992 = vpop.permute.xlu0 %2991
        %2993 = vrot.lane.b32.xlu0 %v2985, 127
        %v2994 = vpop.permute.xlu0 %2993
        %v2998 = vadd.f32 %v2972, %v2990
        %v2999 = vadd.f32 %v2973, %v2992
        %v3000 = vadd.f32 %v2974, %v2994
        %v3001 = vlaneseq
        %v3002 = vshrl.u32 %v3001, 7
        %v3003 = vsub.s32 2, %v3002
        %v3004 = vrot.slane %v2967, %v3003
        %3006 = vrot.lane.b32.xlu0 %v3004, 2
        %v3007 = vpop.permute.xlu0 %3006
        %v3009 = vmul.f32 %v1081, %v3007
        %v3010 = vmul.f32 %v1082, %v3007
        %v3011 = vmul.f32 %v1083, %v3007
        %3015 = vrot.lane.b32.xlu0 %v3009, 126
        %v3016 = vpop.permute.xlu0 %3015
        %3017 = vrot.lane.b32.xlu0 %v3010, 126
        %v3018 = vpop.permute.xlu0 %3017
        %3019 = vrot.lane.b32.xlu0 %v3011, 126
        %v3020 = vpop.permute.xlu0 %3019
        %v3024 = vadd.f32 %v2998, %v3016
        %v3025 = vadd.f32 %v2999, %v3018
        %v3026 = vadd.f32 %v3000, %v3020
        %3027 = vmatprep.subr.mxu0 0.0
        %3028 = vmatpush1.msra.mxu0 %v2963
        %3029 = vmatprep.subr.mxu0 0.0
        %3030 = vmatpush1.msra.mxu0 %v2964
        %3031 = vmatprep.subr.mxu0 0.0
        %3032 = vmatpush1.msra.mxu0 %v2965
        %3033 = vmatprep.subr.mxu0 0.0
        %3034 = vmatpush1.msra.mxu0 %v2966
        %3035 = vmatprep.subr.mxu0 0.0
        %3036 = vmatpush1.msra.mxu0 0.0
        %3037 = vmatprep.subr.mxu0 0.0
        %3038 = vmatpush1.msra.mxu0 0.0
        %3039 = vmatprep.subr.mxu0 0.0
        %3040 = vmatpush1.msra.mxu0 0.0
        %3041 = vmatprep.subr.mxu0 0.0
        %3042 = vmatpush1.msra.mxu0 0.0
        %3043 = vmatprep.subr.mxu0 0.0
        %3044 = vmatpush1.msra.mxu0 0.0
        %3045 = vmatprep.subr.mxu0 0.0
        %3046 = vmatpush1.msra.mxu0 0.0
        %3047 = vmatprep.subr.mxu0 0.0
        %3048 = vmatpush1.msra.mxu0 0.0
        %3049 = vmatprep.subr.mxu0 0.0
        %3050 = vmatpush1.msra.mxu0 0.0
        %3051 = vmatprep.subr.mxu0 0.0
        %3052 = vmatpush1.msra.mxu0 0.0
        %3053 = vmatprep.subr.mxu0 0.0
        %3054 = vmatpush1.msra.mxu0 0.0
        %3055 = vmatprep.subr.mxu0 0.0
        %3056 = vmatpush1.msra.mxu0 0.0
        %3057 = vmatprep.subr.mxu0 0.0
        %3058 = vmatpush1.msra.mxu0 0.0
        %3059 = vmatprep.subr.mxu0 0.0
        %3060 = vmatpush1.msra.mxu0 0.0
        %3061 = vmatprep.subr.mxu0 0.0
        %3062 = vmatpush1.msra.mxu0 0.0
        %3063 = vmatprep.subr.mxu0 0.0
        %3064 = vmatpush1.msra.mxu0 0.0
        %3065 = vmatprep.subr.mxu0 0.0
        %3066 = vmatpush1.msra.mxu0 0.0
        %3067 = vmatprep.subr.mxu0 0.0
        %3068 = vmatpush1.msra.mxu0 0.0
        %3069 = vmatprep.subr.mxu0 0.0
        %3070 = vmatpush1.msra.mxu0 0.0
        %3071 = vmatprep.subr.mxu0 0.0
        %3072 = vmatpush1.msra.mxu0 0.0
        %3073 = vmatprep.subr.mxu0 0.0
        %3074 = vmatpush1.msra.mxu0 0.0
        %3075 = vmatprep.subr.mxu0 0.0
        %3076 = vmatpush1.msra.mxu0 0.0
        %3077 = vmatprep.subr.mxu0 0.0
        %3078 = vmatpush1.msra.mxu0 0.0
        %3079 = vmatprep.subr.mxu0 0.0
        %3080 = vmatpush1.msra.mxu0 0.0
        %3081 = vmatprep.subr.mxu0 0.0
        %3082 = vmatpush1.msra.mxu0 0.0
        %3083 = vmatprep.subr.mxu0 0.0
        %3084 = vmatpush1.msra.mxu0 0.0
        %3085 = vmatprep.subr.mxu0 0.0
        %3086 = vmatpush1.msra.mxu0 0.0
        %3087 = vmatprep.subr.mxu0 0.0
        %3088 = vmatpush1.msra.mxu0 0.0
        %3089 = vmatprep.subr.mxu0 0.0
        %3090 = vmatpush1.msra.mxu0 0.0
        %3091 = vmatprep.mubr.f32.mxu0 0.0
        %3092 = vmatmul.mubr.f32.gmra.mrb[0].mxu0 %v1185
        %v3093 = vpop.f32.mrb[0].mxu0
        %v3094 = vadd.f32 %v3024, %v3093
        %v3095 = vpop.f32.mrb[0].mxu0
        %3096 = vmatprep.mubr.f32.mxu0 0.0
        %3097 = vmatmul.mubr.f32.gmra.mrb[0].mxu0 %v1188
        %v3098 = vpop.f32.mrb[0].mxu0
        %v3099 = vadd.f32 %v3025, %v3098
        %v3100 = vpop.f32.mrb[0].mxu0
        %3101 = vmatprep.mubr.f32.mxu0 0.0
        %3102 = vmatmul.mubr.f32.gmra.mrb[0].mxu0 %v1191
        %v3103 = vpop.f32.mrb[0].mxu0
        %v3104 = vadd.f32 %v3026, %v3103
        %v3105 = vpop.f32.mrb[0].mxu0
        %3106 = vdwg.mxu0
        %v3107 = vld [vmem:[%s18] sm:$0x7]
        %v3108 = vlaneseq
        %v3109 = vshrl.u32 %v3108, 7
        %v3110 = vsub.s32 0, %v3109
        %v3111 = vrot.slane %v3107, %v3110
        %v3112 = vmul.f32 %v2960, %v3111
        %v3113 = vmul.f32 %v2961, %v3111
        %v3114 = vmul.f32 %v2962, %v3111
        %v3115 = vlaneseq
        %v3116 = vshrl.u32 %v3115, 7
        %v3117 = vsub.s32 1, %v3116
        %v3118 = vrot.slane %v3107, %v3117
        %3120 = vrot.lane.b32.xlu0 %v3118, 1
        %v3121 = vpop.permute.xlu0 %3120
        %v3123 = vmul.f32 %v2960, %v3121
        %v3124 = vmul.f32 %v2961, %v3121
        %v3125 = vmul.f32 %v2962, %v3121
        %3129 = vrot.lane.b32.xlu0 %v3123, 127
        %v3130 = vpop.permute.xlu0 %3129
        %3131 = vrot.lane.b32.xlu0 %v3124, 127
        %v3132 = vpop.permute.xlu0 %3131
        %3133 = vrot.lane.b32.xlu0 %v3125, 127
        %v3134 = vpop.permute.xlu0 %3133
        %v3138 = vadd.f32 %v3112, %v3130
        %v3139 = vadd.f32 %v3113, %v3132
        %v3140 = vadd.f32 %v3114, %v3134
        %v3141 = vlaneseq
        %v3142 = vshrl.u32 %v3141, 7
        %v3143 = vsub.s32 2, %v3142
        %v3144 = vrot.slane %v3107, %v3143
        %3146 = vrot.lane.b32.xlu0 %v3144, 2
        %v3147 = vpop.permute.xlu0 %3146
        %v3149 = vmul.f32 %v2960, %v3147
        %v3150 = vmul.f32 %v2961, %v3147
        %v3151 = vmul.f32 %v2962, %v3147
        %3155 = vrot.lane.b32.xlu0 %v3149, 126
        %v3156 = vpop.permute.xlu0 %3155
        %3157 = vrot.lane.b32.xlu0 %v3150, 126
        %v3158 = vpop.permute.xlu0 %3157
        %3159 = vrot.lane.b32.xlu0 %v3151, 126
        %v3160 = vpop.permute.xlu0 %3159
        %v3164 = vadd.f32 %v3138, %v3156
        %v3165 = vadd.f32 %v3139, %v3158
        %v3166 = vadd.f32 %v3140, %v3160
        %v3167 = vadd.f32 %v3094, %v3164
        %v3168 = vadd.f32 %v3099, %v3165
        %v3169 = vadd.f32 %v3104, %v3166
        %v3170 = vld [vmem:[#allocation2] sm:$0x1]
        %v3172 = vlaneseq
        %v3173 = vshrl.u32 %v3172, 7
        %v3174 = vsub.s32 0, %v3173
        %v3175 = vrot.slane %v3170, %v3174
        %v3177 = vadd.f32 %v3167, %v3175
        %v3178 = vadd.f32 %v3168, %v3175
        %v3179 = vadd.f32 %v3169, %v3175
        %v3180 = vld [vmem:[%s20] sm:$0xff]
        %v3181 = vld [vmem:[%s20 + $0x8] sm:$0xff]
        %v3182 = vld [vmem:[%s20 + $0x10] sm:$0xff]
        %v3183 = vld [vmem:[%s20 + $0x18] sm:$0xff]
        %v3184 = vld [vmem:[#allocation3] sm:$0x1]
        %v3186 = vlaneseq
        %v3187 = vshrl.u32 %v3186, 7
        %v3188 = vsub.s32 0, %v3187
        %v3189 = vrot.slane %v3184, %v3188
        %3191 = vmatprep.subr.mxu0 0.0
        %3192 = vmatpush1.msra.mxu0 %v3180
        %3193 = vmatprep.subr.mxu0 0.0
        %3194 = vmatpush1.msra.mxu0 %v3181
        %3195 = vmatprep.subr.mxu0 0.0
        %3196 = vmatpush1.msra.mxu0 %v3182
        %3197 = vmatprep.subr.mxu0 0.0
        %3198 = vmatpush1.msra.mxu0 %v3183
        %3199 = vmatprep.subr.mxu0 0.0
        %3200 = vmatpush1.msra.mxu0 0.0
        %3201 = vmatprep.subr.mxu0 0.0
        %3202 = vmatpush1.msra.mxu0 0.0
        %3203 = vmatprep.subr.mxu0 0.0
        %3204 = vmatpush1.msra.mxu0 0.0
        %3205 = vmatprep.subr.mxu0 0.0
        %3206 = vmatpush1.msra.mxu0 0.0
        %3207 = vmatprep.subr.mxu0 0.0
        %3208 = vmatpush1.msra.mxu0 0.0
        %3209 = vmatprep.subr.mxu0 0.0
        %3210 = vmatpush1.msra.mxu0 0.0
        %3211 = vmatprep.subr.mxu0 0.0
        %3212 = vmatpush1.msra.mxu0 0.0
        %3213 = vmatprep.subr.mxu0 0.0
        %3214 = vmatpush1.msra.mxu0 0.0
        %3215 = vmatprep.subr.mxu0 0.0
        %3216 = vmatpush1.msra.mxu0 0.0
        %3217 = vmatprep.subr.mxu0 0.0
        %3218 = vmatpush1.msra.mxu0 0.0
        %3219 = vmatprep.subr.mxu0 0.0
        %3220 = vmatpush1.msra.mxu0 0.0
        %3221 = vmatprep.subr.mxu0 0.0
        %3222 = vmatpush1.msra.mxu0 0.0
        %3223 = vmatprep.subr.mxu0 0.0
        %3224 = vmatpush1.msra.mxu0 0.0
        %3225 = vmatprep.subr.mxu0 0.0
        %3226 = vmatpush1.msra.mxu0 0.0
        %3227 = vmatprep.subr.mxu0 0.0
        %3228 = vmatpush1.msra.mxu0 0.0
        %3229 = vmatprep.subr.mxu0 0.0
        %3230 = vmatpush1.msra.mxu0 0.0
        %3231 = vmatprep.subr.mxu0 0.0
        %3232 = vmatpush1.msra.mxu0 0.0
        %3233 = vmatprep.subr.mxu0 0.0
        %3234 = vmatpush1.msra.mxu0 0.0
        %3235 = vmatprep.subr.mxu0 0.0
        %3236 = vmatpush1.msra.mxu0 0.0
        %3237 = vmatprep.subr.mxu0 0.0
        %3238 = vmatpush1.msra.mxu0 0.0
        %3239 = vmatprep.subr.mxu0 0.0
        %3240 = vmatpush1.msra.mxu0 0.0
        %3241 = vmatprep.subr.mxu0 0.0
        %3242 = vmatpush1.msra.mxu0 0.0
        %3243 = vmatprep.subr.mxu0 0.0
        %3244 = vmatpush1.msra.mxu0 0.0
        %3245 = vmatprep.subr.mxu0 0.0
        %3246 = vmatpush1.msra.mxu0 0.0
        %3247 = vmatprep.subr.mxu0 0.0
        %3248 = vmatpush1.msra.mxu0 0.0
        %3249 = vmatprep.subr.mxu0 0.0
        %3250 = vmatpush1.msra.mxu0 0.0
        %3251 = vmatprep.subr.mxu0 0.0
        %3252 = vmatpush1.msra.mxu0 0.0
        %3253 = vmatprep.subr.mxu0 0.0
        %3254 = vmatpush1.msra.mxu0 0.0
        %3255 = vmatprep.mubr.f32.mxu0 0.0
        %3256 = vmatmul.mubr.f32.gmra.mrb[0].mxu0 %v1185
        %v3257 = vpop.f32.mrb[0].mxu0
        %v3258 = vadd.f32 %v3189, %v3257
        %v3259 = vpop.f32.mrb[0].mxu0
        %3260 = vmatprep.mubr.f32.mxu0 0.0
        %3261 = vmatmul.mubr.f32.gmra.mrb[0].mxu0 %v1188
        %v3262 = vpop.f32.mrb[0].mxu0
        %v3263 = vadd.f32 %v3189, %v3262
        %v3264 = vpop.f32.mrb[0].mxu0
        %3265 = vmatprep.mubr.f32.mxu0 0.0
        %3266 = vmatmul.mubr.f32.gmra.mrb[0].mxu0 %v1191
        %v3267 = vpop.f32.mrb[0].mxu0
        %v3268 = vadd.f32 %v3189, %v3267
        %v3269 = vpop.f32.mrb[0].mxu0
        %3270 = vdwg.mxu0
        %3271 = vst.msk [vmem:[%s1055] sm:$0xff] %vm2507, %v2960
        %3272 = vst.msk [vmem:[%s1055 + $0x8] sm:$0xff] %vm2507, %v2961
        %3273 = vst.msk [vmem:[%s1055 + $0x10] sm:$0xff] %vm2507, %v2962
        %3274 = vst.msk [vmem:[%s1064] sm:$0xff] %vm2510, %v3177
        %3275 = vst.msk [vmem:[%s1064 + $0x8] sm:$0xff] %vm2510, %v3178
        %3276 = vst.msk [vmem:[%s1064 + $0x10] sm:$0xff] %vm2510, %v3179
        %3277 = vst.msk [vmem:[%s1073] sm:$0xff] %vm2510, %v3258
        %3278 = vst.msk [vmem:[%s1073 + $0x8] sm:$0xff] %vm2510, %v3263
        %3279 = vst.msk [vmem:[%s1073 + $0x10] sm:$0xff] %vm2510, %v3268
        %p3280 = scmp.lt.s32.totalorder %s49, 1
        %s3281 = scalar_select %p3280, %s49, 1
        %p3282 = scmp.lt.s32.totalorder %s50, 1
        %s3283 = scalar_select %p3282, %s50, 1
        %s3284 = smul.addr %s3283, 2
        %s3285 = smul.addr %s3281, 4
        %s3286 = sadd.s32 %s3284, %s3285
        %s3287 = smul.addr %s3286, 8
        %s3288 = scalar_lea.vmem %s22, %s3287
        %p3289 = scmp.lt.s32.totalorder %s49, 1
        %s3290 = scalar_select %p3289, %s49, 1
        %p3291 = scmp.lt.s32.totalorder %s50, 1
        %s3292 = scalar_select %p3291, %s50, 1
        %s3293 = smul.addr %s3292, 2
        %s3294 = smul.addr %s3290, 4
        %s3295 = sadd.s32 %s3293, %s3294
        %s3296 = smul.addr %s3295, 8
        %s3297 = scalar_lea.vmem %s23, %s3296
        %p3298 = scmp.lt.s32.totalorder %s49, 1
        %s3299 = scalar_select %p3298, %s49, 1
        %p3300 = scmp.lt.s32.totalorder %s50, 1
        %s3301 = scalar_select %p3300, %s50, 1
        %s3302 = smul.addr %s3301, 2
        %s3303 = smul.addr %s3299, 4
        %s3304 = sadd.s32 %s3302, %s3303
        %s3305 = smul.addr %s3304, 8
        %s3306 = scalar_lea.vmem %s24, %s3305
        %p3307 = scmp.lt.s32.totalorder %s49, 1
        %s3308 = scalar_select %p3307, %s49, 1
        %p3309 = scmp.lt.s32.totalorder %s50, 1
        %s3310 = scalar_select %p3309, %s50, 1
        %s3311 = smul.addr %s3310, 3
        %s3312 = smul.addr %s3308, 6
        %s3313 = sadd.s32 %s3311, %s3312
        %s3314 = smul.addr %s3313, 8
        %s3315 = scalar_lea.vmem %s25, %s3314
        %p3316 = scmp.lt.s32.totalorder %s49, 1
        %s3317 = scalar_select %p3316, %s49, 1
        %p3318 = scmp.lt.s32.totalorder %s50, 1
        %s3319 = scalar_select %p3318, %s50, 1
        %s3320 = smul.addr %s3319, 3
        %s3321 = smul.addr %s3317, 6
        %s3322 = sadd.s32 %s3320, %s3321
        %s3323 = smul.addr %s3322, 8
        %s3324 = scalar_lea.vmem %s26, %s3323
        %p3325 = scmp.lt.s32.totalorder %s49, 1
        %s3326 = scalar_select %p3325, %s49, 1
        %p3327 = scmp.lt.s32.totalorder %s50, 1
        %s3328 = scalar_select %p3327, %s50, 1
        %s3329 = smul.addr %s3328, 3
        %s3330 = smul.addr %s3326, 6
        %s3331 = sadd.s32 %s3329, %s3330
        %s3332 = smul.addr %s3331, 8
        %s3333 = scalar_lea.vmem %s27, %s3332
        // Predicated region
        $region117: #{tpu_custom_call.1} parent=107 // pred_check
          %p3334 = pneg %p563
        $region118: #{tpu_custom_call.1} parent=107 // pred_check_branch
          %3336 = sbr.rel (%p3334) target = $region120
        $region119: #{tpu_custom_call.1} parent=107 // pred_region
          _
        $region120: #{tpu_custom_call.1} parent=107 // pred_fallthru
          _
        // Predicated region
        $region121: #{tpu_custom_call.1} parent=107 // pred_check
          %p3337 = pneg %p591
        $region122: #{tpu_custom_call.1} parent=107 // pred_check_branch
          %3339 = sbr.rel (%p3337) target = $region124
        $region123: #{tpu_custom_call.1} parent=107 // pred_region
          _
        $region124: #{tpu_custom_call.1} parent=107 // pred_fallthru
          _
        // Predicated region
        $region125: #{tpu_custom_call.1} parent=107 // pred_check
          %p3340 = pneg %p619
        $region126: #{tpu_custom_call.1} parent=107 // pred_check_branch
          %3342 = sbr.rel (%p3340) target = $region128
        $region127: #{tpu_custom_call.1} parent=107 // pred_region
          _
        $region128: #{tpu_custom_call.1} parent=107 // pred_fallthru
          _
        // Predicated region
        $region129: #{tpu_custom_call.1} parent=107 // pred_check
          %p3343 = pneg %p647
        $region130: #{tpu_custom_call.1} parent=107 // pred_check_branch
          %3345 = sbr.rel (%p3343) target = $region132
        $region131: #{tpu_custom_call.1} parent=107 // pred_region
          _
        $region132: #{tpu_custom_call.1} parent=107 // pred_fallthru
          _
        // Predicated region
        $region133: #{tpu_custom_call.1} parent=107 // pred_check
          %p3346 = pneg %p675
        $region134: #{tpu_custom_call.1} parent=107 // pred_check_branch
          %3348 = sbr.rel (%p3346) target = $region136
        $region135: #{tpu_custom_call.1} parent=107 // pred_region
          _
        $region136: #{tpu_custom_call.1} parent=107 // pred_fallthru
          _
        // Predicated region
        $region137: #{tpu_custom_call.1} parent=107 // pred_check
          %p3349 = pneg %p703
        $region138: #{tpu_custom_call.1} parent=107 // pred_check_branch
          %3351 = sbr.rel (%p3349) target = $region140
        $region139: #{tpu_custom_call.1} parent=107 // pred_region
          _
        $region140: #{tpu_custom_call.1} parent=107 // pred_fallthru
          _
      $region108: #{tpu_custom_call.1} parent=5 // pred_fallthru
        _
      %p3352 = scmp.le.s32.totalorder 2, %s40
      // Predicated region
      $region141: #{tpu_custom_call.1} parent=5 // pred_check
        %p3353 = pneg %p3352
      $region142: #{tpu_custom_call.1} parent=5 // pred_check_branch
        %3355 = sbr.rel (%p3353) target = $region144
      $region143: #{tpu_custom_call.1} parent=5 // pred_region
        %s3356 = ssub.s32 %s40, 2
        // Predicated region
        $region145: #{tpu_custom_call.1} parent=143 // pred_check
          %p3357 = pneg %p569
        $region146: #{tpu_custom_call.1} parent=143 // pred_check_branch
          %3359 = sbr.rel (%p3357) target = $region148
        $region147: #{tpu_custom_call.1} parent=143 // pred_region
          %p3360 = scmp.lt.s32.totalorder %s51, 1
          %s3361 = scalar_select %p3360, %s51, 1
          %p3362 = scmp.lt.s32.totalorder %s52, 1
          %s3363 = scalar_select %p3362, %s52, 1
          %s3364 = smul.addr %s3363, 2
          %s3365 = smul.addr %s3361, 4
          %s3366 = sadd.s32 %s3364, %s3365
          %s3367 = smul.addr %s3366, 8
          %s3368 = scalar_lea.vmem %s22, %s3367
        $region148: #{tpu_custom_call.1} parent=143 // pred_fallthru
          _
        // Predicated region
        $region149: #{tpu_custom_call.1} parent=143 // pred_check
          %p3369 = pneg %p597
        $region150: #{tpu_custom_call.1} parent=143 // pred_check_branch
          %3371 = sbr.rel (%p3369) target = $region152
        $region151: #{tpu_custom_call.1} parent=143 // pred_region
          %p3372 = scmp.lt.s32.totalorder %s51, 1
          %s3373 = scalar_select %p3372, %s51, 1
          %p3374 = scmp.lt.s32.totalorder %s52, 1
          %s3375 = scalar_select %p3374, %s52, 1
          %s3376 = smul.addr %s3375, 2
          %s3377 = smul.addr %s3373, 4
          %s3378 = sadd.s32 %s3376, %s3377
          %s3379 = smul.addr %s3378, 8
          %s3380 = scalar_lea.vmem %s23, %s3379
        $region152: #{tpu_custom_call.1} parent=143 // pred_fallthru
          _
        // Predicated region
        $region153: #{tpu_custom_call.1} parent=143 // pred_check
          %p3381 = pneg %p625
        $region154: #{tpu_custom_call.1} parent=143 // pred_check_branch
          %3383 = sbr.rel (%p3381) target = $region156
        $region155: #{tpu_custom_call.1} parent=143 // pred_region
          %p3384 = scmp.lt.s32.totalorder %s51, 1
          %s3385 = scalar_select %p3384, %s51, 1
          %p3386 = scmp.lt.s32.totalorder %s52, 1
          %s3387 = scalar_select %p3386, %s52, 1
          %s3388 = smul.addr %s3387, 2
          %s3389 = smul.addr %s3385, 4
          %s3390 = sadd.s32 %s3388, %s3389
          %s3391 = smul.addr %s3390, 8
          %s3392 = scalar_lea.vmem %s24, %s3391
        $region156: #{tpu_custom_call.1} parent=143 // pred_fallthru
          _
        // Predicated region
        $region157: #{tpu_custom_call.1} parent=143 // pred_check
          %p3393 = pneg %p653
        $region158: #{tpu_custom_call.1} parent=143 // pred_check_branch
          %3395 = sbr.rel (%p3393) target = $region160
        $region159: #{tpu_custom_call.1} parent=143 // pred_region
          %p3396 = scmp.lt.s32.totalorder %s51, 1
          %s3397 = scalar_select %p3396, %s51, 1
          %p3398 = scmp.lt.s32.totalorder %s52, 1
          %s3399 = scalar_select %p3398, %s52, 1
          %s3400 = smul.addr %s3399, 3
          %s3401 = smul.addr %s3397, 6
          %s3402 = sadd.s32 %s3400, %s3401
          %s3403 = smul.addr %s3402, 8
          %s3404 = scalar_lea.vmem %s25, %s3403
        $region160: #{tpu_custom_call.1} parent=143 // pred_fallthru
          _
        // Predicated region
        $region161: #{tpu_custom_call.1} parent=143 // pred_check
          %p3405 = pneg %p681
        $region162: #{tpu_custom_call.1} parent=143 // pred_check_branch
          %3407 = sbr.rel (%p3405) target = $region164
        $region163: #{tpu_custom_call.1} parent=143 // pred_region
          %p3408 = scmp.lt.s32.totalorder %s51, 1
          %s3409 = scalar_select %p3408, %s51, 1
          %p3410 = scmp.lt.s32.totalorder %s52, 1
          %s3411 = scalar_select %p3410, %s52, 1
          %s3412 = smul.addr %s3411, 3
          %s3413 = smul.addr %s3409, 6
          %s3414 = sadd.s32 %s3412, %s3413
          %s3415 = smul.addr %s3414, 8
          %s3416 = scalar_lea.vmem %s26, %s3415
        $region164: #{tpu_custom_call.1} parent=143 // pred_fallthru
          _
        // Predicated region
        $region165: #{tpu_custom_call.1} parent=143 // pred_check
          %p3417 = pneg %p709
        $region166: #{tpu_custom_call.1} parent=143 // pred_check_branch
          %3419 = sbr.rel (%p3417) target = $region168
        $region167: #{tpu_custom_call.1} parent=143 // pred_region
          %p3420 = scmp.lt.s32.totalorder %s51, 1
          %s3421 = scalar_select %p3420, %s51, 1
          %p3422 = scmp.lt.s32.totalorder %s52, 1
          %s3423 = scalar_select %p3422, %s52, 1
          %s3424 = smul.addr %s3423, 3
          %s3425 = smul.addr %s3421, 6
          %s3426 = sadd.s32 %s3424, %s3425
          %s3427 = smul.addr %s3426, 8
          %s3428 = scalar_lea.vmem %s27, %s3427
        $region168: #{tpu_custom_call.1} parent=143 // pred_fallthru
          _
      $region144: #{tpu_custom_call.1} parent=5 // pred_fallthru
        _
    $region6: #{tpu_custom_call.1} parent=1 // loop_footer
      %s44 = sadd.s32 1, %s40
    $region7: #{tpu_custom_call.1} parent=1 // loop_footer_branch
      %39 = sbr.rel target = $region3
    $region8: #{tpu_custom_call.1} parent=1 // loop_exit
      _
    %3429 = vsyncpa [#allocation5], 1
    %s3430 = scalar_lea.sflag [#allocation5], 1
    %3431 = vsyncpa %s3430, 1
    %3432 = vsyncpa [#allocation7], 1

</llo_original>
